<compile_context>
chip_gen: v7x
topology: tpu7x:2x2x1
jax: 0.10.0
libtpu: 0.0.40
codegen_flags: <defaults>
</compile_context>

<pallas_src>
import functools
import math

import jax
import jax.numpy as jnp
from jax.experimental import pallas as pl
from jax.experimental.pallas import tpu as pltpu


_VMEM_LIMIT = 48 * 1024 * 1024   # safe headroom on v7x (64 MiB physical)


# ------------------------------ tiling helpers -------------------------------

def _round_up(x, m):
    return ((x + m - 1) // m) * m


def _pick_tile(dim, target, align):
    """Pick a bounded, aligned tile and the (zero-)padded extent.

    Never falls back to a huge full-extent mono-tile: if `dim` is larger than
    `target` and has no convenient divisor, the array is padded up to a
    multiple of `target` instead (ragged edge handled by padding + slicing).
    """
    if dim <= target:
        t = _round_up(dim, align)
        return t, t
    t = (target // align) * align
    while t >= max(align, target // 2):
        if dim % t == 0:
            return t, dim
        t -= align
    return target, _round_up(dim, target)


def _pad2(a, rows, cols):
    r, c = a.shape
    if r == rows and c == cols:
        return a
    return jnp.pad(a, ((0, rows - r), (0, cols - c)))


def _quick_gelu(y):
    # x * sigmoid(1.702 x); sigmoid(z) = 0.5*(1 + tanh(z/2)) -> single EUP op.
    return y * (0.5 * (jnp.tanh(0.851 * y) + 1.0))


# ----------------------------- Pallas kernels -------------------------------

def _matmul_kernel(x_ref, w_ref, b_ref, o_ref, acc_ref, *, activation):
    # bf16 operands, f32 accumulation in VMEM scratch.
    @pl.when(pl.program_id(2) == 0)
    def _():
        acc_ref[...] = jnp.zeros_like(acc_ref)

    acc_ref[...] += jnp.dot(x_ref[...], w_ref[...],
                            preferred_element_type=jnp.float32)

    @pl.when(pl.program_id(2) == pl.num_programs(2) - 1)
    def _():
        y = acc_ref[...] + b_ref[...]
        if activation == "quickgelu":
            y = _quick_gelu(y)
        o_ref[...] = y.astype(o_ref.dtype)


def linear(x, w, b=None, activation=None, out_dtype=jnp.bfloat16):
    """out = x @ w + b (optionally fused QuickGELU). Tiled over M/N/K with
    zero-padding to aligned tile multiples (outputs sliced back)."""
    M, K = x.shape
    N = w.shape[1]
    if b is None:
        b = jnp.zeros((N,), jnp.float32)
    tm, Mp = _pick_tile(M, 512, 8)
    tk, Kp = _pick_tile(K, 512, 128)
    tn, Np = _pick_tile(N, 512, 128)

    xp = _pad2(x, Mp, Kp).astype(jnp.bfloat16)
    wp = _pad2(w, Kp, Np).astype(jnp.bfloat16)
    bp = (jnp.pad(b, (0, Np - N)) if Np != N else b).reshape(1, Np)
    bp = bp.astype(jnp.float32)

    kern = functools.partial(_matmul_kernel, activation=activation)
    out = pl.pallas_call(
        kern,
        out_shape=jax.ShapeDtypeStruct((Mp, Np), out_dtype),
        grid=(Mp // tm, Np // tn, Kp // tk),
        in_specs=[
            pl.BlockSpec((tm, tk), lambda i, j, k: (i, k)),
            pl.BlockSpec((tk, tn), lambda i, j, k: (k, j)),
            pl.BlockSpec((1, tn), lambda i, j, k: (0, j)),
        ],
        out_specs=pl.BlockSpec((tm, tn), lambda i, j, k: (i, j)),
        scratch_shapes=[pltpu.VMEM((tm, tn), jnp.float32)],
        compiler_params=pltpu.CompilerParams(
            dimension_semantics=("parallel", "parallel", "arbitrary"),
            vmem_limit_bytes=_VMEM_LIMIT),
    )(xp, wp, bp)
    return out[:M, :N]


def _ln_matmul_kernel(x_ref, g_ref, bln_ref, w_ref, b_ref, o_ref, xn_ref, *,
                      activation, eps):
    # LayerNorm (f32 stats) fused into the following matmul.  The normalized
    # tile is computed once per M-tile (j == 0) into bf16 VMEM scratch and
    # reused across every N-tile: no redundant VPU/XLU/EUP passes.
    @pl.when(pl.program_id(1) == 0)
    def _():
        x = x_ref[...].astype(jnp.float32)
        mean = jnp.mean(x, axis=-1, keepdims=True)
        var = jnp.mean(jnp.square(x - mean), axis=-1, keepdims=True)
        xn = (x - mean) * jax.lax.rsqrt(var + eps)
        xn_ref[...] = (xn * g_ref[...] + bln_ref[...]).astype(xn_ref.dtype)

    y = jnp.dot(xn_ref[...], w_ref[...],
                preferred_element_type=jnp.float32) + b_ref[...]
    if activation == "quickgelu":
        y = _quick_gelu(y)
    o_ref[...] = y.astype(o_ref.dtype)


def ln_linear(x, ln_g, ln_b, w, b=None, activation=None,
              out_dtype=jnp.bfloat16):
    """out = LayerNorm(x) @ w + b.  K kept whole so LN stats see the full row;
    M/N padded + tiled.  Weight tile is reused by keeping the M-tile large."""
    M, K = x.shape
    N = w.shape[1]
    if b is None:
        b = jnp.zeros((N,), jnp.float32)
    tm, Mp = _pick_tile(M, 1024, 8)
    tn, Np = _pick_tile(N, 512, 128)

    xp = _pad2(x, Mp, K).astype(jnp.bfloat16)
    wp = _pad2(w, K, Np).astype(jnp.bfloat16)
    bp = (jnp.pad(b, (0, Np - N)) if Np != N else b).reshape(1, Np)
    bp = bp.astype(jnp.float32)

    kern = functools.partial(_ln_matmul_kernel, activation=activation, eps=1e-5)
    out = pl.pallas_call(
        kern,
        out_shape=jax.ShapeDtypeStruct((Mp, Np), out_dtype),
        grid=(Mp // tm, Np // tn),
        in_specs=[
            pl.BlockSpec((tm, K), lambda i, j: (i, 0)),
            pl.BlockSpec((1, K), lambda i, j: (0, 0)),
            pl.BlockSpec((1, K), lambda i, j: (0, 0)),
            pl.BlockSpec((K, tn), lambda i, j: (0, j)),
            pl.BlockSpec((1, tn), lambda i, j: (0, j)),
        ],
        out_specs=pl.BlockSpec((tm, tn), lambda i, j: (i, j)),
        scratch_shapes=[pltpu.VMEM((tm, K), jnp.bfloat16)],
        compiler_params=pltpu.CompilerParams(
            dimension_semantics=("parallel", "arbitrary"),
            vmem_limit_bytes=_VMEM_LIMIT),
    )(xp,
      ln_g.reshape(1, K).astype(jnp.float32),
      ln_b.reshape(1, K).astype(jnp.float32),
      wp, bp)
    return out[:M, :N]


def _ln_kernel(x_ref, g_ref, b_ref, o_ref, *, eps):
    x = x_ref[...].astype(jnp.float32)        # fp32 math (torch LayerNorm subclass)
    mean = jnp.mean(x, axis=-1, keepdims=True)
    var = jnp.mean(jnp.square(x - mean), axis=-1, keepdims=True)
    y = (x - mean) * jax.lax.rsqrt(var + eps)
    o_ref[...] = (y * g_ref[...] + b_ref[...]).astype(o_ref.dtype)


def layernorm(x, g, b, out_dtype=jnp.bfloat16):
    M, D = x.shape
    tm, Mp = _pick_tile(M, 1024, 8)
    xp = _pad2(x, Mp, D)
    out = pl.pallas_call(
        functools.partial(_ln_kernel, eps=1e-5),
        out_shape=jax.ShapeDtypeStruct((Mp, D), out_dtype),
        grid=(Mp // tm,),
        in_specs=[
            pl.BlockSpec((tm, D), lambda i: (i, 0)),
            pl.BlockSpec((1, D), lambda i: (0, 0)),
            pl.BlockSpec((1, D), lambda i: (0, 0)),
        ],
        out_specs=pl.BlockSpec((tm, D), lambda i: (i, 0)),
        compiler_params=pltpu.CompilerParams(
            dimension_semantics=("parallel",),
            vmem_limit_bytes=_VMEM_LIMIT),
    )(xp, g.reshape(1, D).astype(jnp.float32), b.reshape(1, D).astype(jnp.float32))
    return out[:M]


def _sdpa_kernel(q_ref, k_ref, v_ref, *rest, dh, scale, has_mask):
    if has_mask:
        m_ref, o_ref = rest
    else:
        (o_ref,) = rest
    Dg = q_ref.shape[-1]
    heads = Dg // dh
    # Fold 1/sqrt(dh) into q once per block (L*Dg mults instead of H*L^2).
    qa = (q_ref[0].astype(jnp.float32) * scale).astype(jnp.bfloat16)
    ka = k_ref[0]
    va = v_ref[0]
    for h in range(heads):                         # static unroll within group
        lo, hi = h * dh, (h + 1) * dh
        q = qa[:, lo:hi]
        k = ka[:, lo:hi]
        v = va[:, lo:hi]
        # q @ k^T without an explicit transpose: contract the Dh axis directly.
        s = jax.lax.dot_general(q, k, (((1,), (1,)), ((), ())),
                                preferred_element_type=jnp.float32)
        if has_mask:
            s = s + m_ref[...]
        s = s - jnp.max(s, axis=-1, keepdims=True)
        p = jnp.exp(s)
        denom = jnp.sum(p, axis=-1, keepdims=True)
        o = jnp.dot(p.astype(v.dtype), v, preferred_element_type=jnp.float32)
        # Write this head's slice straight into the output block: no big
        # concatenate, bounded live ranges.
        o_ref[0, :, lo:hi] = (o / denom).astype(o_ref.dtype)


def sdpa(q, k, v, n_head, scale, mask=None, out_dtype=jnp.bfloat16):
    """q, k, v, out: (B, L, H*Dh).  Grid over (batch, 128-lane head group)."""
    B, L, D = q.shape
    dh = D // n_head
    # Pack heads into 128-lane groups when possible (lane-dense slices/stores,
    # and a second parallel grid axis to feed both v7x TensorCores).
    if D % 128 == 0 and dh <= 128 and 128 % dh == 0:
        group_d = 128
    else:
        group_d = D
    n_groups = D // group_d

    has_mask = mask is not None
    kern = functools.partial(_sdpa_kernel, dh=dh, scale=scale,
                             has_mask=has_mask)
    in_specs = [pl.BlockSpec((1, L, group_d), lambda b, g: (b, 0, g))
                for _ in range(3)]
    args = [q.astype(jnp.bfloat16), k.astype(jnp.bfloat16),
            v.astype(jnp.bfloat16)]
    if has_mask:
        in_specs.append(pl.BlockSpec((L, L), lambda b, g: (0, 0)))
        args.append(mask.astype(jnp.float32))
    return pl.pallas_call(
        kern,
        out_shape=jax.ShapeDtypeStruct((B, L, D), out_dtype),
        grid=(B, n_groups),
        in_specs=in_specs,
        out_specs=pl.BlockSpec((1, L, group_d), lambda b, g: (b, 0, g)),
        compiler_params=pltpu.CompilerParams(
            dimension_semantics=("parallel", "parallel"),
            vmem_limit_bytes=_VMEM_LIMIT),
    )(*args)


# ------------------------- Transformer building blocks ----------------------

def residual_block(x, p, n_head, mask):
    """x: (B, L, D) batch-first, bf16 residual stream."""
    B, L, D = x.shape
    x2 = x.reshape(B * L, D)

    # ln_1 fused into the QKV projection (nn.MultiheadAttention in_proj).
    qkv = ln_linear(x2, p["ln1_g"], p["ln1_b"], p["qkv_w"], p["qkv_b"])
    q, k, v = jnp.split(qkv, 3, axis=-1)
    hd = D // n_head
    o = sdpa(q.reshape(B, L, D), k.reshape(B, L, D), v.reshape(B, L, D),
             n_head, hd ** -0.5, mask)
    x2 = x2 + linear(o.reshape(B * L, D), p["out_w"], p["out_b"])

    # ln_2 fused into the MLP c_fc (+ QuickGELU), then c_proj.
    h = ln_linear(x2, p["ln2_g"], p["ln2_b"], p["fc_w"], p["fc_b"],
                  activation="quickgelu")
    x2 = x2 + linear(h, p["proj_w"], p["proj_b"])
    return x2.reshape(B, L, D)


# --------------------------------- Encoders ---------------------------------

def vision_forward(image, vp, n_head):
    B, C, H, W = image.shape
    width = vp["patch_w"].shape[1]
    psz = int(round(math.sqrt(vp["patch_w"].shape[0] // C)))
    gh, gw = H // psz, W // psz

    # Patch-embedding conv as patch-extraction + Pallas matmul (no bias).
    patches = (image.reshape(B, C, gh, psz, gw, psz)
               .transpose(0, 2, 4, 1, 3, 5)
               .reshape(B * gh * gw, C * psz * psz)).astype(jnp.bfloat16)
    x = linear(patches, vp["patch_w"])                        # (B*gh*gw, width)
    x = x.reshape(B, gh * gw, width)

    cls = jnp.broadcast_to(vp["class_embedding"].reshape(1, 1, width),
                           (B, 1, width))
    x = jnp.concatenate([cls, x], axis=1)                     # (B, L, width)
    x = x + vp["positional_embedding"][None]
    L = x.shape[1]
    x = layernorm(x.reshape(B * L, width), vp["ln_pre_g"],
                  vp["ln_pre_b"]).reshape(B, L, width)

    for blk in vp["blocks"]:
        x = residual_block(x, blk, n_head, mask=None)         # ViT: no attn mask

    x_cls = x[:, 0, :]                                        # (B, width)
    # ln_post fused into the output projection.
    return ln_linear(x_cls, vp["ln_post_g"], vp["ln_post_b"], vp["proj"],
                     out_dtype=jnp.float32)                   # (B, embed_dim)


def text_forward(text, tp, n_head):
    B, L = text.shape
    D = tp["token_embedding"].shape[1]
    x = jnp.take(tp["token_embedding"], text, axis=0)         # bf16 (B, L, D)
    x = x + tp["positional_embedding"][None]

    for blk in tp["blocks"]:
        x = residual_block(x, blk, n_head, tp["attn_mask"])

    x = layernorm(x.reshape(B * L, D), tp["ln_final_g"],
                  tp["ln_final_b"]).reshape(B, L, D)
    eot = jnp.argmax(text, axis=-1)
    xe = x[jnp.arange(B), eot]                                # (B, D)
    return linear(xe, tp["text_projection"], out_dtype=jnp.float32)


def clip_forward(params, image, text, *, vision_heads, transformer_heads):
    img_f = vision_forward(image, params["visual"], vision_heads)
    txt_f = text_forward(text, params["text"], transformer_heads)
    img_f = img_f / jnp.linalg.norm(img_f, axis=-1, keepdims=True)
    txt_f = txt_f / jnp.linalg.norm(txt_f, axis=-1, keepdims=True)
    scale = jnp.exp(params["logit_scale"])
    # Tiny (B, B) cosine-similarity matmul: keep it in plain f32 for parity.
    logits_per_image = scale * (img_f @ txt_f.T)
    logits_per_text = logits_per_image.T
    return logits_per_image, logits_per_text


# --------------------------- Parameter construction --------------------------

def _init_ln(d):
    return {"g": jnp.ones((d,), jnp.float32), "b": jnp.zeros((d,), jnp.float32)}


def _init_resblock(key, d, attn_std, proj_std, fc_std):
    k1, k2, k3, k4 = jax.random.split(key, 4)
    return {
        "in_w": attn_std * jax.random.normal(k1, (3 * d, d), jnp.float32),
        "in_b": jnp.zeros((3 * d,), jnp.float32),
        "out_w": proj_std * jax.random.normal(k2, (d, d), jnp.float32),
        "out_b": jnp.zeros((d,), jnp.float32),
        "fc_w": fc_std * jax.random.normal(k3, (4 * d, d), jnp.float32),
        "fc_b": jnp.zeros((4 * d,), jnp.float32),
        "proj_w": proj_std * jax.random.normal(k4, (d, 4 * d), jnp.float32),
        "proj_b": jnp.zeros((d,), jnp.float32),
        "ln1": _init_ln(d),
        "ln2": _init_ln(d),
    }


def init_clip_params(key, *, embed_dim, image_resolution, vision_layers,
                     vision_width, vision_patch_size, context_length,
                     vocab_size, transformer_width, transformer_heads,
                     transformer_layers):
    keys = jax.random.split(key, 16)
    n_patches = (image_resolution // vision_patch_size) ** 2
    scale = vision_width ** -0.5

    v_proj_std = vision_width ** -0.5 * (2 * vision_layers) ** -0.5
    v_attn_std = vision_width ** -0.5
    v_fc_std = (2 * vision_width) ** -0.5
    vk = jax.random.split(keys[0], vision_layers)
    visual = {
        "conv1_w": 0.02 * jax.random.normal(
            keys[1], (vision_width, 3, vision_patch_size, vision_patch_size),
            jnp.float32),
        "class_embedding": scale * jax.random.normal(
            keys[2], (vision_width,), jnp.float32),
        "positional_embedding": scale * jax.random.normal(
            keys[3], (n_patches + 1, vision_width), jnp.float32),
        "ln_pre": _init_ln(vision_width),
        "ln_post": _init_ln(vision_width),
        "proj": scale * jax.random.normal(
            keys[4], (vision_width, embed_dim), jnp.float32),
        "blocks": [_init_resblock(vk[i], vision_width, v_attn_std, v_proj_std,
                                  v_fc_std) for i in range(vision_layers)],
    }

    t_proj_std = transformer_width ** -0.5 * (2 * transformer_layers) ** -0.5
    t_attn_std = transformer_width ** -0.5
    t_fc_std = (2 * transformer_width) ** -0.5
    tk = jax.random.split(keys[5], transformer_layers)
    causal_mask = jnp.where(
        jnp.triu(jnp.ones((context_length, context_length), jnp.float32), 1) > 0,
        jnp.float32(-jnp.inf), jnp.float32(0.0))
    text = {
        "token_embedding": 0.02 * jax.random.normal(
            keys[6], (vocab_size, transformer_width), jnp.float32),
        "positional_embedding": 0.01 * jax.random.normal(
            keys[7], (context_length, transformer_width), jnp.float32),
        "ln_final": _init_ln(transformer_width),
        "text_projection": transformer_width ** -0.5 * jax.random.normal(
            keys[8], (transformer_width, embed_dim), jnp.float32),
        "attn_mask": causal_mask,
        "blocks": [_init_resblock(tk[i], transformer_width, t_attn_std,
                                  t_proj_std, t_fc_std)
                   for i in range(transformer_layers)],
    }

    return {
        "visual": visual,
        "text": text,
        "logit_scale": jnp.asarray(math.log(1.0 / 0.07), jnp.float32),
    }


def _prep_block(p):
    """Pre-transpose + pre-cast block weights once (inference layout)."""
    return {
        "ln1_g": p["ln1"]["g"].astype(jnp.float32),
        "ln1_b": p["ln1"]["b"].astype(jnp.float32),
        "qkv_w": p["in_w"].T.astype(jnp.bfloat16),      # (d, 3d)
        "qkv_b": p["in_b"].astype(jnp.float32),
        "out_w": p["out_w"].T.astype(jnp.bfloat16),     # (d, d)
        "out_b": p["out_b"].astype(jnp.float32),
        "ln2_g": p["ln2"]["g"].astype(jnp.float32),
        "ln2_b": p["ln2"]["b"].astype(jnp.float32),
        "fc_w": p["fc_w"].T.astype(jnp.bfloat16),       # (d, 4d)
        "fc_b": p["fc_b"].astype(jnp.float32),
        "proj_w": p["proj_w"].T.astype(jnp.bfloat16),   # (4d, d)
        "proj_b": p["proj_b"].astype(jnp.float32),
    }


def prepare_params(params):
    """One-time conversion to inference layout: bf16 weights, transposed GEMM
    operands, flattened patch-embedding conv.  Runs once, outside the per-step
    forward, so no per-forward HBM pass is spent re-casting weights."""
    v = params["visual"]
    width = v["conv1_w"].shape[0]
    visual = {
        "patch_w": v["conv1_w"].reshape(width, -1).T.astype(jnp.bfloat16),
        "class_embedding": v["class_embedding"].astype(jnp.bfloat16),
        "positional_embedding": v["positional_embedding"].astype(jnp.bfloat16),
        "ln_pre_g": v["ln_pre"]["g"], "ln_pre_b": v["ln_pre"]["b"],
        "ln_post_g": v["ln_post"]["g"], "ln_post_b": v["ln_post"]["b"],
        "proj": v["proj"].astype(jnp.bfloat16),
        "blocks": [_prep_block(b) for b in v["blocks"]],
    }
    t = params["text"]
    text = {
        "token_embedding": t["token_embedding"].astype(jnp.bfloat16),
        "positional_embedding": t["positional_embedding"].astype(jnp.bfloat16),
        "ln_final_g": t["ln_final"]["g"], "ln_final_b": t["ln_final"]["b"],
        "text_projection": t["text_projection"].astype(jnp.bfloat16),
        "attn_mask": t["attn_mask"].astype(jnp.float32),
        "blocks": [_prep_block(b) for b in t["blocks"]],
    }
    return {"visual": visual, "text": text,
            "logit_scale": params["logit_scale"]}


# ------------------------------------ main -----------------------------------

if __name__ == "__main__":
    cfg = dict(
        embed_dim=32,
        image_resolution=16,
        vision_layers=2,          # int -> VisionTransformer branch of CLIP.__init__
        vision_width=64,          # vision_heads = 64 // 64 = 1
        vision_patch_size=8,
        context_length=8,
        vocab_size=64,
        transformer_width=32,
        transformer_heads=4,
        transformer_layers=2,
    )
    # TODO(synk): ModifiedResNet / AttentionPool2d branch (tuple vision_layers)
    # and the prefix_prompt / instance_tokens paths are not implemented here;
    # this script implements the VisionTransformer branch of CLIP.forward.

    key = jax.random.PRNGKey(0)
    pkey, ikey, tkey = jax.random.split(key, 3)
    params = prepare_params(init_clip_params(pkey, **cfg))

    image = jax.random.normal(
        ikey, (2, 3, cfg["image_resolution"], cfg["image_resolution"]),
        jnp.float32)
    text = jax.random.randint(
        tkey, (2, cfg["context_length"]), 0, cfg["vocab_size"], dtype=jnp.int32)

    forward = jax.jit(functools.partial(
        clip_forward,
        vision_heads=cfg["vision_width"] // 64,
        transformer_heads=cfg["transformer_heads"]))

    logits_per_image, logits_per_text = forward(params, image, text)
    jax.block_until_ready((logits_per_image, logits_per_text))

    assert logits_per_image.shape == (2, 2) and logits_per_text.shape == (2, 2)
    assert bool(jnp.all(jnp.isfinite(logits_per_image)))
    print("KERNEL_OK")
</pallas_src>

<mosaic_0001>
module attributes {stable_mosaic.version = 11 : i64} {
  func.func @_matmul_kernel(%arg0: i32, %arg1: i32, %arg2: i32, %arg3: memref<8x256xbf16, #tpu.memory_space<vmem>>, %arg4: memref<256x128xbf16, #tpu.memory_space<vmem>>, %arg5: memref<1x128xf32, #tpu.memory_space<vmem>>, %arg6: memref<8x128xbf16, #tpu.memory_space<vmem>>, %arg7: memref<8x128xf32, #tpu.memory_space<vmem>>) attributes {dimension_semantics = [#tpu.dimension_semantics<parallel>, #tpu.dimension_semantics<parallel>, #tpu.dimension_semantics<arbitrary>], iteration_bounds = array<i64: 1, 1, 1>, scalar_prefetch = 0 : i64, scratch_operands = 1 : i64, tpu.core_type = #tpu.core_type<tc>, window_params = [{transform_indices = @transform_0, window_bounds = array<i64: 8, 256>}, {transform_indices = @transform_1, window_bounds = array<i64: 256, 128>}, {transform_indices = @transform_2, window_bounds = array<i64: 1, 128>}, {transform_indices = @transform_3, window_bounds = array<i64: 8, 128>}]} {
    %c0_i32 = arith.constant 0 : i32
    %0 = arith.cmpi eq, %arg2, %c0_i32 : i32
    %1 = arith.extui %0 : i1 to i32
    %c0_i32_0 = arith.constant 0 : i32
    %2 = arith.cmpi ne, %1, %c0_i32_0 : i32
    scf.if %2 {
      %cst_10 = arith.constant 0.000000e+00 : f32
      %12 = vector.broadcast %cst_10 : f32 to vector<8x128xf32>
      %c0_11 = arith.constant 0 : index
      %c0_12 = arith.constant 0 : index
      %13 = vector.load %arg7[%c0_11, %c0_12] : memref<8x128xf32, #tpu.memory_space<vmem>>, vector<8x128xf32>
      tpu.vector_store %arg7[%c0_11, %c0_12], %12 {strides = array<i32>} : memref<8x128xf32, #tpu.memory_space<vmem>>, vector<8x128xf32>,
    } else {
    }
    %c0 = arith.constant 0 : index
    %c0_1 = arith.constant 0 : index
    %3 = vector.load %arg7[%c0, %c0_1] : memref<8x128xf32, #tpu.memory_space<vmem>>, vector<8x128xf32>
    %c0_2 = arith.constant 0 : index
    %c0_3 = arith.constant 0 : index
    %4 = vector.load %arg3[%c0_2, %c0_3] : memref<8x256xbf16, #tpu.memory_space<vmem>>, vector<8x256xbf16>
    %c0_4 = arith.constant 0 : index
    %c0_5 = arith.constant 0 : index
    %5 = vector.load %arg4[%c0_4, %c0_5] : memref<256x128xbf16, #tpu.memory_space<vmem>>, vector<256x128xbf16>
    %cst = arith.constant dense<0.000000e+00> : vector<8x128xf32>
    %6 = tpu.matmul %4, %5, %cst {dimension_numbers = #tpu.dot_dimension_numbers<[1], [0], [0], [1], [0, 0, 1, 1], [], []>} : vector<8x256xbf16>, vector<256x128xbf16>, vector<8x128xf32> -> vector<8x128xf32>
    %7 = arith.addf %3, %6 : vector<8x128xf32>
    %c0_6 = arith.constant 0 : index
    %c0_7 = arith.constant 0 : index
    %8 = vector.load %arg7[%c0_6, %c0_7] : memref<8x128xf32, #tpu.memory_space<vmem>>, vector<8x128xf32>
    tpu.vector_store %arg7[%c0_6, %c0_7], %7 {strides = array<i32>} : memref<8x128xf32, #tpu.memory_space<vmem>>, vector<8x128xf32>,
    %c0_i32_8 = arith.constant 0 : i32
    %9 = arith.cmpi eq, %arg2, %c0_i32_8 : i32
    %10 = arith.extui %9 : i1 to i32
    %c0_i32_9 = arith.constant 0 : i32
    %11 = arith.cmpi ne, %10, %c0_i32_9 : i32
    scf.if %11 {
      %c0_10 = arith.constant 0 : index
      %c0_11 = arith.constant 0 : index
      %12 = vector.load %arg7[%c0_10, %c0_11] : memref<8x128xf32, #tpu.memory_space<vmem>>, vector<8x128xf32>
      %c0_12 = arith.constant 0 : index
      %c0_13 = arith.constant 0 : index
      %13 = vector.load %arg5[%c0_12, %c0_13] : memref<1x128xf32, #tpu.memory_space<vmem>>, vector<1x128xf32>
      %14 = vector.broadcast %13 : vector<1x128xf32> to vector<8x128xf32>
      %15 = arith.addf %12, %14 : vector<8x128xf32>
      %16 = arith.truncf %15 : vector<8x128xf32> to vector<8x128xbf16>
      %c0_14 = arith.constant 0 : index
      %c0_15 = arith.constant 0 : index
      %17 = vector.load %arg6[%c0_14, %c0_15] : memref<8x128xbf16, #tpu.memory_space<vmem>>, vector<8x128xbf16>
      tpu.vector_store %arg6[%c0_14, %c0_15], %16 {strides = array<i32>} : memref<8x128xbf16, #tpu.memory_space<vmem>>, vector<8x128xbf16>,
    } else {
    }
    return
  }
  func.func @transform_0(%arg0: i32, %arg1: i32, %arg2: i32) -> (i32, i32) {
    %c0_i32 = arith.constant 0 : i32
    return %arg0, %arg2 : i32, i32
  }
  func.func @transform_1(%arg0: i32, %arg1: i32, %arg2: i32) -> (i32, i32) {
    %c0_i32 = arith.constant 0 : i32
    return %arg2, %arg1 : i32, i32
  }
  func.func @transform_2(%arg0: i32, %arg1: i32, %arg2: i32) -> (i32, i32) {
    %c0_i32 = arith.constant 0 : i32
    %c0_i32_0 = arith.constant 0 : i32
    return %c0_i32, %arg1 : i32, i32
  }
  func.func @transform_3(%arg0: i32, %arg1: i32, %arg2: i32) -> (i32, i32) {
    %c0_i32 = arith.constant 0 : i32
    return %arg0, %arg1 : i32, i32
  }
}

module attributes {stable_mosaic.version = 11 : i64} {
  func.func @_ln_matmul_kernel(%arg0: i32, %arg1: i32, %arg2: memref<16x64xbf16, #tpu.memory_space<vmem>>, %arg3: memref<1x64xf32, #tpu.memory_space<vmem>>, %arg4: memref<1x64xf32, #tpu.memory_space<vmem>>, %arg5: memref<64x256xbf16, #tpu.memory_space<vmem>>, %arg6: memref<1x256xf32, #tpu.memory_space<vmem>>, %arg7: memref<16x256xbf16, #tpu.memory_space<vmem>>, %arg8: memref<16x64xbf16, #tpu.memory_space<vmem>>) attributes {dimension_semantics = [#tpu.dimension_semantics<parallel>, #tpu.dimension_semantics<arbitrary>], iteration_bounds = array<i64: 1, 1>, scalar_prefetch = 0 : i64, scratch_operands = 1 : i64, tpu.core_type = #tpu.core_type<tc>, window_params = [{transform_indices = @transform_0, window_bounds = array<i64: 16, 64>}, {pipeline_mode = #tpu.pipeline_mode<synchronous>, transform_indices = @transform_1, window_bounds = array<i64: 1, 64>}, {pipeline_mode = #tpu.pipeline_mode<synchronous>, transform_indices = @transform_2, window_bounds = array<i64: 1, 64>}, {transform_indices = @transform_3, window_bounds = array<i64: 64, 256>}, {transform_indices = @transform_4, window_bounds = array<i64: 1, 256>}, {transform_indices = @transform_5, window_bounds = array<i64: 16, 256>}]} {
    %c0_i32 = arith.constant 0 : i32
    %0 = arith.cmpi eq, %arg1, %c0_i32 : i32
    %1 = arith.extui %0 : i1 to i32
    %c0_i32_0 = arith.constant 0 : i32
    %2 = arith.cmpi ne, %1, %c0_i32_0 : i32
    scf.if %2 {
      %c0_8 = arith.constant 0 : index
      %c0_9 = arith.constant 0 : index
      %11 = vector.load %arg2[%c0_8, %c0_9] : memref<16x64xbf16, #tpu.memory_space<vmem>>, vector<16x64xbf16>
      %12 = arith.extf %11 : vector<16x64xbf16> to vector<16x64xf32>
      %cst_10 = arith.constant dense<0.000000e+00> : vector<16xf32>
      %13 = vector.multi_reduction <add>, %12, %cst_10 [1] : vector<16x64xf32> to vector<16xf32>
      %14 = vector.shape_cast %13 : vector<16xf32> to vector<16x1xf32>
      %cst_11 = arith.constant 6.400000e+01 : f32
      %15 = vector.broadcast %cst_11 : f32 to vector<16x1xf32>
      %16 = arith.divf %14, %15 : vector<16x1xf32>
      %17 = vector.broadcast %16 : vector<16x1xf32> to vector<16x64xf32>
      %18 = arith.subf %12, %17 : vector<16x64xf32>
      %19 = arith.mulf %18, %18 : vector<16x64xf32>
      %cst_12 = arith.constant dense<0.000000e+00> : vector<16xf32>
      %20 = vector.multi_reduction <add>, %19, %cst_12 [1] : vector<16x64xf32> to vector<16xf32>
      %21 = vector.shape_cast %20 : vector<16xf32> to vector<16x1xf32>
      %cst_13 = arith.constant 6.400000e+01 : f32
      %22 = vector.broadcast %cst_13 : f32 to vector<16x1xf32>
      %23 = arith.divf %21, %22 : vector<16x1xf32>
      %24 = vector.broadcast %16 : vector<16x1xf32> to vector<16x64xf32>
      %25 = arith.subf %12, %24 : vector<16x64xf32>
      %cst_14 = arith.constant 9.99999974E-6 : f32
      %26 = vector.broadcast %cst_14 : f32 to vector<16x1xf32>
      %27 = arith.addf %23, %26 : vector<16x1xf32>
      %28 = math.rsqrt %27 : vector<16x1xf32>
      %29 = vector.broadcast %28 : vector<16x1xf32> to vector<16x64xf32>
      %30 = arith.mulf %25, %29 : vector<16x64xf32>
      %c0_15 = arith.constant 0 : index
      %c0_16 = arith.constant 0 : index
      %31 = vector.load %arg3[%c0_15, %c0_16] : memref<1x64xf32, #tpu.memory_space<vmem>>, vector<1x64xf32>
      %32 = vector.broadcast %31 : vector<1x64xf32> to vector<16x64xf32>
      %33 = arith.mulf %30, %32 : vector<16x64xf32>
      %c0_17 = arith.constant 0 : index
      %c0_18 = arith.constant 0 : index
      %34 = vector.load %arg4[%c0_17, %c0_18] : memref<1x64xf32, #tpu.memory_space<vmem>>, vector<1x64xf32>
      %35 = vector.broadcast %34 : vector<1x64xf32> to vector<16x64xf32>
      %36 = arith.addf %33, %35 : vector<16x64xf32>
      %37 = arith.truncf %36 : vector<16x64xf32> to vector<16x64xbf16>
      %c0_19 = arith.constant 0 : index
      %c0_20 = arith.constant 0 : index
      %38 = vector.load %arg8[%c0_19, %c0_20] : memref<16x64xbf16, #tpu.memory_space<vmem>>, vector<16x64xbf16>
      tpu.vector_store %arg8[%c0_19, %c0_20], %37 {strides = array<i32>} : memref<16x64xbf16, #tpu.memory_space<vmem>>, vector<16x64xbf16>,
    } else {
    }
    %c0 = arith.constant 0 : index
    %c0_1 = arith.constant 0 : index
    %3 = vector.load %arg8[%c0, %c0_1] : memref<16x64xbf16, #tpu.memory_space<vmem>>, vector<16x64xbf16>
    %c0_2 = arith.constant 0 : index
    %c0_3 = arith.constant 0 : index
    %4 = vector.load %arg5[%c0_2, %c0_3] : memref<64x256xbf16, #tpu.memory_space<vmem>>, vector<64x256xbf16>
    %cst = arith.constant dense<0.000000e+00> : vector<16x256xf32>
    %5 = tpu.matmul %3, %4, %cst {dimension_numbers = #tpu.dot_dimension_numbers<[1], [0], [0], [1], [0, 0, 1, 1], [], []>} : vector<16x64xbf16>, vector<64x256xbf16>, vector<16x256xf32> -> vector<16x256xf32>
    %c0_4 = arith.constant 0 : index
    %c0_5 = arith.constant 0 : index
    %6 = vector.load %arg6[%c0_4, %c0_5] : memref<1x256xf32, #tpu.memory_space<vmem>>, vector<1x256xf32>
    %7 = vector.broadcast %6 : vector<1x256xf32> to vector<16x256xf32>
    %8 = arith.addf %5, %7 : vector<16x256xf32>
    %9 = arith.truncf %8 : vector<16x256xf32> to vector<16x256xbf16>
    %c0_6 = arith.constant 0 : index
    %c0_7 = arith.constant 0 : index
    %10 = vector.load %arg7[%c0_6, %c0_7] : memref<16x256xbf16, #tpu.memory_space<vmem>>, vector<16x256xbf16>
    tpu.vector_store %arg7[%c0_6, %c0_7], %9 {strides = array<i32>} : memref<16x256xbf16, #tpu.memory_space<vmem>>, vector<16x256xbf16>,
    return
  }
  func.func @transform_0(%arg0: i32, %arg1: i32) -> (i32, i32) {
    %c0_i32 = arith.constant 0 : i32
    %c0_i32_0 = arith.constant 0 : i32
    return %arg0, %c0_i32 : i32, i32
  }
  func.func @transform_1(%arg0: i32, %arg1: i32) -> (i32, i32) {
    %c0_i32 = arith.constant 0 : i32
    %c0_i32_0 = arith.constant 0 : i32
    %c0_i32_1 = arith.constant 0 : i32
    return %c0_i32, %c0_i32_0 : i32, i32
  }
  func.func @transform_2(%arg0: i32, %arg1: i32) -> (i32, i32) {
    %c0_i32 = arith.constant 0 : i32
    %c0_i32_0 = arith.constant 0 : i32
    %c0_i32_1 = arith.constant 0 : i32
    return %c0_i32, %c0_i32_0 : i32, i32
  }
  func.func @transform_3(%arg0: i32, %arg1: i32) -> (i32, i32) {
    %c0_i32 = arith.constant 0 : i32
    %c0_i32_0 = arith.constant 0 : i32
    return %c0_i32, %arg1 : i32, i32
  }
  func.func @transform_4(%arg0: i32, %arg1: i32) -> (i32, i32) {
    %c0_i32 = arith.constant 0 : i32
    %c0_i32_0 = arith.constant 0 : i32
    return %c0_i32, %arg1 : i32, i32
  }
  func.func @transform_5(%arg0: i32, %arg1: i32) -> (i32, i32) {
    %c0_i32 = arith.constant 0 : i32
    return %arg0, %arg1 : i32, i32
  }
}

module attributes {stable_mosaic.version = 11 : i64} {
  func.func @_ln_kernel(%arg0: i32, %arg1: memref<16x64xbf16, #tpu.memory_space<vmem>>, %arg2: memref<1x64xf32, #tpu.memory_space<vmem>>, %arg3: memref<1x64xf32, #tpu.memory_space<vmem>>, %arg4: memref<16x64xbf16, #tpu.memory_space<vmem>>) attributes {dimension_semantics = [#tpu.dimension_semantics<parallel>], iteration_bounds = array<i64: 1>, scalar_prefetch = 0 : i64, scratch_operands = 0 : i64, tpu.core_type = #tpu.core_type<tc>, window_params = [{transform_indices = @transform_0, window_bounds = array<i64: 16, 64>}, {pipeline_mode = #tpu.pipeline_mode<synchronous>, transform_indices = @transform_1, window_bounds = array<i64: 1, 64>}, {pipeline_mode = #tpu.pipeline_mode<synchronous>, transform_indices = @transform_2, window_bounds = array<i64: 1, 64>}, {transform_indices = @transform_3, window_bounds = array<i64: 16, 64>}]} {
    %c0 = arith.constant 0 : index
    %c0_0 = arith.constant 0 : index
    %0 = vector.load %arg1[%c0, %c0_0] : memref<16x64xbf16, #tpu.memory_space<vmem>>, vector<16x64xbf16>
    %1 = arith.extf %0 : vector<16x64xbf16> to vector<16x64xf32>
    %cst = arith.constant dense<0.000000e+00> : vector<16xf32>
    %2 = vector.multi_reduction <add>, %1, %cst [1] : vector<16x64xf32> to vector<16xf32>
    %3 = vector.shape_cast %2 : vector<16xf32> to vector<16x1xf32>
    %cst_1 = arith.constant 6.400000e+01 : f32
    %4 = vector.broadcast %cst_1 : f32 to vector<16x1xf32>
    %5 = arith.divf %3, %4 : vector<16x1xf32>
    %6 = vector.broadcast %5 : vector<16x1xf32> to vector<16x64xf32>
    %7 = arith.subf %1, %6 : vector<16x64xf32>
    %8 = arith.mulf %7, %7 : vector<16x64xf32>
    %cst_2 = arith.constant dense<0.000000e+00> : vector<16xf32>
    %9 = vector.multi_reduction <add>, %8, %cst_2 [1] : vector<16x64xf32> to vector<16xf32>
    %10 = vector.shape_cast %9 : vector<16xf32> to vector<16x1xf32>
    %cst_3 = arith.constant 6.400000e+01 : f32
    %11 = vector.broadcast %cst_3 : f32 to vector<16x1xf32>
    %12 = arith.divf %10, %11 : vector<16x1xf32>
    %13 = vector.broadcast %5 : vector<16x1xf32> to vector<16x64xf32>
    %14 = arith.subf %1, %13 : vector<16x64xf32>
    %cst_4 = arith.constant 9.99999974E-6 : f32
    %15 = vector.broadcast %cst_4 : f32 to vector<16x1xf32>
    %16 = arith.addf %12, %15 : vector<16x1xf32>
    %17 = math.rsqrt %16 : vector<16x1xf32>
    %18 = vector.broadcast %17 : vector<16x1xf32> to vector<16x64xf32>
    %19 = arith.mulf %14, %18 : vector<16x64xf32>
    %c0_5 = arith.constant 0 : index
    %c0_6 = arith.constant 0 : index
    %20 = vector.load %arg2[%c0_5, %c0_6] : memref<1x64xf32, #tpu.memory_space<vmem>>, vector<1x64xf32>
    %21 = vector.broadcast %20 : vector<1x64xf32> to vector<16x64xf32>
    %22 = arith.mulf %19, %21 : vector<16x64xf32>
    %c0_7 = arith.constant 0 : index
    %c0_8 = arith.constant 0 : index
    %23 = vector.load %arg3[%c0_7, %c0_8] : memref<1x64xf32, #tpu.memory_space<vmem>>, vector<1x64xf32>
    %24 = vector.broadcast %23 : vector<1x64xf32> to vector<16x64xf32>
    %25 = arith.addf %22, %24 : vector<16x64xf32>
    %26 = arith.truncf %25 : vector<16x64xf32> to vector<16x64xbf16>
    %c0_9 = arith.constant 0 : index
    %c0_10 = arith.constant 0 : index
    %27 = vector.load %arg4[%c0_9, %c0_10] : memref<16x64xbf16, #tpu.memory_space<vmem>>, vector<16x64xbf16>
    tpu.vector_store %arg4[%c0_9, %c0_10], %26 {strides = array<i32>} : memref<16x64xbf16, #tpu.memory_space<vmem>>, vector<16x64xbf16>,
    return
  }
  func.func @transform_0(%arg0: i32) -> (i32, i32) {
    %c0_i32 = arith.constant 0 : i32
    %c0_i32_0 = arith.constant 0 : i32
    return %arg0, %c0_i32 : i32, i32
  }
  func.func @transform_1(%arg0: i32) -> (i32, i32) {
    %c0_i32 = arith.constant 0 : i32
    %c0_i32_0 = arith.constant 0 : i32
    %c0_i32_1 = arith.constant 0 : i32
    return %c0_i32, %c0_i32_0 : i32, i32
  }
  func.func @transform_2(%arg0: i32) -> (i32, i32) {
    %c0_i32 = arith.constant 0 : i32
    %c0_i32_0 = arith.constant 0 : i32
    %c0_i32_1 = arith.constant 0 : i32
    return %c0_i32, %c0_i32_0 : i32, i32
  }
  func.func @transform_3(%arg0: i32) -> (i32, i32) {
    %c0_i32 = arith.constant 0 : i32
    %c0_i32_0 = arith.constant 0 : i32
    return %arg0, %c0_i32 : i32, i32
  }
}

module attributes {stable_mosaic.version = 11 : i64} {
  func.func @_sdpa_kernel(%arg0: i32, %arg1: i32, %arg2: memref<1x5x64xbf16, #tpu.memory_space<vmem>>, %arg3: memref<1x5x64xbf16, #tpu.memory_space<vmem>>, %arg4: memref<1x5x64xbf16, #tpu.memory_space<vmem>>, %arg5: memref<1x5x64xbf16, #tpu.memory_space<vmem>>) attributes {dimension_semantics = [#tpu.dimension_semantics<parallel>, #tpu.dimension_semantics<parallel>], iteration_bounds = array<i64: 2, 1>, scalar_prefetch = 0 : i64, scratch_operands = 0 : i64, tpu.core_type = #tpu.core_type<tc>, window_params = [{transform_indices = @transform_0, window_bounds = array<i64: 1, 5, 64>}, {transform_indices = @transform_1, window_bounds = array<i64: 1, 5, 64>}, {transform_indices = @transform_2, window_bounds = array<i64: 1, 5, 64>}, {transform_indices = @transform_3, window_bounds = array<i64: 1, 5, 64>}]} {
    %c0 = arith.constant 0 : index
    %c0_0 = arith.constant 0 : index
    %c0_1 = arith.constant 0 : index
    %0 = vector.load %arg2[%c0, %c0_0, %c0_1] : memref<1x5x64xbf16, #tpu.memory_space<vmem>>, vector<1x5x64xbf16>
    %1 = vector.shape_cast %0 : vector<1x5x64xbf16> to vector<5x64xbf16>
    %2 = arith.extf %1 : vector<5x64xbf16> to vector<5x64xf32>
    %cst = arith.constant 1.250000e-01 : f32
    %3 = vector.broadcast %cst : f32 to vector<5x64xf32>
    %4 = arith.mulf %2, %3 : vector<5x64xf32>
    %5 = arith.truncf %4 : vector<5x64xf32> to vector<5x64xbf16>
    %c0_2 = arith.constant 0 : index
    %c0_3 = arith.constant 0 : index
    %c0_4 = arith.constant 0 : index
    %6 = vector.load %arg3[%c0_2, %c0_3, %c0_4] : memref<1x5x64xbf16, #tpu.memory_space<vmem>>, vector<1x5x64xbf16>
    %7 = vector.shape_cast %6 : vector<1x5x64xbf16> to vector<5x64xbf16>
    %c0_5 = arith.constant 0 : index
    %c0_6 = arith.constant 0 : index
    %c0_7 = arith.constant 0 : index
    %8 = vector.load %arg4[%c0_5, %c0_6, %c0_7] : memref<1x5x64xbf16, #tpu.memory_space<vmem>>, vector<1x5x64xbf16>
    %9 = vector.shape_cast %8 : vector<1x5x64xbf16> to vector<5x64xbf16>
    %cst_8 = arith.constant dense<0.000000e+00> : vector<5x5xf32>
    %10 = tpu.matmul %5, %7, %cst_8 {dimension_numbers = #tpu.dot_dimension_numbers<[1], [1], [0], [0], [0, 0, 1, 0], [], []>} : vector<5x64xbf16>, vector<5x64xbf16>, vector<5x5xf32> -> vector<5x5xf32>
    %cst_9 = arith.constant dense<0xFF800000> : vector<5xf32>
    %11 = vector.multi_reduction <maximumf>, %10, %cst_9 [1] : vector<5x5xf32> to vector<5xf32>
    %12 = vector.shape_cast %11 : vector<5xf32> to vector<5x1xf32>
    %13 = vector.broadcast %12 : vector<5x1xf32> to vector<5x5xf32>
    %14 = arith.subf %10, %13 : vector<5x5xf32>
    %15 = math.exp %14 : vector<5x5xf32>
    %cst_10 = arith.constant dense<0.000000e+00> : vector<5xf32>
    %16 = vector.multi_reduction <add>, %15, %cst_10 [1] : vector<5x5xf32> to vector<5xf32>
    %17 = vector.shape_cast %16 : vector<5xf32> to vector<5x1xf32>
    %18 = arith.truncf %15 : vector<5x5xf32> to vector<5x5xbf16>
    %cst_11 = arith.constant dense<0.000000e+00> : vector<5x64xf32>
    %19 = tpu.matmul %18, %9, %cst_11 {dimension_numbers = #tpu.dot_dimension_numbers<[1], [0], [0], [1], [0, 0, 1, 1], [], []>} : vector<5x5xbf16>, vector<5x64xbf16>, vector<5x64xf32> -> vector<5x64xf32>
    %20 = vector.broadcast %17 : vector<5x1xf32> to vector<5x64xf32>
    %21 = arith.divf %19, %20 : vector<5x64xf32>
    %22 = arith.truncf %21 : vector<5x64xf32> to vector<5x64xbf16>
    %c0_12 = arith.constant 0 : index
    %c0_13 = arith.constant 0 : index
    %c0_14 = arith.constant 0 : index
    %23 = vector.load %arg5[%c0_12, %c0_13, %c0_14] : memref<1x5x64xbf16, #tpu.memory_space<vmem>>, vector<1x5x64xbf16>
    %24 = vector.shape_cast %23 : vector<1x5x64xbf16> to vector<5x64xbf16>
    %25 = vector.shape_cast %22 : vector<5x64xbf16> to vector<1x5x64xbf16>
    tpu.vector_store %arg5[%c0_12, %c0_13, %c0_14], %25 {strides = array<i32>} : memref<1x5x64xbf16, #tpu.memory_space<vmem>>, vector<1x5x64xbf16>,
    return
  }
  func.func @transform_0(%arg0: i32, %arg1: i32) -> (i32, i32, i32) {
    %c0_i32 = arith.constant 0 : i32
    %c0_i32_0 = arith.constant 0 : i32
    return %arg0, %c0_i32, %arg1 : i32, i32, i32
  }
  func.func @transform_1(%arg0: i32, %arg1: i32) -> (i32, i32, i32) {
    %c0_i32 = arith.constant 0 : i32
    %c0_i32_0 = arith.constant 0 : i32
    return %arg0, %c0_i32, %arg1 : i32, i32, i32
  }
  func.func @transform_2(%arg0: i32, %arg1: i32) -> (i32, i32, i32) {
    %c0_i32 = arith.constant 0 : i32
    %c0_i32_0 = arith.constant 0 : i32
    return %arg0, %c0_i32, %arg1 : i32, i32, i32
  }
  func.func @transform_3(%arg0: i32, %arg1: i32) -> (i32, i32, i32) {
    %c0_i32 = arith.constant 0 : i32
    %c0_i32_0 = arith.constant 0 : i32
    return %arg0, %c0_i32, %arg1 : i32, i32, i32
  }
}

module attributes {stable_mosaic.version = 11 : i64} {
  func.func @_matmul_kernel(%arg0: i32, %arg1: i32, %arg2: i32, %arg3: memref<16x128xbf16, #tpu.memory_space<vmem>>, %arg4: memref<128x128xbf16, #tpu.memory_space<vmem>>, %arg5: memref<1x128xf32, #tpu.memory_space<vmem>>, %arg6: memref<16x128xbf16, #tpu.memory_space<vmem>>, %arg7: memref<16x128xf32, #tpu.memory_space<vmem>>) attributes {dimension_semantics = [#tpu.dimension_semantics<parallel>, #tpu.dimension_semantics<parallel>, #tpu.dimension_semantics<arbitrary>], iteration_bounds = array<i64: 1, 1, 1>, scalar_prefetch = 0 : i64, scratch_operands = 1 : i64, tpu.core_type = #tpu.core_type<tc>, window_params = [{transform_indices = @transform_0, window_bounds = array<i64: 16, 128>}, {transform_indices = @transform_1, window_bounds = array<i64: 128, 128>}, {transform_indices = @transform_2, window_bounds = array<i64: 1, 128>}, {transform_indices = @transform_3, window_bounds = array<i64: 16, 128>}]} {
    %c0_i32 = arith.constant 0 : i32
    %0 = arith.cmpi eq, %arg2, %c0_i32 : i32
    %1 = arith.extui %0 : i1 to i32
    %c0_i32_0 = arith.constant 0 : i32
    %2 = arith.cmpi ne, %1, %c0_i32_0 : i32
    scf.if %2 {
      %cst_10 = arith.constant 0.000000e+00 : f32
      %12 = vector.broadcast %cst_10 : f32 to vector<16x128xf32>
      %c0_11 = arith.constant 0 : index
      %c0_12 = arith.constant 0 : index
      %13 = vector.load %arg7[%c0_11, %c0_12] : memref<16x128xf32, #tpu.memory_space<vmem>>, vector<16x128xf32>
      tpu.vector_store %arg7[%c0_11, %c0_12], %12 {strides = array<i32>} : memref<16x128xf32, #tpu.memory_space<vmem>>, vector<16x128xf32>,
    } else {
    }
    %c0 = arith.constant 0 : index
    %c0_1 = arith.constant 0 : index
    %3 = vector.load %arg7[%c0, %c0_1] : memref<16x128xf32, #tpu.memory_space<vmem>>, vector<16x128xf32>
    %c0_2 = arith.constant 0 : index
    %c0_3 = arith.constant 0 : index
    %4 = vector.load %arg3[%c0_2, %c0_3] : memref<16x128xbf16, #tpu.memory_space<vmem>>, vector<16x128xbf16>
    %c0_4 = arith.constant 0 : index
    %c0_5 = arith.constant 0 : index
    %5 = vector.load %arg4[%c0_4, %c0_5] : memref<128x128xbf16, #tpu.memory_space<vmem>>, vector<128x128xbf16>
    %cst = arith.constant dense<0.000000e+00> : vector<16x128xf32>
    %6 = tpu.matmul %4, %5, %cst {dimension_numbers = #tpu.dot_dimension_numbers<[1], [0], [0], [1], [0, 0, 1, 1], [], []>} : vector<16x128xbf16>, vector<128x128xbf16>, vector<16x128xf32> -> vector<16x128xf32>
    %7 = arith.addf %3, %6 : vector<16x128xf32>
    %c0_6 = arith.constant 0 : index
    %c0_7 = arith.constant 0 : index
    %8 = vector.load %arg7[%c0_6, %c0_7] : memref<16x128xf32, #tpu.memory_space<vmem>>, vector<16x128xf32>
    tpu.vector_store %arg7[%c0_6, %c0_7], %7 {strides = array<i32>} : memref<16x128xf32, #tpu.memory_space<vmem>>, vector<16x128xf32>,
    %c0_i32_8 = arith.constant 0 : i32
    %9 = arith.cmpi eq, %arg2, %c0_i32_8 : i32
    %10 = arith.extui %9 : i1 to i32
    %c0_i32_9 = arith.constant 0 : i32
    %11 = arith.cmpi ne, %10, %c0_i32_9 : i32
    scf.if %11 {
      %c0_10 = arith.constant 0 : index
      %c0_11 = arith.constant 0 : index
      %12 = vector.load %arg7[%c0_10, %c0_11] : memref<16x128xf32, #tpu.memory_space<vmem>>, vector<16x128xf32>
      %c0_12 = arith.constant 0 : index
      %c0_13 = arith.constant 0 : index
      %13 = vector.load %arg5[%c0_12, %c0_13] : memref<1x128xf32, #tpu.memory_space<vmem>>, vector<1x128xf32>
      %14 = vector.broadcast %13 : vector<1x128xf32> to vector<16x128xf32>
      %15 = arith.addf %12, %14 : vector<16x128xf32>
      %16 = arith.truncf %15 : vector<16x128xf32> to vector<16x128xbf16>
      %c0_14 = arith.constant 0 : index
      %c0_15 = arith.constant 0 : index
      %17 = vector.load %arg6[%c0_14, %c0_15] : memref<16x128xbf16, #tpu.memory_space<vmem>>, vector<16x128xbf16>
      tpu.vector_store %arg6[%c0_14, %c0_15], %16 {strides = array<i32>} : memref<16x128xbf16, #tpu.memory_space<vmem>>, vector<16x128xbf16>,
    } else {
    }
    return
  }
  func.func @transform_0(%arg0: i32, %arg1: i32, %arg2: i32) -> (i32, i32) {
    %c0_i32 = arith.constant 0 : i32
    return %arg0, %arg2 : i32, i32
  }
  func.func @transform_1(%arg0: i32, %arg1: i32, %arg2: i32) -> (i32, i32) {
    %c0_i32 = arith.constant 0 : i32
    return %arg2, %arg1 : i32, i32
  }
  func.func @transform_2(%arg0: i32, %arg1: i32, %arg2: i32) -> (i32, i32) {
    %c0_i32 = arith.constant 0 : i32
    %c0_i32_0 = arith.constant 0 : i32
    return %c0_i32, %arg1 : i32, i32
  }
  func.func @transform_3(%arg0: i32, %arg1: i32, %arg2: i32) -> (i32, i32) {
    %c0_i32 = arith.constant 0 : i32
    return %arg0, %arg1 : i32, i32
  }
}

module attributes {stable_mosaic.version = 11 : i64} {
  func.func @_ln_matmul_kernel(%arg0: i32, %arg1: i32, %arg2: memref<16x64xbf16, #tpu.memory_space<vmem>>, %arg3: memref<1x64xf32, #tpu.memory_space<vmem>>, %arg4: memref<1x64xf32, #tpu.memory_space<vmem>>, %arg5: memref<64x256xbf16, #tpu.memory_space<vmem>>, %arg6: memref<1x256xf32, #tpu.memory_space<vmem>>, %arg7: memref<16x256xbf16, #tpu.memory_space<vmem>>, %arg8: memref<16x64xbf16, #tpu.memory_space<vmem>>) attributes {dimension_semantics = [#tpu.dimension_semantics<parallel>, #tpu.dimension_semantics<arbitrary>], iteration_bounds = array<i64: 1, 1>, scalar_prefetch = 0 : i64, scratch_operands = 1 : i64, tpu.core_type = #tpu.core_type<tc>, window_params = [{transform_indices = @transform_0, window_bounds = array<i64: 16, 64>}, {pipeline_mode = #tpu.pipeline_mode<synchronous>, transform_indices = @transform_1, window_bounds = array<i64: 1, 64>}, {pipeline_mode = #tpu.pipeline_mode<synchronous>, transform_indices = @transform_2, window_bounds = array<i64: 1, 64>}, {transform_indices = @transform_3, window_bounds = array<i64: 64, 256>}, {transform_indices = @transform_4, window_bounds = array<i64: 1, 256>}, {transform_indices = @transform_5, window_bounds = array<i64: 16, 256>}]} {
    %c0_i32 = arith.constant 0 : i32
    %0 = arith.cmpi eq, %arg1, %c0_i32 : i32
    %1 = arith.extui %0 : i1 to i32
    %c0_i32_0 = arith.constant 0 : i32
    %2 = arith.cmpi ne, %1, %c0_i32_0 : i32
    scf.if %2 {
      %c0_11 = arith.constant 0 : index
      %c0_12 = arith.constant 0 : index
      %19 = vector.load %arg2[%c0_11, %c0_12] : memref<16x64xbf16, #tpu.memory_space<vmem>>, vector<16x64xbf16>
      %20 = arith.extf %19 : vector<16x64xbf16> to vector<16x64xf32>
      %cst_13 = arith.constant dense<0.000000e+00> : vector<16xf32>
      %21 = vector.multi_reduction <add>, %20, %cst_13 [1] : vector<16x64xf32> to vector<16xf32>
      %22 = vector.shape_cast %21 : vector<16xf32> to vector<16x1xf32>
      %cst_14 = arith.constant 6.400000e+01 : f32
      %23 = vector.broadcast %cst_14 : f32 to vector<16x1xf32>
      %24 = arith.divf %22, %23 : vector<16x1xf32>
      %25 = vector.broadcast %24 : vector<16x1xf32> to vector<16x64xf32>
      %26 = arith.subf %20, %25 : vector<16x64xf32>
      %27 = arith.mulf %26, %26 : vector<16x64xf32>
      %cst_15 = arith.constant dense<0.000000e+00> : vector<16xf32>
      %28 = vector.multi_reduction <add>, %27, %cst_15 [1] : vector<16x64xf32> to vector<16xf32>
      %29 = vector.shape_cast %28 : vector<16xf32> to vector<16x1xf32>
      %cst_16 = arith.constant 6.400000e+01 : f32
      %30 = vector.broadcast %cst_16 : f32 to vector<16x1xf32>
      %31 = arith.divf %29, %30 : vector<16x1xf32>
      %32 = vector.broadcast %24 : vector<16x1xf32> to vector<16x64xf32>
      %33 = arith.subf %20, %32 : vector<16x64xf32>
      %cst_17 = arith.constant 9.99999974E-6 : f32
      %34 = vector.broadcast %cst_17 : f32 to vector<16x1xf32>
      %35 = arith.addf %31, %34 : vector<16x1xf32>
      %36 = math.rsqrt %35 : vector<16x1xf32>
      %37 = vector.broadcast %36 : vector<16x1xf32> to vector<16x64xf32>
      %38 = arith.mulf %33, %37 : vector<16x64xf32>
      %c0_18 = arith.constant 0 : index
      %c0_19 = arith.constant 0 : index
      %39 = vector.load %arg3[%c0_18, %c0_19] : memref<1x64xf32, #tpu.memory_space<vmem>>, vector<1x64xf32>
      %40 = vector.broadcast %39 : vector<1x64xf32> to vector<16x64xf32>
      %41 = arith.mulf %38, %40 : vector<16x64xf32>
      %c0_20 = arith.constant 0 : index
      %c0_21 = arith.constant 0 : index
      %42 = vector.load %arg4[%c0_20, %c0_21] : memref<1x64xf32, #tpu.memory_space<vmem>>, vector<1x64xf32>
      %43 = vector.broadcast %42 : vector<1x64xf32> to vector<16x64xf32>
      %44 = arith.addf %41, %43 : vector<16x64xf32>
      %45 = arith.truncf %44 : vector<16x64xf32> to vector<16x64xbf16>
      %c0_22 = arith.constant 0 : index
      %c0_23 = arith.constant 0 : index
      %46 = vector.load %arg8[%c0_22, %c0_23] : memref<16x64xbf16, #tpu.memory_space<vmem>>, vector<16x64xbf16>
      tpu.vector_store %arg8[%c0_22, %c0_23], %45 {strides = array<i32>} : memref<16x64xbf16, #tpu.memory_space<vmem>>, vector<16x64xbf16>,
    } else {
    }
    %c0 = arith.constant 0 : index
    %c0_1 = arith.constant 0 : index
    %3 = vector.load %arg8[%c0, %c0_1] : memref<16x64xbf16, #tpu.memory_space<vmem>>, vector<16x64xbf16>
    %c0_2 = arith.constant 0 : index
    %c0_3 = arith.constant 0 : index
    %4 = vector.load %arg5[%c0_2, %c0_3] : memref<64x256xbf16, #tpu.memory_space<vmem>>, vector<64x256xbf16>
    %cst = arith.constant dense<0.000000e+00> : vector<16x256xf32>
    %5 = tpu.matmul %3, %4, %cst {dimension_numbers = #tpu.dot_dimension_numbers<[1], [0], [0], [1], [0, 0, 1, 1], [], []>} : vector<16x64xbf16>, vector<64x256xbf16>, vector<16x256xf32> -> vector<16x256xf32>
    %c0_4 = arith.constant 0 : index
    %c0_5 = arith.constant 0 : index
    %6 = vector.load %arg6[%c0_4, %c0_5] : memref<1x256xf32, #tpu.memory_space<vmem>>, vector<1x256xf32>
    %7 = vector.broadcast %6 : vector<1x256xf32> to vector<16x256xf32>
    %8 = arith.addf %5, %7 : vector<16x256xf32>
    %cst_6 = arith.constant 8.510000e-01 : f32
    %9 = vector.broadcast %cst_6 : f32 to vector<16x256xf32>
    %10 = arith.mulf %9, %8 : vector<16x256xf32>
    %11 = math.tanh %10 : vector<16x256xf32>
    %cst_7 = arith.constant 1.000000e+00 : f32
    %12 = vector.broadcast %cst_7 : f32 to vector<16x256xf32>
    %13 = arith.addf %11, %12 : vector<16x256xf32>
    %cst_8 = arith.constant 5.000000e-01 : f32
    %14 = vector.broadcast %cst_8 : f32 to vector<16x256xf32>
    %15 = arith.mulf %14, %13 : vector<16x256xf32>
    %16 = arith.mulf %8, %15 : vector<16x256xf32>
    %17 = arith.truncf %16 : vector<16x256xf32> to vector<16x256xbf16>
    %c0_9 = arith.constant 0 : index
    %c0_10 = arith.constant 0 : index
    %18 = vector.load %arg7[%c0_9, %c0_10] : memref<16x256xbf16, #tpu.memory_space<vmem>>, vector<16x256xbf16>
    tpu.vector_store %arg7[%c0_9, %c0_10], %17 {strides = array<i32>} : memref<16x256xbf16, #tpu.memory_space<vmem>>, vector<16x256xbf16>,
    return
  }
  func.func @transform_0(%arg0: i32, %arg1: i32) -> (i32, i32) {
    %c0_i32 = arith.constant 0 : i32
    %c0_i32_0 = arith.constant 0 : i32
    return %arg0, %c0_i32 : i32, i32
  }
  func.func @transform_1(%arg0: i32, %arg1: i32) -> (i32, i32) {
    %c0_i32 = arith.constant 0 : i32
    %c0_i32_0 = arith.constant 0 : i32
    %c0_i32_1 = arith.constant 0 : i32
    return %c0_i32, %c0_i32_0 : i32, i32
  }
  func.func @transform_2(%arg0: i32, %arg1: i32) -> (i32, i32) {
    %c0_i32 = arith.constant 0 : i32
    %c0_i32_0 = arith.constant 0 : i32
    %c0_i32_1 = arith.constant 0 : i32
    return %c0_i32, %c0_i32_0 : i32, i32
  }
  func.func @transform_3(%arg0: i32, %arg1: i32) -> (i32, i32) {
    %c0_i32 = arith.constant 0 : i32
    %c0_i32_0 = arith.constant 0 : i32
    return %c0_i32, %arg1 : i32, i32
  }
  func.func @transform_4(%arg0: i32, %arg1: i32) -> (i32, i32) {
    %c0_i32 = arith.constant 0 : i32
    %c0_i32_0 = arith.constant 0 : i32
    return %c0_i32, %arg1 : i32, i32
  }
  func.func @transform_5(%arg0: i32, %arg1: i32) -> (i32, i32) {
    %c0_i32 = arith.constant 0 : i32
    return %arg0, %arg1 : i32, i32
  }
}

module attributes {stable_mosaic.version = 11 : i64} {
  func.func @_matmul_kernel(%arg0: i32, %arg1: i32, %arg2: i32, %arg3: memref<16x256xbf16, #tpu.memory_space<vmem>>, %arg4: memref<256x128xbf16, #tpu.memory_space<vmem>>, %arg5: memref<1x128xf32, #tpu.memory_space<vmem>>, %arg6: memref<16x128xbf16, #tpu.memory_space<vmem>>, %arg7: memref<16x128xf32, #tpu.memory_space<vmem>>) attributes {dimension_semantics = [#tpu.dimension_semantics<parallel>, #tpu.dimension_semantics<parallel>, #tpu.dimension_semantics<arbitrary>], iteration_bounds = array<i64: 1, 1, 1>, scalar_prefetch = 0 : i64, scratch_operands = 1 : i64, tpu.core_type = #tpu.core_type<tc>, window_params = [{transform_indices = @transform_0, window_bounds = array<i64: 16, 256>}, {transform_indices = @transform_1, window_bounds = array<i64: 256, 128>}, {transform_indices = @transform_2, window_bounds = array<i64: 1, 128>}, {transform_indices = @transform_3, window_bounds = array<i64: 16, 128>}]} {
    %c0_i32 = arith.constant 0 : i32
    %0 = arith.cmpi eq, %arg2, %c0_i32 : i32
    %1 = arith.extui %0 : i1 to i32
    %c0_i32_0 = arith.constant 0 : i32
    %2 = arith.cmpi ne, %1, %c0_i32_0 : i32
    scf.if %2 {
      %cst_10 = arith.constant 0.000000e+00 : f32
      %12 = vector.broadcast %cst_10 : f32 to vector<16x128xf32>
      %c0_11 = arith.constant 0 : index
      %c0_12 = arith.constant 0 : index
      %13 = vector.load %arg7[%c0_11, %c0_12] : memref<16x128xf32, #tpu.memory_space<vmem>>, vector<16x128xf32>
      tpu.vector_store %arg7[%c0_11, %c0_12], %12 {strides = array<i32>} : memref<16x128xf32, #tpu.memory_space<vmem>>, vector<16x128xf32>,
    } else {
    }
    %c0 = arith.constant 0 : index
    %c0_1 = arith.constant 0 : index
    %3 = vector.load %arg7[%c0, %c0_1] : memref<16x128xf32, #tpu.memory_space<vmem>>, vector<16x128xf32>
    %c0_2 = arith.constant 0 : index
    %c0_3 = arith.constant 0 : index
    %4 = vector.load %arg3[%c0_2, %c0_3] : memref<16x256xbf16, #tpu.memory_space<vmem>>, vector<16x256xbf16>
    %c0_4 = arith.constant 0 : index
    %c0_5 = arith.constant 0 : index
    %5 = vector.load %arg4[%c0_4, %c0_5] : memref<256x128xbf16, #tpu.memory_space<vmem>>, vector<256x128xbf16>
    %cst = arith.constant dense<0.000000e+00> : vector<16x128xf32>
    %6 = tpu.matmul %4, %5, %cst {dimension_numbers = #tpu.dot_dimension_numbers<[1], [0], [0], [1], [0, 0, 1, 1], [], []>} : vector<16x256xbf16>, vector<256x128xbf16>, vector<16x128xf32> -> vector<16x128xf32>
    %7 = arith.addf %3, %6 : vector<16x128xf32>
    %c0_6 = arith.constant 0 : index
    %c0_7 = arith.constant 0 : index
    %8 = vector.load %arg7[%c0_6, %c0_7] : memref<16x128xf32, #tpu.memory_space<vmem>>, vector<16x128xf32>
    tpu.vector_store %arg7[%c0_6, %c0_7], %7 {strides = array<i32>} : memref<16x128xf32, #tpu.memory_space<vmem>>, vector<16x128xf32>,
    %c0_i32_8 = arith.constant 0 : i32
    %9 = arith.cmpi eq, %arg2, %c0_i32_8 : i32
    %10 = arith.extui %9 : i1 to i32
    %c0_i32_9 = arith.constant 0 : i32
    %11 = arith.cmpi ne, %10, %c0_i32_9 : i32
    scf.if %11 {
      %c0_10 = arith.constant 0 : index
      %c0_11 = arith.constant 0 : index
      %12 = vector.load %arg7[%c0_10, %c0_11] : memref<16x128xf32, #tpu.memory_space<vmem>>, vector<16x128xf32>
      %c0_12 = arith.constant 0 : index
      %c0_13 = arith.constant 0 : index
      %13 = vector.load %arg5[%c0_12, %c0_13] : memref<1x128xf32, #tpu.memory_space<vmem>>, vector<1x128xf32>
      %14 = vector.broadcast %13 : vector<1x128xf32> to vector<16x128xf32>
      %15 = arith.addf %12, %14 : vector<16x128xf32>
      %16 = arith.truncf %15 : vector<16x128xf32> to vector<16x128xbf16>
      %c0_14 = arith.constant 0 : index
      %c0_15 = arith.constant 0 : index
      %17 = vector.load %arg6[%c0_14, %c0_15] : memref<16x128xbf16, #tpu.memory_space<vmem>>, vector<16x128xbf16>
      tpu.vector_store %arg6[%c0_14, %c0_15], %16 {strides = array<i32>} : memref<16x128xbf16, #tpu.memory_space<vmem>>, vector<16x128xbf16>,
    } else {
    }
    return
  }
  func.func @transform_0(%arg0: i32, %arg1: i32, %arg2: i32) -> (i32, i32) {
    %c0_i32 = arith.constant 0 : i32
    return %arg0, %arg2 : i32, i32
  }
  func.func @transform_1(%arg0: i32, %arg1: i32, %arg2: i32) -> (i32, i32) {
    %c0_i32 = arith.constant 0 : i32
    return %arg2, %arg1 : i32, i32
  }
  func.func @transform_2(%arg0: i32, %arg1: i32, %arg2: i32) -> (i32, i32) {
    %c0_i32 = arith.constant 0 : i32
    %c0_i32_0 = arith.constant 0 : i32
    return %c0_i32, %arg1 : i32, i32
  }
  func.func @transform_3(%arg0: i32, %arg1: i32, %arg2: i32) -> (i32, i32) {
    %c0_i32 = arith.constant 0 : i32
    return %arg0, %arg1 : i32, i32
  }
}

module attributes {stable_mosaic.version = 11 : i64} {
  func.func @_ln_matmul_kernel(%arg0: i32, %arg1: i32, %arg2: memref<8x64xbf16, #tpu.memory_space<vmem>>, %arg3: memref<1x64xf32, #tpu.memory_space<vmem>>, %arg4: memref<1x64xf32, #tpu.memory_space<vmem>>, %arg5: memref<64x128xbf16, #tpu.memory_space<vmem>>, %arg6: memref<1x128xf32, #tpu.memory_space<vmem>>, %arg7: memref<8x128xf32, #tpu.memory_space<vmem>>, %arg8: memref<8x64xbf16, #tpu.memory_space<vmem>>) attributes {dimension_semantics = [#tpu.dimension_semantics<parallel>, #tpu.dimension_semantics<arbitrary>], iteration_bounds = array<i64: 1, 1>, scalar_prefetch = 0 : i64, scratch_operands = 1 : i64, tpu.core_type = #tpu.core_type<tc>, window_params = [{transform_indices = @transform_0, window_bounds = array<i64: 8, 64>}, {pipeline_mode = #tpu.pipeline_mode<synchronous>, transform_indices = @transform_1, window_bounds = array<i64: 1, 64>}, {pipeline_mode = #tpu.pipeline_mode<synchronous>, transform_indices = @transform_2, window_bounds = array<i64: 1, 64>}, {transform_indices = @transform_3, window_bounds = array<i64: 64, 128>}, {transform_indices = @transform_4, window_bounds = array<i64: 1, 128>}, {transform_indices = @transform_5, window_bounds = array<i64: 8, 128>}]} {
    %c0_i32 = arith.constant 0 : i32
    %0 = arith.cmpi eq, %arg1, %c0_i32 : i32
    %1 = arith.extui %0 : i1 to i32
    %c0_i32_0 = arith.constant 0 : i32
    %2 = arith.cmpi ne, %1, %c0_i32_0 : i32
    scf.if %2 {
      %c0_8 = arith.constant 0 : index
      %c0_9 = arith.constant 0 : index
      %10 = vector.load %arg2[%c0_8, %c0_9] : memref<8x64xbf16, #tpu.memory_space<vmem>>, vector<8x64xbf16>
      %11 = arith.extf %10 : vector<8x64xbf16> to vector<8x64xf32>
      %cst_10 = arith.constant dense<0.000000e+00> : vector<8xf32>
      %12 = vector.multi_reduction <add>, %11, %cst_10 [1] : vector<8x64xf32> to vector<8xf32>
      %13 = vector.shape_cast %12 : vector<8xf32> to vector<8x1xf32>
      %cst_11 = arith.constant 6.400000e+01 : f32
      %14 = vector.broadcast %cst_11 : f32 to vector<8x1xf32>
      %15 = arith.divf %13, %14 : vector<8x1xf32>
      %16 = vector.broadcast %15 : vector<8x1xf32> to vector<8x64xf32>
      %17 = arith.subf %11, %16 : vector<8x64xf32>
      %18 = arith.mulf %17, %17 : vector<8x64xf32>
      %cst_12 = arith.constant dense<0.000000e+00> : vector<8xf32>
      %19 = vector.multi_reduction <add>, %18, %cst_12 [1] : vector<8x64xf32> to vector<8xf32>
      %20 = vector.shape_cast %19 : vector<8xf32> to vector<8x1xf32>
      %cst_13 = arith.constant 6.400000e+01 : f32
      %21 = vector.broadcast %cst_13 : f32 to vector<8x1xf32>
      %22 = arith.divf %20, %21 : vector<8x1xf32>
      %23 = vector.broadcast %15 : vector<8x1xf32> to vector<8x64xf32>
      %24 = arith.subf %11, %23 : vector<8x64xf32>
      %cst_14 = arith.constant 9.99999974E-6 : f32
      %25 = vector.broadcast %cst_14 : f32 to vector<8x1xf32>
      %26 = arith.addf %22, %25 : vector<8x1xf32>
      %27 = math.rsqrt %26 : vector<8x1xf32>
      %28 = vector.broadcast %27 : vector<8x1xf32> to vector<8x64xf32>
      %29 = arith.mulf %24, %28 : vector<8x64xf32>
      %c0_15 = arith.constant 0 : index
      %c0_16 = arith.constant 0 : index
      %30 = vector.load %arg3[%c0_15, %c0_16] : memref<1x64xf32, #tpu.memory_space<vmem>>, vector<1x64xf32>
      %31 = vector.broadcast %30 : vector<1x64xf32> to vector<8x64xf32>
      %32 = arith.mulf %29, %31 : vector<8x64xf32>
      %c0_17 = arith.constant 0 : index
      %c0_18 = arith.constant 0 : index
      %33 = vector.load %arg4[%c0_17, %c0_18] : memref<1x64xf32, #tpu.memory_space<vmem>>, vector<1x64xf32>
      %34 = vector.broadcast %33 : vector<1x64xf32> to vector<8x64xf32>
      %35 = arith.addf %32, %34 : vector<8x64xf32>
      %36 = arith.truncf %35 : vector<8x64xf32> to vector<8x64xbf16>
      %c0_19 = arith.constant 0 : index
      %c0_20 = arith.constant 0 : index
      %37 = vector.load %arg8[%c0_19, %c0_20] : memref<8x64xbf16, #tpu.memory_space<vmem>>, vector<8x64xbf16>
      tpu.vector_store %arg8[%c0_19, %c0_20], %36 {strides = array<i32>} : memref<8x64xbf16, #tpu.memory_space<vmem>>, vector<8x64xbf16>,
    } else {
    }
    %c0 = arith.constant 0 : index
    %c0_1 = arith.constant 0 : index
    %3 = vector.load %arg8[%c0, %c0_1] : memref<8x64xbf16, #tpu.memory_space<vmem>>, vector<8x64xbf16>
    %c0_2 = arith.constant 0 : index
    %c0_3 = arith.constant 0 : index
    %4 = vector.load %arg5[%c0_2, %c0_3] : memref<64x128xbf16, #tpu.memory_space<vmem>>, vector<64x128xbf16>
    %cst = arith.constant dense<0.000000e+00> : vector<8x128xf32>
    %5 = tpu.matmul %3, %4, %cst {dimension_numbers = #tpu.dot_dimension_numbers<[1], [0], [0], [1], [0, 0, 1, 1], [], []>} : vector<8x64xbf16>, vector<64x128xbf16>, vector<8x128xf32> -> vector<8x128xf32>
    %c0_4 = arith.constant 0 : index
    %c0_5 = arith.constant 0 : index
    %6 = vector.load %arg6[%c0_4, %c0_5] : memref<1x128xf32, #tpu.memory_space<vmem>>, vector<1x128xf32>
    %7 = vector.broadcast %6 : vector<1x128xf32> to vector<8x128xf32>
    %8 = arith.addf %5, %7 : vector<8x128xf32>
    %c0_6 = arith.constant 0 : index
    %c0_7 = arith.constant 0 : index
    %9 = vector.load %arg7[%c0_6, %c0_7] : memref<8x128xf32, #tpu.memory_space<vmem>>, vector<8x128xf32>
    tpu.vector_store %arg7[%c0_6, %c0_7], %8 {strides = array<i32>} : memref<8x128xf32, #tpu.memory_space<vmem>>, vector<8x128xf32>,
    return
  }
  func.func @transform_0(%arg0: i32, %arg1: i32) -> (i32, i32) {
    %c0_i32 = arith.constant 0 : i32
    %c0_i32_0 = arith.constant 0 : i32
    return %arg0, %c0_i32 : i32, i32
  }
  func.func @transform_1(%arg0: i32, %arg1: i32) -> (i32, i32) {
    %c0_i32 = arith.constant 0 : i32
    %c0_i32_0 = arith.constant 0 : i32
    %c0_i32_1 = arith.constant 0 : i32
    return %c0_i32, %c0_i32_0 : i32, i32
  }
  func.func @transform_2(%arg0: i32, %arg1: i32) -> (i32, i32) {
    %c0_i32 = arith.constant 0 : i32
    %c0_i32_0 = arith.constant 0 : i32
    %c0_i32_1 = arith.constant 0 : i32
    return %c0_i32, %c0_i32_0 : i32, i32
  }
  func.func @transform_3(%arg0: i32, %arg1: i32) -> (i32, i32) {
    %c0_i32 = arith.constant 0 : i32
    %c0_i32_0 = arith.constant 0 : i32
    return %c0_i32, %arg1 : i32, i32
  }
  func.func @transform_4(%arg0: i32, %arg1: i32) -> (i32, i32) {
    %c0_i32 = arith.constant 0 : i32
    %c0_i32_0 = arith.constant 0 : i32
    return %c0_i32, %arg1 : i32, i32
  }
  func.func @transform_5(%arg0: i32, %arg1: i32) -> (i32, i32) {
    %c0_i32 = arith.constant 0 : i32
    return %arg0, %arg1 : i32, i32
  }
}

module attributes {stable_mosaic.version = 11 : i64} {
  func.func @_ln_matmul_kernel(%arg0: i32, %arg1: i32, %arg2: memref<16x32xbf16, #tpu.memory_space<vmem>>, %arg3: memref<1x32xf32, #tpu.memory_space<vmem>>, %arg4: memref<1x32xf32, #tpu.memory_space<vmem>>, %arg5: memref<32x128xbf16, #tpu.memory_space<vmem>>, %arg6: memref<1x128xf32, #tpu.memory_space<vmem>>, %arg7: memref<16x128xbf16, #tpu.memory_space<vmem>>, %arg8: memref<16x32xbf16, #tpu.memory_space<vmem>>) attributes {dimension_semantics = [#tpu.dimension_semantics<parallel>, #tpu.dimension_semantics<arbitrary>], iteration_bounds = array<i64: 1, 1>, scalar_prefetch = 0 : i64, scratch_operands = 1 : i64, tpu.core_type = #tpu.core_type<tc>, window_params = [{transform_indices = @transform_0, window_bounds = array<i64: 16, 32>}, {pipeline_mode = #tpu.pipeline_mode<synchronous>, transform_indices = @transform_1, window_bounds = array<i64: 1, 32>}, {pipeline_mode = #tpu.pipeline_mode<synchronous>, transform_indices = @transform_2, window_bounds = array<i64: 1, 32>}, {transform_indices = @transform_3, window_bounds = array<i64: 32, 128>}, {transform_indices = @transform_4, window_bounds = array<i64: 1, 128>}, {transform_indices = @transform_5, window_bounds = array<i64: 16, 128>}]} {
    %c0_i32 = arith.constant 0 : i32
    %0 = arith.cmpi eq, %arg1, %c0_i32 : i32
    %1 = arith.extui %0 : i1 to i32
    %c0_i32_0 = arith.constant 0 : i32
    %2 = arith.cmpi ne, %1, %c0_i32_0 : i32
    scf.if %2 {
      %c0_8 = arith.constant 0 : index
      %c0_9 = arith.constant 0 : index
      %11 = vector.load %arg2[%c0_8, %c0_9] : memref<16x32xbf16, #tpu.memory_space<vmem>>, vector<16x32xbf16>
      %12 = arith.extf %11 : vector<16x32xbf16> to vector<16x32xf32>
      %cst_10 = arith.constant dense<0.000000e+00> : vector<16xf32>
      %13 = vector.multi_reduction <add>, %12, %cst_10 [1] : vector<16x32xf32> to vector<16xf32>
      %14 = vector.shape_cast %13 : vector<16xf32> to vector<16x1xf32>
      %cst_11 = arith.constant 3.200000e+01 : f32
      %15 = vector.broadcast %cst_11 : f32 to vector<16x1xf32>
      %16 = arith.divf %14, %15 : vector<16x1xf32>
      %17 = vector.broadcast %16 : vector<16x1xf32> to vector<16x32xf32>
      %18 = arith.subf %12, %17 : vector<16x32xf32>
      %19 = arith.mulf %18, %18 : vector<16x32xf32>
      %cst_12 = arith.constant dense<0.000000e+00> : vector<16xf32>
      %20 = vector.multi_reduction <add>, %19, %cst_12 [1] : vector<16x32xf32> to vector<16xf32>
      %21 = vector.shape_cast %20 : vector<16xf32> to vector<16x1xf32>
      %cst_13 = arith.constant 3.200000e+01 : f32
      %22 = vector.broadcast %cst_13 : f32 to vector<16x1xf32>
      %23 = arith.divf %21, %22 : vector<16x1xf32>
      %24 = vector.broadcast %16 : vector<16x1xf32> to vector<16x32xf32>
      %25 = arith.subf %12, %24 : vector<16x32xf32>
      %cst_14 = arith.constant 9.99999974E-6 : f32
      %26 = vector.broadcast %cst_14 : f32 to vector<16x1xf32>
      %27 = arith.addf %23, %26 : vector<16x1xf32>
      %28 = math.rsqrt %27 : vector<16x1xf32>
      %29 = vector.broadcast %28 : vector<16x1xf32> to vector<16x32xf32>
      %30 = arith.mulf %25, %29 : vector<16x32xf32>
      %c0_15 = arith.constant 0 : index
      %c0_16 = arith.constant 0 : index
      %31 = vector.load %arg3[%c0_15, %c0_16] : memref<1x32xf32, #tpu.memory_space<vmem>>, vector<1x32xf32>
      %32 = vector.broadcast %31 : vector<1x32xf32> to vector<16x32xf32>
      %33 = arith.mulf %30, %32 : vector<16x32xf32>
      %c0_17 = arith.constant 0 : index
      %c0_18 = arith.constant 0 : index
      %34 = vector.load %arg4[%c0_17, %c0_18] : memref<1x32xf32, #tpu.memory_space<vmem>>, vector<1x32xf32>
      %35 = vector.broadcast %34 : vector<1x32xf32> to vector<16x32xf32>
      %36 = arith.addf %33, %35 : vector<16x32xf32>
      %37 = arith.truncf %36 : vector<16x32xf32> to vector<16x32xbf16>
      %c0_19 = arith.constant 0 : index
      %c0_20 = arith.constant 0 : index
      %38 = vector.load %arg8[%c0_19, %c0_20] : memref<16x32xbf16, #tpu.memory_space<vmem>>, vector<16x32xbf16>
      tpu.vector_store %arg8[%c0_19, %c0_20], %37 {strides = array<i32>} : memref<16x32xbf16, #tpu.memory_space<vmem>>, vector<16x32xbf16>,
    } else {
    }
    %c0 = arith.constant 0 : index
    %c0_1 = arith.constant 0 : index
    %3 = vector.load %arg8[%c0, %c0_1] : memref<16x32xbf16, #tpu.memory_space<vmem>>, vector<16x32xbf16>
    %c0_2 = arith.constant 0 : index
    %c0_3 = arith.constant 0 : index
    %4 = vector.load %arg5[%c0_2, %c0_3] : memref<32x128xbf16, #tpu.memory_space<vmem>>, vector<32x128xbf16>
    %cst = arith.constant dense<0.000000e+00> : vector<16x128xf32>
    %5 = tpu.matmul %3, %4, %cst {dimension_numbers = #tpu.dot_dimension_numbers<[1], [0], [0], [1], [0, 0, 1, 1], [], []>} : vector<16x32xbf16>, vector<32x128xbf16>, vector<16x128xf32> -> vector<16x128xf32>
    %c0_4 = arith.constant 0 : index
    %c0_5 = arith.constant 0 : index
    %6 = vector.load %arg6[%c0_4, %c0_5] : memref<1x128xf32, #tpu.memory_space<vmem>>, vector<1x128xf32>
    %7 = vector.broadcast %6 : vector<1x128xf32> to vector<16x128xf32>
    %8 = arith.addf %5, %7 : vector<16x128xf32>
    %9 = arith.truncf %8 : vector<16x128xf32> to vector<16x128xbf16>
    %c0_6 = arith.constant 0 : index
    %c0_7 = arith.constant 0 : index
    %10 = vector.load %arg7[%c0_6, %c0_7] : memref<16x128xbf16, #tpu.memory_space<vmem>>, vector<16x128xbf16>
    tpu.vector_store %arg7[%c0_6, %c0_7], %9 {strides = array<i32>} : memref<16x128xbf16, #tpu.memory_space<vmem>>, vector<16x128xbf16>,
    return
  }
  func.func @transform_0(%arg0: i32, %arg1: i32) -> (i32, i32) {
    %c0_i32 = arith.constant 0 : i32
    %c0_i32_0 = arith.constant 0 : i32
    return %arg0, %c0_i32 : i32, i32
  }
  func.func @transform_1(%arg0: i32, %arg1: i32) -> (i32, i32) {
    %c0_i32 = arith.constant 0 : i32
    %c0_i32_0 = arith.constant 0 : i32
    %c0_i32_1 = arith.constant 0 : i32
    return %c0_i32, %c0_i32_0 : i32, i32
  }
  func.func @transform_2(%arg0: i32, %arg1: i32) -> (i32, i32) {
    %c0_i32 = arith.constant 0 : i32
    %c0_i32_0 = arith.constant 0 : i32
    %c0_i32_1 = arith.constant 0 : i32
    return %c0_i32, %c0_i32_0 : i32, i32
  }
  func.func @transform_3(%arg0: i32, %arg1: i32) -> (i32, i32) {
    %c0_i32 = arith.constant 0 : i32
    %c0_i32_0 = arith.constant 0 : i32
    return %c0_i32, %arg1 : i32, i32
  }
  func.func @transform_4(%arg0: i32, %arg1: i32) -> (i32, i32) {
    %c0_i32 = arith.constant 0 : i32
    %c0_i32_0 = arith.constant 0 : i32
    return %c0_i32, %arg1 : i32, i32
  }
  func.func @transform_5(%arg0: i32, %arg1: i32) -> (i32, i32) {
    %c0_i32 = arith.constant 0 : i32
    return %arg0, %arg1 : i32, i32
  }
}

module attributes {stable_mosaic.version = 11 : i64} {
  func.func @_sdpa_kernel(%arg0: i32, %arg1: i32, %arg2: memref<1x8x32xbf16, #tpu.memory_space<vmem>>, %arg3: memref<1x8x32xbf16, #tpu.memory_space<vmem>>, %arg4: memref<1x8x32xbf16, #tpu.memory_space<vmem>>, %arg5: memref<8x8xf32, #tpu.memory_space<vmem>>, %arg6: memref<1x8x32xbf16, #tpu.memory_space<vmem>>) attributes {dimension_semantics = [#tpu.dimension_semantics<parallel>, #tpu.dimension_semantics<parallel>], iteration_bounds = array<i64: 2, 1>, scalar_prefetch = 0 : i64, scratch_operands = 0 : i64, tpu.core_type = #tpu.core_type<tc>, window_params = [{transform_indices = @transform_0, window_bounds = array<i64: 1, 8, 32>}, {transform_indices = @transform_1, window_bounds = array<i64: 1, 8, 32>}, {transform_indices = @transform_2, window_bounds = array<i64: 1, 8, 32>}, {pipeline_mode = #tpu.pipeline_mode<synchronous>, transform_indices = @transform_3, window_bounds = array<i64: 8, 8>}, {transform_indices = @transform_4, window_bounds = array<i64: 1, 8, 32>}]} {
    %c0 = arith.constant 0 : index
    %c0_0 = arith.constant 0 : index
    %c0_1 = arith.constant 0 : index
    %0 = vector.load %arg2[%c0, %c0_0, %c0_1] : memref<1x8x32xbf16, #tpu.memory_space<vmem>>, vector<1x8x32xbf16>
    %1 = vector.shape_cast %0 : vector<1x8x32xbf16> to vector<8x32xbf16>
    %2 = arith.extf %1 : vector<8x32xbf16> to vector<8x32xf32>
    %cst = arith.constant 0.353553385 : f32
    %3 = vector.broadcast %cst : f32 to vector<8x32xf32>
    %4 = arith.mulf %2, %3 : vector<8x32xf32>
    %5 = arith.truncf %4 : vector<8x32xf32> to vector<8x32xbf16>
    %c0_2 = arith.constant 0 : index
    %c0_3 = arith.constant 0 : index
    %c0_4 = arith.constant 0 : index
    %6 = vector.load %arg3[%c0_2, %c0_3, %c0_4] : memref<1x8x32xbf16, #tpu.memory_space<vmem>>, vector<1x8x32xbf16>
    %7 = vector.shape_cast %6 : vector<1x8x32xbf16> to vector<8x32xbf16>
    %c0_5 = arith.constant 0 : index
    %c0_6 = arith.constant 0 : index
    %c0_7 = arith.constant 0 : index
    %8 = vector.load %arg4[%c0_5, %c0_6, %c0_7] : memref<1x8x32xbf16, #tpu.memory_space<vmem>>, vector<1x8x32xbf16>
    %9 = vector.shape_cast %8 : vector<1x8x32xbf16> to vector<8x32xbf16>
    %10 = vector.extract_strided_slice %5 {offsets = [0, 0], sizes = [8, 8], strides = [1, 1]} : vector<8x32xbf16> to vector<8x8xbf16>
    %11 = vector.extract_strided_slice %7 {offsets = [0, 0], sizes = [8, 8], strides = [1, 1]} : vector<8x32xbf16> to vector<8x8xbf16>
    %12 = vector.extract_strided_slice %9 {offsets = [0, 0], sizes = [8, 8], strides = [1, 1]} : vector<8x32xbf16> to vector<8x8xbf16>
    %cst_8 = arith.constant dense<0.000000e+00> : vector<8x8xf32>
    %13 = tpu.matmul %10, %11, %cst_8 {dimension_numbers = #tpu.dot_dimension_numbers<[1], [1], [0], [0], [0, 0, 1, 0], [], []>} : vector<8x8xbf16>, vector<8x8xbf16>, vector<8x8xf32> -> vector<8x8xf32>
    %c0_9 = arith.constant 0 : index
    %c0_10 = arith.constant 0 : index
    %14 = vector.load %arg5[%c0_9, %c0_10] : memref<8x8xf32, #tpu.memory_space<vmem>>, vector<8x8xf32>
    %15 = arith.addf %13, %14 : vector<8x8xf32>
    %cst_11 = arith.constant dense<0xFF800000> : vector<8xf32>
    %16 = vector.multi_reduction <maximumf>, %15, %cst_11 [1] : vector<8x8xf32> to vector<8xf32>
    %17 = vector.shape_cast %16 : vector<8xf32> to vector<8x1xf32>
    %18 = vector.broadcast %17 : vector<8x1xf32> to vector<8x8xf32>
    %19 = arith.subf %15, %18 : vector<8x8xf32>
    %20 = math.exp %19 : vector<8x8xf32>
    %cst_12 = arith.constant dense<0.000000e+00> : vector<8xf32>
    %21 = vector.multi_reduction <add>, %20, %cst_12 [1] : vector<8x8xf32> to vector<8xf32>
    %22 = vector.shape_cast %21 : vector<8xf32> to vector<8x1xf32>
    %23 = arith.truncf %20 : vector<8x8xf32> to vector<8x8xbf16>
    %cst_13 = arith.constant dense<0.000000e+00> : vector<8x8xf32>
    %24 = tpu.matmul %23, %12, %cst_13 {dimension_numbers = #tpu.dot_dimension_numbers<[1], [0], [0], [1], [0, 0, 1, 1], [], []>} : vector<8x8xbf16>, vector<8x8xbf16>, vector<8x8xf32> -> vector<8x8xf32>
    %25 = vector.broadcast %22 : vector<8x1xf32> to vector<8x8xf32>
    %26 = arith.divf %24, %25 : vector<8x8xf32>
    %27 = arith.truncf %26 : vector<8x8xf32> to vector<8x8xbf16>
    %c0_14 = arith.constant 0 : index
    %c0_15 = arith.constant 0 : index
    %c0_16 = arith.constant 0 : index
    %28 = vector.load %arg6[%c0_14, %c0_15, %c0_16] : memref<1x8x32xbf16, #tpu.memory_space<vmem>>, vector<1x8x8xbf16>
    %29 = vector.shape_cast %28 : vector<1x8x8xbf16> to vector<8x8xbf16>
    %30 = vector.shape_cast %27 : vector<8x8xbf16> to vector<1x8x8xbf16>
    tpu.vector_store %arg6[%c0_14, %c0_15, %c0_16], %30 {strides = array<i32>} : memref<1x8x32xbf16, #tpu.memory_space<vmem>>, vector<1x8x8xbf16>,
    %31 = vector.extract_strided_slice %5 {offsets = [0, 8], sizes = [8, 8], strides = [1, 1]} : vector<8x32xbf16> to vector<8x8xbf16>
    %32 = vector.extract_strided_slice %7 {offsets = [0, 8], sizes = [8, 8], strides = [1, 1]} : vector<8x32xbf16> to vector<8x8xbf16>
    %33 = vector.extract_strided_slice %9 {offsets = [0, 8], sizes = [8, 8], strides = [1, 1]} : vector<8x32xbf16> to vector<8x8xbf16>
    %cst_17 = arith.constant dense<0.000000e+00> : vector<8x8xf32>
    %34 = tpu.matmul %31, %32, %cst_17 {dimension_numbers = #tpu.dot_dimension_numbers<[1], [1], [0], [0], [0, 0, 1, 0], [], []>} : vector<8x8xbf16>, vector<8x8xbf16>, vector<8x8xf32> -> vector<8x8xf32>
    %c0_18 = arith.constant 0 : index
    %c0_19 = arith.constant 0 : index
    %35 = vector.load %arg5[%c0_18, %c0_19] : memref<8x8xf32, #tpu.memory_space<vmem>>, vector<8x8xf32>
    %36 = arith.addf %34, %35 : vector<8x8xf32>
    %cst_20 = arith.constant dense<0xFF800000> : vector<8xf32>
    %37 = vector.multi_reduction <maximumf>, %36, %cst_20 [1] : vector<8x8xf32> to vector<8xf32>
    %38 = vector.shape_cast %37 : vector<8xf32> to vector<8x1xf32>
    %39 = vector.broadcast %38 : vector<8x1xf32> to vector<8x8xf32>
    %40 = arith.subf %36, %39 : vector<8x8xf32>
    %41 = math.exp %40 : vector<8x8xf32>
    %cst_21 = arith.constant dense<0.000000e+00> : vector<8xf32>
    %42 = vector.multi_reduction <add>, %41, %cst_21 [1] : vector<8x8xf32> to vector<8xf32>
    %43 = vector.shape_cast %42 : vector<8xf32> to vector<8x1xf32>
    %44 = arith.truncf %41 : vector<8x8xf32> to vector<8x8xbf16>
    %cst_22 = arith.constant dense<0.000000e+00> : vector<8x8xf32>
    %45 = tpu.matmul %44, %33, %cst_22 {dimension_numbers = #tpu.dot_dimension_numbers<[1], [0], [0], [1], [0, 0, 1, 1], [], []>} : vector<8x8xbf16>, vector<8x8xbf16>, vector<8x8xf32> -> vector<8x8xf32>
    %46 = vector.broadcast %43 : vector<8x1xf32> to vector<8x8xf32>
    %47 = arith.divf %45, %46 : vector<8x8xf32>
    %48 = arith.truncf %47 : vector<8x8xf32> to vector<8x8xbf16>
    %c0_23 = arith.constant 0 : index
    %c0_24 = arith.constant 0 : index
    %c8 = arith.constant 8 : index
    %49 = vector.load %arg6[%c0_23, %c0_24, %c8] : memref<1x8x32xbf16, #tpu.memory_space<vmem>>, vector<1x8x8xbf16>
    %50 = vector.shape_cast %49 : vector<1x8x8xbf16> to vector<8x8xbf16>
    %51 = vector.shape_cast %48 : vector<8x8xbf16> to vector<1x8x8xbf16>
    tpu.vector_store %arg6[%c0_23, %c0_24, %c8], %51 {strides = array<i32>} : memref<1x8x32xbf16, #tpu.memory_space<vmem>>, vector<1x8x8xbf16>,
    %52 = vector.extract_strided_slice %5 {offsets = [0, 16], sizes = [8, 8], strides = [1, 1]} : vector<8x32xbf16> to vector<8x8xbf16>
    %53 = vector.extract_strided_slice %7 {offsets = [0, 16], sizes = [8, 8], strides = [1, 1]} : vector<8x32xbf16> to vector<8x8xbf16>
    %54 = vector.extract_strided_slice %9 {offsets = [0, 16], sizes = [8, 8], strides = [1, 1]} : vector<8x32xbf16> to vector<8x8xbf16>
    %cst_25 = arith.constant dense<0.000000e+00> : vector<8x8xf32>
    %55 = tpu.matmul %52, %53, %cst_25 {dimension_numbers = #tpu.dot_dimension_numbers<[1], [1], [0], [0], [0, 0, 1, 0], [], []>} : vector<8x8xbf16>, vector<8x8xbf16>, vector<8x8xf32> -> vector<8x8xf32>
    %c0_26 = arith.constant 0 : index
    %c0_27 = arith.constant 0 : index
    %56 = vector.load %arg5[%c0_26, %c0_27] : memref<8x8xf32, #tpu.memory_space<vmem>>, vector<8x8xf32>
    %57 = arith.addf %55, %56 : vector<8x8xf32>
    %cst_28 = arith.constant dense<0xFF800000> : vector<8xf32>
    %58 = vector.multi_reduction <maximumf>, %57, %cst_28 [1] : vector<8x8xf32> to vector<8xf32>
    %59 = vector.shape_cast %58 : vector<8xf32> to vector<8x1xf32>
    %60 = vector.broadcast %59 : vector<8x1xf32> to vector<8x8xf32>
    %61 = arith.subf %57, %60 : vector<8x8xf32>
    %62 = math.exp %61 : vector<8x8xf32>
    %cst_29 = arith.constant dense<0.000000e+00> : vector<8xf32>
    %63 = vector.multi_reduction <add>, %62, %cst_29 [1] : vector<8x8xf32> to vector<8xf32>
    %64 = vector.shape_cast %63 : vector<8xf32> to vector<8x1xf32>
    %65 = arith.truncf %62 : vector<8x8xf32> to vector<8x8xbf16>
    %cst_30 = arith.constant dense<0.000000e+00> : vector<8x8xf32>
    %66 = tpu.matmul %65, %54, %cst_30 {dimension_numbers = #tpu.dot_dimension_numbers<[1], [0], [0], [1], [0, 0, 1, 1], [], []>} : vector<8x8xbf16>, vector<8x8xbf16>, vector<8x8xf32> -> vector<8x8xf32>
    %67 = vector.broadcast %64 : vector<8x1xf32> to vector<8x8xf32>
    %68 = arith.divf %66, %67 : vector<8x8xf32>
    %69 = arith.truncf %68 : vector<8x8xf32> to vector<8x8xbf16>
    %c0_31 = arith.constant 0 : index
    %c0_32 = arith.constant 0 : index
    %c16 = arith.constant 16 : index
    %70 = vector.load %arg6[%c0_31, %c0_32, %c16] : memref<1x8x32xbf16, #tpu.memory_space<vmem>>, vector<1x8x8xbf16>
    %71 = vector.shape_cast %70 : vector<1x8x8xbf16> to vector<8x8xbf16>
    %72 = vector.shape_cast %69 : vector<8x8xbf16> to vector<1x8x8xbf16>
    tpu.vector_store %arg6[%c0_31, %c0_32, %c16], %72 {strides = array<i32>} : memref<1x8x32xbf16, #tpu.memory_space<vmem>>, vector<1x8x8xbf16>,
    %73 = vector.extract_strided_slice %5 {offsets = [0, 24], sizes = [8, 8], strides = [1, 1]} : vector<8x32xbf16> to vector<8x8xbf16>
    %74 = vector.extract_strided_slice %7 {offsets = [0, 24], sizes = [8, 8], strides = [1, 1]} : vector<8x32xbf16> to vector<8x8xbf16>
    %75 = vector.extract_strided_slice %9 {offsets = [0, 24], sizes = [8, 8], strides = [1, 1]} : vector<8x32xbf16> to vector<8x8xbf16>
    %cst_33 = arith.constant dense<0.000000e+00> : vector<8x8xf32>
    %76 = tpu.matmul %73, %74, %cst_33 {dimension_numbers = #tpu.dot_dimension_numbers<[1], [1], [0], [0], [0, 0, 1, 0], [], []>} : vector<8x8xbf16>, vector<8x8xbf16>, vector<8x8xf32> -> vector<8x8xf32>
    %c0_34 = arith.constant 0 : index
    %c0_35 = arith.constant 0 : index
    %77 = vector.load %arg5[%c0_34, %c0_35] : memref<8x8xf32, #tpu.memory_space<vmem>>, vector<8x8xf32>
    %78 = arith.addf %76, %77 : vector<8x8xf32>
    %cst_36 = arith.constant dense<0xFF800000> : vector<8xf32>
    %79 = vector.multi_reduction <maximumf>, %78, %cst_36 [1] : vector<8x8xf32> to vector<8xf32>
    %80 = vector.shape_cast %79 : vector<8xf32> to vector<8x1xf32>
    %81 = vector.broadcast %80 : vector<8x1xf32> to vector<8x8xf32>
    %82 = arith.subf %78, %81 : vector<8x8xf32>
    %83 = math.exp %82 : vector<8x8xf32>
    %cst_37 = arith.constant dense<0.000000e+00> : vector<8xf32>
    %84 = vector.multi_reduction <add>, %83, %cst_37 [1] : vector<8x8xf32> to vector<8xf32>
    %85 = vector.shape_cast %84 : vector<8xf32> to vector<8x1xf32>
    %86 = arith.truncf %83 : vector<8x8xf32> to vector<8x8xbf16>
    %cst_38 = arith.constant dense<0.000000e+00> : vector<8x8xf32>
    %87 = tpu.matmul %86, %75, %cst_38 {dimension_numbers = #tpu.dot_dimension_numbers<[1], [0], [0], [1], [0, 0, 1, 1], [], []>} : vector<8x8xbf16>, vector<8x8xbf16>, vector<8x8xf32> -> vector<8x8xf32>
    %88 = vector.broadcast %85 : vector<8x1xf32> to vector<8x8xf32>
    %89 = arith.divf %87, %88 : vector<8x8xf32>
    %90 = arith.truncf %89 : vector<8x8xf32> to vector<8x8xbf16>
    %c0_39 = arith.constant 0 : index
    %c0_40 = arith.constant 0 : index
    %c24 = arith.constant 24 : index
    %91 = vector.load %arg6[%c0_39, %c0_40, %c24] : memref<1x8x32xbf16, #tpu.memory_space<vmem>>, vector<1x8x8xbf16>
    %92 = vector.shape_cast %91 : vector<1x8x8xbf16> to vector<8x8xbf16>
    %93 = vector.shape_cast %90 : vector<8x8xbf16> to vector<1x8x8xbf16>
    tpu.vector_store %arg6[%c0_39, %c0_40, %c24], %93 {strides = array<i32>} : memref<1x8x32xbf16, #tpu.memory_space<vmem>>, vector<1x8x8xbf16>,
    return
  }
  func.func @transform_0(%arg0: i32, %arg1: i32) -> (i32, i32, i32) {
    %c0_i32 = arith.constant 0 : i32
    %c0_i32_0 = arith.constant 0 : i32
    return %arg0, %c0_i32, %arg1 : i32, i32, i32
  }
  func.func @transform_1(%arg0: i32, %arg1: i32) -> (i32, i32, i32) {
    %c0_i32 = arith.constant 0 : i32
    %c0_i32_0 = arith.constant 0 : i32
    return %arg0, %c0_i32, %arg1 : i32, i32, i32
  }
  func.func @transform_2(%arg0: i32, %arg1: i32) -> (i32, i32, i32) {
    %c0_i32 = arith.constant 0 : i32
    %c0_i32_0 = arith.constant 0 : i32
    return %arg0, %c0_i32, %arg1 : i32, i32, i32
  }
  func.func @transform_3(%arg0: i32, %arg1: i32) -> (i32, i32) {
    %c0_i32 = arith.constant 0 : i32
    %c0_i32_0 = arith.constant 0 : i32
    %c0_i32_1 = arith.constant 0 : i32
    return %c0_i32, %c0_i32_0 : i32, i32
  }
  func.func @transform_4(%arg0: i32, %arg1: i32) -> (i32, i32, i32) {
    %c0_i32 = arith.constant 0 : i32
    %c0_i32_0 = arith.constant 0 : i32
    return %arg0, %c0_i32, %arg1 : i32, i32, i32
  }
}

module attributes {stable_mosaic.version = 11 : i64} {
  func.func @_ln_matmul_kernel(%arg0: i32, %arg1: i32, %arg2: memref<16x32xbf16, #tpu.memory_space<vmem>>, %arg3: memref<1x32xf32, #tpu.memory_space<vmem>>, %arg4: memref<1x32xf32, #tpu.memory_space<vmem>>, %arg5: memref<32x128xbf16, #tpu.memory_space<vmem>>, %arg6: memref<1x128xf32, #tpu.memory_space<vmem>>, %arg7: memref<16x128xbf16, #tpu.memory_space<vmem>>, %arg8: memref<16x32xbf16, #tpu.memory_space<vmem>>) attributes {dimension_semantics = [#tpu.dimension_semantics<parallel>, #tpu.dimension_semantics<arbitrary>], iteration_bounds = array<i64: 1, 1>, scalar_prefetch = 0 : i64, scratch_operands = 1 : i64, tpu.core_type = #tpu.core_type<tc>, window_params = [{transform_indices = @transform_0, window_bounds = array<i64: 16, 32>}, {pipeline_mode = #tpu.pipeline_mode<synchronous>, transform_indices = @transform_1, window_bounds = array<i64: 1, 32>}, {pipeline_mode = #tpu.pipeline_mode<synchronous>, transform_indices = @transform_2, window_bounds = array<i64: 1, 32>}, {transform_indices = @transform_3, window_bounds = array<i64: 32, 128>}, {transform_indices = @transform_4, window_bounds = array<i64: 1, 128>}, {transform_indices = @transform_5, window_bounds = array<i64: 16, 128>}]} {
    %c0_i32 = arith.constant 0 : i32
    %0 = arith.cmpi eq, %arg1, %c0_i32 : i32
    %1 = arith.extui %0 : i1 to i32
    %c0_i32_0 = arith.constant 0 : i32
    %2 = arith.cmpi ne, %1, %c0_i32_0 : i32
    scf.if %2 {
      %c0_11 = arith.constant 0 : index
      %c0_12 = arith.constant 0 : index
      %19 = vector.load %arg2[%c0_11, %c0_12] : memref<16x32xbf16, #tpu.memory_space<vmem>>, vector<16x32xbf16>
      %20 = arith.extf %19 : vector<16x32xbf16> to vector<16x32xf32>
      %cst_13 = arith.constant dense<0.000000e+00> : vector<16xf32>
      %21 = vector.multi_reduction <add>, %20, %cst_13 [1] : vector<16x32xf32> to vector<16xf32>
      %22 = vector.shape_cast %21 : vector<16xf32> to vector<16x1xf32>
      %cst_14 = arith.constant 3.200000e+01 : f32
      %23 = vector.broadcast %cst_14 : f32 to vector<16x1xf32>
      %24 = arith.divf %22, %23 : vector<16x1xf32>
      %25 = vector.broadcast %24 : vector<16x1xf32> to vector<16x32xf32>
      %26 = arith.subf %20, %25 : vector<16x32xf32>
      %27 = arith.mulf %26, %26 : vector<16x32xf32>
      %cst_15 = arith.constant dense<0.000000e+00> : vector<16xf32>
      %28 = vector.multi_reduction <add>, %27, %cst_15 [1] : vector<16x32xf32> to vector<16xf32>
      %29 = vector.shape_cast %28 : vector<16xf32> to vector<16x1xf32>
      %cst_16 = arith.constant 3.200000e+01 : f32
      %30 = vector.broadcast %cst_16 : f32 to vector<16x1xf32>
      %31 = arith.divf %29, %30 : vector<16x1xf32>
      %32 = vector.broadcast %24 : vector<16x1xf32> to vector<16x32xf32>
      %33 = arith.subf %20, %32 : vector<16x32xf32>
      %cst_17 = arith.constant 9.99999974E-6 : f32
      %34 = vector.broadcast %cst_17 : f32 to vector<16x1xf32>
      %35 = arith.addf %31, %34 : vector<16x1xf32>
      %36 = math.rsqrt %35 : vector<16x1xf32>
      %37 = vector.broadcast %36 : vector<16x1xf32> to vector<16x32xf32>
      %38 = arith.mulf %33, %37 : vector<16x32xf32>
      %c0_18 = arith.constant 0 : index
      %c0_19 = arith.constant 0 : index
      %39 = vector.load %arg3[%c0_18, %c0_19] : memref<1x32xf32, #tpu.memory_space<vmem>>, vector<1x32xf32>
      %40 = vector.broadcast %39 : vector<1x32xf32> to vector<16x32xf32>
      %41 = arith.mulf %38, %40 : vector<16x32xf32>
      %c0_20 = arith.constant 0 : index
      %c0_21 = arith.constant 0 : index
      %42 = vector.load %arg4[%c0_20, %c0_21] : memref<1x32xf32, #tpu.memory_space<vmem>>, vector<1x32xf32>
      %43 = vector.broadcast %42 : vector<1x32xf32> to vector<16x32xf32>
      %44 = arith.addf %41, %43 : vector<16x32xf32>
      %45 = arith.truncf %44 : vector<16x32xf32> to vector<16x32xbf16>
      %c0_22 = arith.constant 0 : index
      %c0_23 = arith.constant 0 : index
      %46 = vector.load %arg8[%c0_22, %c0_23] : memref<16x32xbf16, #tpu.memory_space<vmem>>, vector<16x32xbf16>
      tpu.vector_store %arg8[%c0_22, %c0_23], %45 {strides = array<i32>} : memref<16x32xbf16, #tpu.memory_space<vmem>>, vector<16x32xbf16>,
    } else {
    }
    %c0 = arith.constant 0 : index
    %c0_1 = arith.constant 0 : index
    %3 = vector.load %arg8[%c0, %c0_1] : memref<16x32xbf16, #tpu.memory_space<vmem>>, vector<16x32xbf16>
    %c0_2 = arith.constant 0 : index
    %c0_3 = arith.constant 0 : index
    %4 = vector.load %arg5[%c0_2, %c0_3] : memref<32x128xbf16, #tpu.memory_space<vmem>>, vector<32x128xbf16>
    %cst = arith.constant dense<0.000000e+00> : vector<16x128xf32>
    %5 = tpu.matmul %3, %4, %cst {dimension_numbers = #tpu.dot_dimension_numbers<[1], [0], [0], [1], [0, 0, 1, 1], [], []>} : vector<16x32xbf16>, vector<32x128xbf16>, vector<16x128xf32> -> vector<16x128xf32>
    %c0_4 = arith.constant 0 : index
    %c0_5 = arith.constant 0 : index
    %6 = vector.load %arg6[%c0_4, %c0_5] : memref<1x128xf32, #tpu.memory_space<vmem>>, vector<1x128xf32>
    %7 = vector.broadcast %6 : vector<1x128xf32> to vector<16x128xf32>
    %8 = arith.addf %5, %7 : vector<16x128xf32>
    %cst_6 = arith.constant 8.510000e-01 : f32
    %9 = vector.broadcast %cst_6 : f32 to vector<16x128xf32>
    %10 = arith.mulf %9, %8 : vector<16x128xf32>
    %11 = math.tanh %10 : vector<16x128xf32>
    %cst_7 = arith.constant 1.000000e+00 : f32
    %12 = vector.broadcast %cst_7 : f32 to vector<16x128xf32>
    %13 = arith.addf %11, %12 : vector<16x128xf32>
    %cst_8 = arith.constant 5.000000e-01 : f32
    %14 = vector.broadcast %cst_8 : f32 to vector<16x128xf32>
    %15 = arith.mulf %14, %13 : vector<16x128xf32>
    %16 = arith.mulf %8, %15 : vector<16x128xf32>
    %17 = arith.truncf %16 : vector<16x128xf32> to vector<16x128xbf16>
    %c0_9 = arith.constant 0 : index
    %c0_10 = arith.constant 0 : index
    %18 = vector.load %arg7[%c0_9, %c0_10] : memref<16x128xbf16, #tpu.memory_space<vmem>>, vector<16x128xbf16>
    tpu.vector_store %arg7[%c0_9, %c0_10], %17 {strides = array<i32>} : memref<16x128xbf16, #tpu.memory_space<vmem>>, vector<16x128xbf16>,
    return
  }
  func.func @transform_0(%arg0: i32, %arg1: i32) -> (i32, i32) {
    %c0_i32 = arith.constant 0 : i32
    %c0_i32_0 = arith.constant 0 : i32
    return %arg0, %c0_i32 : i32, i32
  }
  func.func @transform_1(%arg0: i32, %arg1: i32) -> (i32, i32) {
    %c0_i32 = arith.constant 0 : i32
    %c0_i32_0 = arith.constant 0 : i32
    %c0_i32_1 = arith.constant 0 : i32
    return %c0_i32, %c0_i32_0 : i32, i32
  }
  func.func @transform_2(%arg0: i32, %arg1: i32) -> (i32, i32) {
    %c0_i32 = arith.constant 0 : i32
    %c0_i32_0 = arith.constant 0 : i32
    %c0_i32_1 = arith.constant 0 : i32
    return %c0_i32, %c0_i32_0 : i32, i32
  }
  func.func @transform_3(%arg0: i32, %arg1: i32) -> (i32, i32) {
    %c0_i32 = arith.constant 0 : i32
    %c0_i32_0 = arith.constant 0 : i32
    return %c0_i32, %arg1 : i32, i32
  }
  func.func @transform_4(%arg0: i32, %arg1: i32) -> (i32, i32) {
    %c0_i32 = arith.constant 0 : i32
    %c0_i32_0 = arith.constant 0 : i32
    return %c0_i32, %arg1 : i32, i32
  }
  func.func @transform_5(%arg0: i32, %arg1: i32) -> (i32, i32) {
    %c0_i32 = arith.constant 0 : i32
    return %arg0, %arg1 : i32, i32
  }
}

module attributes {stable_mosaic.version = 11 : i64} {
  func.func @_ln_kernel(%arg0: i32, %arg1: memref<16x32xbf16, #tpu.memory_space<vmem>>, %arg2: memref<1x32xf32, #tpu.memory_space<vmem>>, %arg3: memref<1x32xf32, #tpu.memory_space<vmem>>, %arg4: memref<16x32xbf16, #tpu.memory_space<vmem>>) attributes {dimension_semantics = [#tpu.dimension_semantics<parallel>], iteration_bounds = array<i64: 1>, scalar_prefetch = 0 : i64, scratch_operands = 0 : i64, tpu.core_type = #tpu.core_type<tc>, window_params = [{transform_indices = @transform_0, window_bounds = array<i64: 16, 32>}, {pipeline_mode = #tpu.pipeline_mode<synchronous>, transform_indices = @transform_1, window_bounds = array<i64: 1, 32>}, {pipeline_mode = #tpu.pipeline_mode<synchronous>, transform_indices = @transform_2, window_bounds = array<i64: 1, 32>}, {transform_indices = @transform_3, window_bounds = array<i64: 16, 32>}]} {
    %c0 = arith.constant 0 : index
    %c0_0 = arith.constant 0 : index
    %0 = vector.load %arg1[%c0, %c0_0] : memref<16x32xbf16, #tpu.memory_space<vmem>>, vector<16x32xbf16>
    %1 = arith.extf %0 : vector<16x32xbf16> to vector<16x32xf32>
    %cst = arith.constant dense<0.000000e+00> : vector<16xf32>
    %2 = vector.multi_reduction <add>, %1, %cst [1] : vector<16x32xf32> to vector<16xf32>
    %3 = vector.shape_cast %2 : vector<16xf32> to vector<16x1xf32>
    %cst_1 = arith.constant 3.200000e+01 : f32
    %4 = vector.broadcast %cst_1 : f32 to vector<16x1xf32>
    %5 = arith.divf %3, %4 : vector<16x1xf32>
    %6 = vector.broadcast %5 : vector<16x1xf32> to vector<16x32xf32>
    %7 = arith.subf %1, %6 : vector<16x32xf32>
    %8 = arith.mulf %7, %7 : vector<16x32xf32>
    %cst_2 = arith.constant dense<0.000000e+00> : vector<16xf32>
    %9 = vector.multi_reduction <add>, %8, %cst_2 [1] : vector<16x32xf32> to vector<16xf32>
    %10 = vector.shape_cast %9 : vector<16xf32> to vector<16x1xf32>
    %cst_3 = arith.constant 3.200000e+01 : f32
    %11 = vector.broadcast %cst_3 : f32 to vector<16x1xf32>
    %12 = arith.divf %10, %11 : vector<16x1xf32>
    %13 = vector.broadcast %5 : vector<16x1xf32> to vector<16x32xf32>
    %14 = arith.subf %1, %13 : vector<16x32xf32>
    %cst_4 = arith.constant 9.99999974E-6 : f32
    %15 = vector.broadcast %cst_4 : f32 to vector<16x1xf32>
    %16 = arith.addf %12, %15 : vector<16x1xf32>
    %17 = math.rsqrt %16 : vector<16x1xf32>
    %18 = vector.broadcast %17 : vector<16x1xf32> to vector<16x32xf32>
    %19 = arith.mulf %14, %18 : vector<16x32xf32>
    %c0_5 = arith.constant 0 : index
    %c0_6 = arith.constant 0 : index
    %20 = vector.load %arg2[%c0_5, %c0_6] : memref<1x32xf32, #tpu.memory_space<vmem>>, vector<1x32xf32>
    %21 = vector.broadcast %20 : vector<1x32xf32> to vector<16x32xf32>
    %22 = arith.mulf %19, %21 : vector<16x32xf32>
    %c0_7 = arith.constant 0 : index
    %c0_8 = arith.constant 0 : index
    %23 = vector.load %arg3[%c0_7, %c0_8] : memref<1x32xf32, #tpu.memory_space<vmem>>, vector<1x32xf32>
    %24 = vector.broadcast %23 : vector<1x32xf32> to vector<16x32xf32>
    %25 = arith.addf %22, %24 : vector<16x32xf32>
    %26 = arith.truncf %25 : vector<16x32xf32> to vector<16x32xbf16>
    %c0_9 = arith.constant 0 : index
    %c0_10 = arith.constant 0 : index
    %27 = vector.load %arg4[%c0_9, %c0_10] : memref<16x32xbf16, #tpu.memory_space<vmem>>, vector<16x32xbf16>
    tpu.vector_store %arg4[%c0_9, %c0_10], %26 {strides = array<i32>} : memref<16x32xbf16, #tpu.memory_space<vmem>>, vector<16x32xbf16>,
    return
  }
  func.func @transform_0(%arg0: i32) -> (i32, i32) {
    %c0_i32 = arith.constant 0 : i32
    %c0_i32_0 = arith.constant 0 : i32
    return %arg0, %c0_i32 : i32, i32
  }
  func.func @transform_1(%arg0: i32) -> (i32, i32) {
    %c0_i32 = arith.constant 0 : i32
    %c0_i32_0 = arith.constant 0 : i32
    %c0_i32_1 = arith.constant 0 : i32
    return %c0_i32, %c0_i32_0 : i32, i32
  }
  func.func @transform_2(%arg0: i32) -> (i32, i32) {
    %c0_i32 = arith.constant 0 : i32
    %c0_i32_0 = arith.constant 0 : i32
    %c0_i32_1 = arith.constant 0 : i32
    return %c0_i32, %c0_i32_0 : i32, i32
  }
  func.func @transform_3(%arg0: i32) -> (i32, i32) {
    %c0_i32 = arith.constant 0 : i32
    %c0_i32_0 = arith.constant 0 : i32
    return %arg0, %c0_i32 : i32, i32
  }
}

module attributes {stable_mosaic.version = 11 : i64} {
  func.func @_matmul_kernel(%arg0: i32, %arg1: i32, %arg2: i32, %arg3: memref<8x128xbf16, #tpu.memory_space<vmem>>, %arg4: memref<128x128xbf16, #tpu.memory_space<vmem>>, %arg5: memref<1x128xf32, #tpu.memory_space<vmem>>, %arg6: memref<8x128xf32, #tpu.memory_space<vmem>>, %arg7: memref<8x128xf32, #tpu.memory_space<vmem>>) attributes {dimension_semantics = [#tpu.dimension_semantics<parallel>, #tpu.dimension_semantics<parallel>, #tpu.dimension_semantics<arbitrary>], iteration_bounds = array<i64: 1, 1, 1>, scalar_prefetch = 0 : i64, scratch_operands = 1 : i64, tpu.core_type = #tpu.core_type<tc>, window_params = [{transform_indices = @transform_0, window_bounds = array<i64: 8, 128>}, {transform_indices = @transform_1, window_bounds = array<i64: 128, 128>}, {transform_indices = @transform_2, window_bounds = array<i64: 1, 128>}, {transform_indices = @transform_3, window_bounds = array<i64: 8, 128>}]} {
    %c0_i32 = arith.constant 0 : i32
    %0 = arith.cmpi eq, %arg2, %c0_i32 : i32
    %1 = arith.extui %0 : i1 to i32
    %c0_i32_0 = arith.constant 0 : i32
    %2 = arith.cmpi ne, %1, %c0_i32_0 : i32
    scf.if %2 {
      %cst_10 = arith.constant 0.000000e+00 : f32
      %12 = vector.broadcast %cst_10 : f32 to vector<8x128xf32>
      %c0_11 = arith.constant 0 : index
      %c0_12 = arith.constant 0 : index
      %13 = vector.load %arg7[%c0_11, %c0_12] : memref<8x128xf32, #tpu.memory_space<vmem>>, vector<8x128xf32>
      tpu.vector_store %arg7[%c0_11, %c0_12], %12 {strides = array<i32>} : memref<8x128xf32, #tpu.memory_space<vmem>>, vector<8x128xf32>,
    } else {
    }
    %c0 = arith.constant 0 : index
    %c0_1 = arith.constant 0 : index
    %3 = vector.load %arg7[%c0, %c0_1] : memref<8x128xf32, #tpu.memory_space<vmem>>, vector<8x128xf32>
    %c0_2 = arith.constant 0 : index
    %c0_3 = arith.constant 0 : index
    %4 = vector.load %arg3[%c0_2, %c0_3] : memref<8x128xbf16, #tpu.memory_space<vmem>>, vector<8x128xbf16>
    %c0_4 = arith.constant 0 : index
    %c0_5 = arith.constant 0 : index
    %5 = vector.load %arg4[%c0_4, %c0_5] : memref<128x128xbf16, #tpu.memory_space<vmem>>, vector<128x128xbf16>
    %cst = arith.constant dense<0.000000e+00> : vector<8x128xf32>
    %6 = tpu.matmul %4, %5, %cst {dimension_numbers = #tpu.dot_dimension_numbers<[1], [0], [0], [1], [0, 0, 1, 1], [], []>} : vector<8x128xbf16>, vector<128x128xbf16>, vector<8x128xf32> -> vector<8x128xf32>
    %7 = arith.addf %3, %6 : vector<8x128xf32>
    %c0_6 = arith.constant 0 : index
    %c0_7 = arith.constant 0 : index
    %8 = vector.load %arg7[%c0_6, %c0_7] : memref<8x128xf32, #tpu.memory_space<vmem>>, vector<8x128xf32>
    tpu.vector_store %arg7[%c0_6, %c0_7], %7 {strides = array<i32>} : memref<8x128xf32, #tpu.memory_space<vmem>>, vector<8x128xf32>,
    %c0_i32_8 = arith.constant 0 : i32
    %9 = arith.cmpi eq, %arg2, %c0_i32_8 : i32
    %10 = arith.extui %9 : i1 to i32
    %c0_i32_9 = arith.constant 0 : i32
    %11 = arith.cmpi ne, %10, %c0_i32_9 : i32
    scf.if %11 {
      %c0_10 = arith.constant 0 : index
      %c0_11 = arith.constant 0 : index
      %12 = vector.load %arg7[%c0_10, %c0_11] : memref<8x128xf32, #tpu.memory_space<vmem>>, vector<8x128xf32>
      %c0_12 = arith.constant 0 : index
      %c0_13 = arith.constant 0 : index
      %13 = vector.load %arg5[%c0_12, %c0_13] : memref<1x128xf32, #tpu.memory_space<vmem>>, vector<1x128xf32>
      %14 = vector.broadcast %13 : vector<1x128xf32> to vector<8x128xf32>
      %15 = arith.addf %12, %14 : vector<8x128xf32>
      %c0_14 = arith.constant 0 : index
      %c0_15 = arith.constant 0 : index
      %16 = vector.load %arg6[%c0_14, %c0_15] : memref<8x128xf32, #tpu.memory_space<vmem>>, vector<8x128xf32>
      tpu.vector_store %arg6[%c0_14, %c0_15], %15 {strides = array<i32>} : memref<8x128xf32, #tpu.memory_space<vmem>>, vector<8x128xf32>,
    } else {
    }
    return
  }
  func.func @transform_0(%arg0: i32, %arg1: i32, %arg2: i32) -> (i32, i32) {
    %c0_i32 = arith.constant 0 : i32
    return %arg0, %arg2 : i32, i32
  }
  func.func @transform_1(%arg0: i32, %arg1: i32, %arg2: i32) -> (i32, i32) {
    %c0_i32 = arith.constant 0 : i32
    return %arg2, %arg1 : i32, i32
  }
  func.func @transform_2(%arg0: i32, %arg1: i32, %arg2: i32) -> (i32, i32) {
    %c0_i32 = arith.constant 0 : i32
    %c0_i32_0 = arith.constant 0 : i32
    return %c0_i32, %arg1 : i32, i32
  }
  func.func @transform_3(%arg0: i32, %arg1: i32, %arg2: i32) -> (i32, i32) {
    %c0_i32 = arith.constant 0 : i32
    return %arg0, %arg1 : i32, i32
  }
}

</mosaic_0001>

<llo_original>
// kernel: clip_forward.27
$region0: #{clip_forward.27}
  #allocation0 [shape = 'u32[]', space=smem, size = 0x4, offset = 0x4, fixed_abs, tag = 'smem constant byte address 0x4 - core index']
  #allocation1 [shape = 'u32[144,128]{1,0:T(1,128)}', space=vmem, size = 0x12000, scoped, tag = 'internal scratch']
  #allocation2 [shape = 'bf16[16,64]{1,0:T(16,128)(2,1)}', space=vmem, size = 0x1000, scoped, tag = 'scratch operand']
  %s0 = inlined_call_operand.vmem [shape: bf16[16,64], index: 0, kind: input, shape index: {}]
  %s1 = inlined_call_operand.vmem [shape: f32[1,64], index: 1, kind: input, shape index: {}]
  %s2 = inlined_call_operand.vmem [shape: f32[1,64], index: 2, kind: input, shape index: {}]
  %s3 = inlined_call_operand.vmem [shape: bf16[64,256], index: 3, kind: input, shape index: {}]
  %s4 = inlined_call_operand.vmem [shape: f32[1,256], index: 4, kind: input, shape index: {}]
  %s5 = inlined_call_operand.vmem [shape: bf16[16,256], index: 5, kind: output, shape index: {}]
  %s6 = sld [smem:[#allocation0]]
  $region34: #{clip_forward.27} parent=0
    _
  %s8 = ssub.s32 1, %s6
  %s9 = scalar_select 0, %s8, %s6
  // Predicated region
  $region2: #{clip_forward.27} parent=0 // pred_check
    _
  $region3: #{clip_forward.27} parent=0 // pred_check_branch
    %11 = sbr.rel (0) target = $region5
  $region4: #{clip_forward.27} parent=0 // pred_region
    _
  $region5: #{clip_forward.27} parent=0 // pred_fallthru
    _
  // Predicated region
  $region6: #{clip_forward.27} parent=0 // pred_check
    _
  $region7: #{clip_forward.27} parent=0 // pred_check_branch
    %13 = sbr.rel (0) target = $region9
  $region8: #{clip_forward.27} parent=0 // pred_region
    _
  $region9: #{clip_forward.27} parent=0 // pred_fallthru
    _
  // Predicated region
  $region10: #{clip_forward.27} parent=0 // pred_check
    _
  $region11: #{clip_forward.27} parent=0 // pred_check_branch
    %15 = sbr.rel (0) target = $region13
  $region12: #{clip_forward.27} parent=0 // pred_region
    _
  $region13: #{clip_forward.27} parent=0 // pred_fallthru
    _
  // Predicated region
  $region14: #{clip_forward.27} parent=0 // pred_check
    _
  $region15: #{clip_forward.27} parent=0 // pred_check_branch
    %17 = sbr.rel (0) target = $region17
  $region16: #{clip_forward.27} parent=0 // pred_region
    _
  $region17: #{clip_forward.27} parent=0 // pred_fallthru
    _
  // Predicated region
  $region18: #{clip_forward.27} parent=0 // pred_check
    _
  $region19: #{clip_forward.27} parent=0 // pred_check_branch
    %19 = sbr.rel (0) target = $region21
  $region20: #{clip_forward.27} parent=0 // pred_region
    _
  $region21: #{clip_forward.27} parent=0 // pred_fallthru
    _
  %p21 = scmp.eq.s32.totalorder 0, 0
  // Predicated region
  $region22: #{clip_forward.27} parent=0 // pred_check
    %p22 = pneg %p21
  $region23: #{clip_forward.27} parent=0 // pred_check_branch
    %24 = sbr.rel (%p22) target = $region25
  $region24: #{clip_forward.27} parent=0 // pred_region
    %v25 = vld [vmem:[%s0] sm:$0xf]
    %v26 = vld [vmem:[%s0 + $0x4] sm:$0xf]
    %v27 = vunpack.c.l.bf16 %v25
    %v28 = vunpack.c.l.bf16 %v26
    %vm29 = vcmask 523264
    %v30 = vsel %vm29, %v27, 0.0
    %31 = vadd.xlane.f32.xlu0 %v30
    %v32 = vpop.xlane.xlu0 %31
    %v33 = vsel %vm29, %v28, 0.0
    %34 = vadd.xlane.f32.xlu0 %v33
    %v35 = vpop.xlane.xlu0 %34
    %v36 = vrcp.pop 64.0
    %v37 = vmul.f32 %v32, %v36
    %v38 = vmul.f32 %v35, %v36
    %v39 = vsub.f32 %v27, %v37
    %v40 = vsub.f32 %v28, %v38
    %v41 = vmul.f32 %v39, %v39
    %v42 = vmul.f32 %v40, %v40
    %v43 = vsel %vm29, %v41, 0.0
    %44 = vadd.xlane.f32.xlu0 %v43
    %v45 = vpop.xlane.xlu0 %44
    %v46 = vsel %vm29, %v42, 0.0
    %47 = vadd.xlane.f32.xlu0 %v46
    %v48 = vpop.xlane.xlu0 %47
    %v49 = vmul.f32 %v45, %v36
    %v50 = vmul.f32 %v48, %v36
    %v51 = vadd.f32 %v49, 1e-05
    %v52 = vadd.f32 %v50, 1e-05
    %v53 = vrsqrt.pop %v51
    %v54 = vrsqrt.pop %v52
    %v55 = vmul.f32 %v39, %v53
    %v56 = vmul.f32 %v40, %v54
    %v57 = vld [vmem:[%s1] sm:$0x1]
    %v59 = vlaneseq
    %v60 = vshrl.u32 %v59, 7
    %v61 = vsub.s32 0, %v60
    %v62 = vrot.slane %v57, %v61
    %v64 = vmul.f32 %v55, %v62
    %v65 = vmul.f32 %v56, %v62
    %v66 = vld [vmem:[%s2] sm:$0x1]
    %v68 = vlaneseq
    %v69 = vshrl.u32 %v68, 7
    %v70 = vsub.s32 0, %v69
    %v71 = vrot.slane %v66, %v70
    %v73 = vadd.f32 %v64, %v71
    %v74 = vadd.f32 %v65, %v71
    %v75 = vpack.c.bf16 %v74, %v73
    %76 = vst.msk [vmem:[#allocation2] sm:$0xff] %vm29, %v75
  $region25: #{clip_forward.27} parent=0 // pred_fallthru
    _
  %v77 = vld [vmem:[#allocation2] sm:$0xff]
  %v78 = vld [vmem:[%s3] sm:$0xff]
  %v79 = vld [vmem:[%s3 + $0x8] sm:$0xff]
  %v80 = vld [vmem:[%s3 + $0x10] sm:$0xff]
  %v81 = vld [vmem:[%s3 + $0x18] sm:$0xff]
  %v82 = vld [vmem:[%s3 + $0x20] sm:$0xff]
  %v83 = vld [vmem:[%s3 + $0x28] sm:$0xff]
  %v84 = vld [vmem:[%s3 + $0x30] sm:$0xff]
  %v85 = vld [vmem:[%s3 + $0x38] sm:$0xff]
  %v86 = vld [vmem:[%s4] sm:$0x3]
  %v88 = vlaneseq
  %v89 = vshrl.u32 %v88, 7
  %v90 = vsub.s32 0, %v89
  %v91 = vrot.slane %v86, %v90
  %v92 = vlaneseq
  %v93 = vshrl.u32 %v92, 7
  %v94 = vsub.s32 1, %v93
  %v95 = vrot.slane %v86, %v94
  %v106 = vunpack.c.l.b16 %v78
  %v107 = vunpack.c.h.b16 %v78
  %v108 = vunpack.c.l.b16 %v79
  %v109 = vunpack.c.h.b16 %v79
  %v110 = vunpack.c.l.b16 %v80
  %v111 = vunpack.c.h.b16 %v80
  %v112 = vunpack.c.l.b16 %v81
  %v113 = vunpack.c.h.b16 %v81
  %v114 = vunpack.c.l.b16 %v82
  %v115 = vunpack.c.h.b16 %v82
  %v116 = vunpack.c.l.b16 %v83
  %v117 = vunpack.c.h.b16 %v83
  %v118 = vunpack.c.l.b16 %v84
  %v119 = vunpack.c.h.b16 %v84
  %v120 = vunpack.c.l.b16 %v85
  %v121 = vunpack.c.h.b16 %v85
  %v122 = vpack.c.b16 %v108, %v106
  %v123 = vpack.c.b16 %v109, %v107
  %v124 = vpack.c.b16 %v112, %v110
  %v125 = vpack.c.b16 %v113, %v111
  %v126 = vpack.c.b16 %v116, %v114
  %v127 = vpack.c.b16 %v117, %v115
  %v128 = vpack.c.b16 %v120, %v118
  %v129 = vpack.c.b16 %v121, %v119
  %vm138 = vcmask 523264
  %v140 = vsel %vm138, %v77, 0
  %142 = vmatprep.subr.bf16.mxu0 %v123
  %143 = vmatpush1.bf16.msra.mxu0 %v122
  %144 = vmatprep.subr.bf16.mxu0 %v125
  %145 = vmatpush1.bf16.msra.mxu0 %v124
  %146 = vmatprep.subr.bf16.mxu0 %v127
  %147 = vmatpush1.bf16.msra.mxu0 %v126
  %148 = vmatprep.subr.bf16.mxu0 %v129
  %149 = vmatpush1.bf16.msra.mxu0 %v128
  %150 = vmatprep.subr.bf16.mxu0 0
  %151 = vmatpush1.bf16.msra.mxu0 0
  %152 = vmatprep.subr.bf16.mxu0 0
  %153 = vmatpush1.bf16.msra.mxu0 0
  %154 = vmatprep.subr.bf16.mxu0 0
  %155 = vmatpush1.bf16.msra.mxu0 0
  %156 = vmatprep.subr.bf16.mxu0 0
  %157 = vmatpush1.bf16.msra.mxu0 0
  %158 = vmatprep.subr.bf16.mxu0 0
  %159 = vmatpush1.bf16.msra.mxu0 0
  %160 = vmatprep.subr.bf16.mxu0 0
  %161 = vmatpush1.bf16.msra.mxu0 0
  %162 = vmatprep.subr.bf16.mxu0 0
  %163 = vmatpush1.bf16.msra.mxu0 0
  %164 = vmatprep.subr.bf16.mxu0 0
  %165 = vmatpush1.bf16.msra.mxu0 0
  %166 = vmatprep.subr.bf16.mxu0 0
  %167 = vmatpush1.bf16.msra.mxu0 0
  %168 = vmatprep.subr.bf16.mxu0 0
  %169 = vmatpush1.bf16.msra.mxu0 0
  %170 = vmatprep.subr.bf16.mxu0 0
  %171 = vmatpush1.bf16.msra.mxu0 0
  %172 = vmatprep.subr.bf16.mxu0 0
  %173 = vmatpush1.bf16.msra.mxu0 0
  %174 = vmatprep.mubr.bf16.mxu0 0
  %175 = vmatmul.mubr.bf16.gmra.mrb[0].mxu0 %v140
  %v176 = vpop.f32.mrb[0].mxu0
  %v177 = vadd.f32 %v91, %v176
  %v178 = vpop.f32.mrb[0].mxu0
  %v179 = vadd.f32 %v95, %v178
  %v180 = vpop.f32.mrb[0].mxu0
  %v181 = vadd.f32 %v91, %v180
  %v182 = vpop.f32.mrb[0].mxu0
  %v183 = vadd.f32 %v95, %v182
  %184 = vdwg.mxu0
  %v185 = vpack.c.bf16 %v181, %v177
  %v186 = vpack.c.bf16 %v183, %v179
  %v189 = vunpack.c.l.b16 %v185
  %v190 = vunpack.c.l.b16 %v186
  %v191 = vunpack.c.h.b16 %v185
  %v192 = vunpack.c.h.b16 %v186
  %v193 = vpack.c.b16 %v190, %v189
  %v194 = vpack.c.b16 %v192, %v191
  %197 = vst [vmem:[%s5] sm:$0xff] %v193
  %198 = vst [vmem:[%s5 + $0x8] sm:$0xff] %v194
  // Predicated region
  $region26: #{clip_forward.27} parent=0 // pred_check
    _
  $region27: #{clip_forward.27} parent=0 // pred_check_branch
    %200 = sbr.rel (0) target = $region29
  $region28: #{clip_forward.27} parent=0 // pred_region
    _
  $region29: #{clip_forward.27} parent=0 // pred_fallthru
    _
  // Predicated region
  $region30: #{clip_forward.27} parent=0 // pred_check
    _
  $region31: #{clip_forward.27} parent=0 // pred_check_branch
    %202 = sbr.rel (0) target = $region33
  $region32: #{clip_forward.27} parent=0 // pred_region
    _
  $region33: #{clip_forward.27} parent=0 // pred_fallthru
    _

// kernel: clip_forward.25
$region0: #{clip_forward.25}
  #allocation0 [shape = 'u32[]', space=smem, size = 0x4, offset = 0x4, fixed_abs, tag = 'smem constant byte address 0x4 - core index']
  #allocation1 [shape = 'u32[144,128]{1,0:T(1,128)}', space=vmem, size = 0x12000, scoped, tag = 'internal scratch']
  #allocation2 [shape = 'f32[8,128]{1,0:T(8,128)}', space=vmem, size = 0x1000, scoped, tag = 'scratch operand']
  %s0 = inlined_call_operand.vmem [shape: bf16[8,256], index: 0, kind: input, shape index: {}]
  %s1 = inlined_call_operand.vmem [shape: bf16[256,128], index: 1, kind: input, shape index: {}]
  %s2 = inlined_call_operand.vmem [shape: f32[1,128], index: 2, kind: input, shape index: {}]
  %s3 = inlined_call_operand.vmem [shape: bf16[8,128], index: 3, kind: output, shape index: {}]
  %s4 = sld [smem:[#allocation0]]
  $region30: #{clip_forward.25} parent=0
    _
  %s6 = ssub.s32 1, %s4
  %s7 = scalar_select 0, %s6, %s4
  // Predicated region
  $region2: #{clip_forward.25} parent=0 // pred_check
    _
  $region3: #{clip_forward.25} parent=0 // pred_check_branch
    %9 = sbr.rel (0) target = $region5
  $region4: #{clip_forward.25} parent=0 // pred_region
    _
  $region5: #{clip_forward.25} parent=0 // pred_fallthru
    _
  // Predicated region
  $region6: #{clip_forward.25} parent=0 // pred_check
    _
  $region7: #{clip_forward.25} parent=0 // pred_check_branch
    %11 = sbr.rel (0) target = $region9
  $region8: #{clip_forward.25} parent=0 // pred_region
    _
  $region9: #{clip_forward.25} parent=0 // pred_fallthru
    _
  // Predicated region
  $region10: #{clip_forward.25} parent=0 // pred_check
    _
  $region11: #{clip_forward.25} parent=0 // pred_check_branch
    %13 = sbr.rel (0) target = $region13
  $region12: #{clip_forward.25} parent=0 // pred_region
    _
  $region13: #{clip_forward.25} parent=0 // pred_fallthru
    _
  %p15 = scmp.eq.s32.totalorder 0, 0
  // Predicated region
  $region14: #{clip_forward.25} parent=0 // pred_check
    %p16 = pneg %p15
  $region15: #{clip_forward.25} parent=0 // pred_check_branch
    %18 = sbr.rel (%p16) target = $region17
  $region16: #{clip_forward.25} parent=0 // pred_region
    %19 = vst [vmem:[#allocation2] sm:$0xff] 0.0
  $region17: #{clip_forward.25} parent=0 // pred_fallthru
    _
  %v20 = vld [vmem:[#allocation2] sm:$0xff]
  %v21 = vld [vmem:[%s0] sm:$0xff]
  %v22 = vld [vmem:[%s1] sm:$0xf]
  %v23 = vld [vmem:[%s1 + $0x4] sm:$0xf]
  %v24 = vld [vmem:[%s1 + $0x8] sm:$0xf]
  %v25 = vld [vmem:[%s1 + $0xc] sm:$0xf]
  %v26 = vld [vmem:[%s1 + $0x10] sm:$0xf]
  %v27 = vld [vmem:[%s1 + $0x14] sm:$0xf]
  %v28 = vld [vmem:[%s1 + $0x18] sm:$0xf]
  %v29 = vld [vmem:[%s1 + $0x1c] sm:$0xf]
  %v30 = vld [vmem:[%s1 + $0x20] sm:$0xf]
  %v31 = vld [vmem:[%s1 + $0x24] sm:$0xf]
  %v32 = vld [vmem:[%s1 + $0x28] sm:$0xf]
  %v33 = vld [vmem:[%s1 + $0x2c] sm:$0xf]
  %v34 = vld [vmem:[%s1 + $0x30] sm:$0xf]
  %v35 = vld [vmem:[%s1 + $0x34] sm:$0xf]
  %v36 = vld [vmem:[%s1 + $0x38] sm:$0xf]
  %v37 = vld [vmem:[%s1 + $0x3c] sm:$0xf]
  %v38 = vld [vmem:[%s1 + $0x40] sm:$0xf]
  %v39 = vld [vmem:[%s1 + $0x44] sm:$0xf]
  %v40 = vld [vmem:[%s1 + $0x48] sm:$0xf]
  %v41 = vld [vmem:[%s1 + $0x4c] sm:$0xf]
  %v42 = vld [vmem:[%s1 + $0x50] sm:$0xf]
  %v43 = vld [vmem:[%s1 + $0x54] sm:$0xf]
  %v44 = vld [vmem:[%s1 + $0x58] sm:$0xf]
  %v45 = vld [vmem:[%s1 + $0x5c] sm:$0xf]
  %v46 = vld [vmem:[%s1 + $0x60] sm:$0xf]
  %v47 = vld [vmem:[%s1 + $0x64] sm:$0xf]
  %v48 = vld [vmem:[%s1 + $0x68] sm:$0xf]
  %v49 = vld [vmem:[%s1 + $0x6c] sm:$0xf]
  %v50 = vld [vmem:[%s1 + $0x70] sm:$0xf]
  %v51 = vld [vmem:[%s1 + $0x74] sm:$0xf]
  %v52 = vld [vmem:[%s1 + $0x78] sm:$0xf]
  %v53 = vld [vmem:[%s1 + $0x7c] sm:$0xf]
  %v55 = vunpack.c.l.b16 %v21
  %v56 = vunpack.c.h.b16 %v21
  %v57 = vpack.c.b16 %v55, %v55
  %v58 = vpack.c.b16 %v56, %v56
  %v93 = vunpack.c.l.b16 %v22
  %v94 = vunpack.c.l.b16 %v23
  %v95 = vunpack.c.l.b16 %v24
  %v96 = vunpack.c.l.b16 %v25
  %v97 = vunpack.c.l.b16 %v26
  %v98 = vunpack.c.l.b16 %v27
  %v99 = vunpack.c.l.b16 %v28
  %v100 = vunpack.c.l.b16 %v29
  %v101 = vunpack.c.l.b16 %v30
  %v102 = vunpack.c.l.b16 %v31
  %v103 = vunpack.c.l.b16 %v32
  %v104 = vunpack.c.l.b16 %v33
  %v105 = vunpack.c.l.b16 %v34
  %v106 = vunpack.c.l.b16 %v35
  %v107 = vunpack.c.l.b16 %v36
  %v108 = vunpack.c.l.b16 %v37
  %v109 = vunpack.c.l.b16 %v38
  %v110 = vunpack.c.l.b16 %v39
  %v111 = vunpack.c.l.b16 %v40
  %v112 = vunpack.c.l.b16 %v41
  %v113 = vunpack.c.l.b16 %v42
  %v114 = vunpack.c.l.b16 %v43
  %v115 = vunpack.c.l.b16 %v44
  %v116 = vunpack.c.l.b16 %v45
  %v117 = vunpack.c.l.b16 %v46
  %v118 = vunpack.c.l.b16 %v47
  %v119 = vunpack.c.l.b16 %v48
  %v120 = vunpack.c.l.b16 %v49
  %v121 = vunpack.c.l.b16 %v50
  %v122 = vunpack.c.l.b16 %v51
  %v123 = vunpack.c.l.b16 %v52
  %v124 = vunpack.c.l.b16 %v53
  %v125 = vpack.c.b16 %v94, %v93
  %v126 = vpack.c.b16 %v96, %v95
  %v127 = vpack.c.b16 %v98, %v97
  %v128 = vpack.c.b16 %v100, %v99
  %v129 = vpack.c.b16 %v102, %v101
  %v130 = vpack.c.b16 %v104, %v103
  %v131 = vpack.c.b16 %v106, %v105
  %v132 = vpack.c.b16 %v108, %v107
  %v133 = vpack.c.b16 %v110, %v109
  %v134 = vpack.c.b16 %v112, %v111
  %v135 = vpack.c.b16 %v114, %v113
  %v136 = vpack.c.b16 %v116, %v115
  %v137 = vpack.c.b16 %v118, %v117
  %v138 = vpack.c.b16 %v120, %v119
  %v139 = vpack.c.b16 %v122, %v121
  %v140 = vpack.c.b16 %v124, %v123
  %157 = vmatprep.subr.bf16.mxu0 0
  %158 = vmatpush1.bf16.msra.mxu0 %v125
  %159 = vmatprep.subr.bf16.mxu0 0
  %160 = vmatpush1.bf16.msra.mxu0 %v126
  %161 = vmatprep.subr.bf16.mxu0 0
  %162 = vmatpush1.bf16.msra.mxu0 %v127
  %163 = vmatprep.subr.bf16.mxu0 0
  %164 = vmatpush1.bf16.msra.mxu0 %v128
  %165 = vmatprep.subr.bf16.mxu0 0
  %166 = vmatpush1.bf16.msra.mxu0 %v129
  %167 = vmatprep.subr.bf16.mxu0 0
  %168 = vmatpush1.bf16.msra.mxu0 %v130
  %169 = vmatprep.subr.bf16.mxu0 0
  %170 = vmatpush1.bf16.msra.mxu0 %v131
  %171 = vmatprep.subr.bf16.mxu0 0
  %172 = vmatpush1.bf16.msra.mxu0 %v132
  %173 = vmatprep.subr.bf16.mxu0 0
  %174 = vmatpush1.bf16.msra.mxu0 %v133
  %175 = vmatprep.subr.bf16.mxu0 0
  %176 = vmatpush1.bf16.msra.mxu0 %v134
  %177 = vmatprep.subr.bf16.mxu0 0
  %178 = vmatpush1.bf16.msra.mxu0 %v135
  %179 = vmatprep.subr.bf16.mxu0 0
  %180 = vmatpush1.bf16.msra.mxu0 %v136
  %181 = vmatprep.subr.bf16.mxu0 0
  %182 = vmatpush1.bf16.msra.mxu0 %v137
  %183 = vmatprep.subr.bf16.mxu0 0
  %184 = vmatpush1.bf16.msra.mxu0 %v138
  %185 = vmatprep.subr.bf16.mxu0 0
  %186 = vmatpush1.bf16.msra.mxu0 %v139
  %187 = vmatprep.subr.bf16.mxu0 0
  %188 = vmatpush1.bf16.msra.mxu0 %v140
  %189 = vmatprep.mubr.bf16.mxu0 %v58
  %190 = vmatmul.mubr.bf16.gmra.mrb[0].mxu0 %v57
  %v191 = vpop.f32.mrb[0].mxu0
  %v192 = vadd.f32 0.0, %v191
  %v193 = vpop.f32.mrb[0].mxu0
  %v194 = vpop.f32.mrb[0].mxu0
  %v195 = vpop.f32.mrb[0].mxu0
  %196 = vdwg.mxu0
  %v197 = vadd.f32 %v20, %v192
  %198 = vst [vmem:[#allocation2] sm:$0xff] %v197
  // Predicated region
  $region18: #{clip_forward.25} parent=0 // pred_check
    %p199 = pneg %p15
  $region19: #{clip_forward.25} parent=0 // pred_check_branch
    %201 = sbr.rel (%p199) target = $region21
  $region20: #{clip_forward.25} parent=0 // pred_region
    %v202 = vld [vmem:[#allocation2] sm:$0xff]
    %v203 = vld [vmem:[%s2] sm:$0x1]
    %v205 = vlaneseq
    %v206 = vshrl.u32 %v205, 7
    %v207 = vsub.s32 0, %v206
    %v208 = vrot.slane %v203, %v207
    %v210 = vadd.f32 %v202, %v208
    %v211 = vpack.c.bf16 %v210, %v210
    %212 = vst [vmem:[%s3] sm:$0xf] %v211
  $region21: #{clip_forward.25} parent=0 // pred_fallthru
    _
  // Predicated region
  $region22: #{clip_forward.25} parent=0 // pred_check
    _
  $region23: #{clip_forward.25} parent=0 // pred_check_branch
    %214 = sbr.rel (0) target = $region25
  $region24: #{clip_forward.25} parent=0 // pred_region
    _
  $region25: #{clip_forward.25} parent=0 // pred_fallthru
    _
  // Predicated region
  $region26: #{clip_forward.25} parent=0 // pred_check
    _
  $region27: #{clip_forward.25} parent=0 // pred_check_branch
    %216 = sbr.rel (0) target = $region29
  $region28: #{clip_forward.25} parent=0 // pred_region
    _
  $region29: #{clip_forward.25} parent=0 // pred_fallthru
    _

// kernel: clip_forward.28
$region0: #{clip_forward.28}
  #allocation0 [shape = 'u32[]', space=smem, size = 0x4, offset = 0x4, fixed_abs, tag = 'smem constant byte address 0x4 - core index']
  #allocation1 [shape = 'u32[144,128]{1,0:T(1,128)}', space=vmem, size = 0x12000, scoped, tag = 'internal scratch']
  %s0 = inlined_call_operand.vmem [shape: bf16[2,5,64], index: 0, kind: input, shape index: {}]
  %s1 = inlined_call_operand.vmem [shape: bf16[2,5,64], index: 1, kind: input, shape index: {}]
  %s2 = inlined_call_operand.vmem [shape: bf16[2,5,64], index: 2, kind: input, shape index: {}]
  %s3 = inlined_call_operand.vmem [shape: bf16[2,5,64], index: 3, kind: output, shape index: {}]
  %s4 = sld [smem:[#allocation0]]
  $region45: #{clip_forward.28} parent=0
    _
  %s6 = ssub.s32 1, %s4
  %s7 = scalar_select 0, %s6, %s4
  loop: start=0, step=1, limit=4
  $region2: #{clip_forward.28} parent=0 // loop_pre_header
    _
  $region3: #{clip_forward.28} parent=0 // loop_header
    %s9 = sphi 0, %s13
    %p10 = scmp.ge.s32.totalorder %s9, 4
    %s16 = sphi 0, %s28
    %s17 = sphi 0, %s24
    %s18 = sphi 0, %s16
    %s19 = sphi 0, %s17
    %s20 = sphi 0, %s18
    %s21 = sphi 0, %s19
    %s33 = sphi 0, %s35
    %s36 = sphi 0, %s33
    %s37 = sphi 0, %s36
    %s53 = sphi 0, %s37
    %s61 = sphi 0, %s63
    %s64 = sphi 0, %s61
    %s65 = sphi 0, %s64
    %s81 = sphi 0, %s65
    %s89 = sphi 0, %s91
    %s92 = sphi 0, %s89
    %s93 = sphi 0, %s92
    %s109 = sphi 0, %s93
    %s117 = sphi 0, %s119
    %s120 = sphi 0, %s117
    %s121 = sphi 0, %s120
    %s137 = sphi 0, %s121
  $region4: #{clip_forward.28} parent=0 // loop_header_branch
    %12 = sbr.rel (%p10) target = $region8
  $region5: #{clip_forward.28} parent=0 // loop_body
    %s14 = ssub.s32 %s9, 1
    %s15 = ssub.s32 %s9, 2
    %s22 = sadd.s32 1, %s17
    %p23 = scmp.ge.s32.totalorder %s22, 1
    %s24 = scalar_select %p23, 0, %s22
    %s25 = sadd.s32 1, %s16
    %s26 = scalar_select %p23, %s25, %s16
    %p27 = scmp.ge.s32.totalorder %s26, 2
    %s28 = scalar_select %p27, 0, %s26
    %s29 = ssub.s32 %s16, %s28
    %s30 = ssub.s32 %s17, %s24
    %s31 = sor.u32 %s29, %s30
    %p32 = scmp.eq.s32.totalorder %s31, 0
    %s34 = sadd.s32 %s33, 1
    %s35 = scalar_select %p32, %s33, %s34
    %p38 = pneg %p32
    %p39 = scmp.eq.s32.totalorder %s9, 1
    %p40 = por %p38, %p39
    %p41 = scmp.ne.s32.totalorder %s33, %s36
    %p42 = scmp.eq.s32.totalorder %s9, 0
    %p43 = por %p41, %p42
    %p44 = scmp.ne.s32.totalorder %s33, %s36
    %p45 = scmp.eq.s32.totalorder %s14, 1
    %p46 = por %p44, %p45
    %p47 = scmp.ne.s32.totalorder %s36, %s37
    %p48 = scmp.eq.s32.totalorder %s14, 0
    %p49 = por %p47, %p48
    %p50 = scmp.ne.s32.totalorder %s36, %s37
    %p51 = scmp.eq.s32.totalorder %s15, 1
    %p52 = por %p50, %p51
    %p54 = scmp.ne.s32.totalorder %s37, %s53
    %p55 = scmp.eq.s32.totalorder %s15, 0
    %p56 = por %p54, %p55
    %s57 = ssub.s32 %s16, %s28
    %s58 = ssub.s32 %s17, %s24
    %s59 = sor.u32 %s57, %s58
    %p60 = scmp.eq.s32.totalorder %s59, 0
    %s62 = sadd.s32 %s61, 1
    %s63 = scalar_select %p60, %s61, %s62
    %p66 = pneg %p60
    %p67 = scmp.eq.s32.totalorder %s9, 1
    %p68 = por %p66, %p67
    %p69 = scmp.ne.s32.totalorder %s61, %s64
    %p70 = scmp.eq.s32.totalorder %s9, 0
    %p71 = por %p69, %p70
    %p72 = scmp.ne.s32.totalorder %s61, %s64
    %p73 = scmp.eq.s32.totalorder %s14, 1
    %p74 = por %p72, %p73
    %p75 = scmp.ne.s32.totalorder %s64, %s65
    %p76 = scmp.eq.s32.totalorder %s14, 0
    %p77 = por %p75, %p76
    %p78 = scmp.ne.s32.totalorder %s64, %s65
    %p79 = scmp.eq.s32.totalorder %s15, 1
    %p80 = por %p78, %p79
    %p82 = scmp.ne.s32.totalorder %s65, %s81
    %p83 = scmp.eq.s32.totalorder %s15, 0
    %p84 = por %p82, %p83
    %s85 = ssub.s32 %s16, %s28
    %s86 = ssub.s32 %s17, %s24
    %s87 = sor.u32 %s85, %s86
    %p88 = scmp.eq.s32.totalorder %s87, 0
    %s90 = sadd.s32 %s89, 1
    %s91 = scalar_select %p88, %s89, %s90
    %p94 = pneg %p88
    %p95 = scmp.eq.s32.totalorder %s9, 1
    %p96 = por %p94, %p95
    %p97 = scmp.ne.s32.totalorder %s89, %s92
    %p98 = scmp.eq.s32.totalorder %s9, 0
    %p99 = por %p97, %p98
    %p100 = scmp.ne.s32.totalorder %s89, %s92
    %p101 = scmp.eq.s32.totalorder %s14, 1
    %p102 = por %p100, %p101
    %p103 = scmp.ne.s32.totalorder %s92, %s93
    %p104 = scmp.eq.s32.totalorder %s14, 0
    %p105 = por %p103, %p104
    %p106 = scmp.ne.s32.totalorder %s92, %s93
    %p107 = scmp.eq.s32.totalorder %s15, 1
    %p108 = por %p106, %p107
    %p110 = scmp.ne.s32.totalorder %s93, %s109
    %p111 = scmp.eq.s32.totalorder %s15, 0
    %p112 = por %p110, %p111
    %s113 = ssub.s32 %s16, %s28
    %s114 = ssub.s32 %s17, %s24
    %s115 = sor.u32 %s113, %s114
    %p116 = scmp.eq.s32.totalorder %s115, 0
    %s118 = sadd.s32 %s117, 1
    %s119 = scalar_select %p116, %s117, %s118
    %p122 = pneg %p116
    %p123 = scmp.eq.s32.totalorder %s9, 1
    %p124 = por %p122, %p123
    %p125 = scmp.ne.s32.totalorder %s117, %s120
    %p126 = scmp.eq.s32.totalorder %s9, 0
    %p127 = por %p125, %p126
    %p128 = scmp.ne.s32.totalorder %s117, %s120
    %p129 = scmp.eq.s32.totalorder %s14, 1
    %p130 = por %p128, %p129
    %p131 = scmp.ne.s32.totalorder %s120, %s121
    %p132 = scmp.eq.s32.totalorder %s14, 0
    %p133 = por %p131, %p132
    %p134 = scmp.ne.s32.totalorder %s120, %s121
    %p135 = scmp.eq.s32.totalorder %s15, 1
    %p136 = por %p134, %p135
    %p138 = scmp.ne.s32.totalorder %s121, %s137
    %p139 = scmp.eq.s32.totalorder %s15, 0
    %p140 = por %p138, %p139
    %p141 = scmp.le.s32.totalorder 1, %s9
    %p142 = scmp.lt.s32.totalorder %s9, 3
    %p143 = pnand %p141, %p142
    %p144 = pneg %p143
    // Predicated region
    $region9: #{clip_forward.28} parent=5 // pred_check
      _
    $region10: #{clip_forward.28} parent=5 // pred_check_branch
      %146 = sbr.rel (%p143) target = $region12
    $region11: #{clip_forward.28} parent=5 // pred_region
      %s147 = ssub.s32 %s9, 1
    $region12: #{clip_forward.28} parent=5 // pred_fallthru
      _
    %p148 = scmp.lt.s32.totalorder %s9, 2
    // Predicated region
    $region13: #{clip_forward.28} parent=5 // pred_check
      %p149 = pneg %p148
    $region14: #{clip_forward.28} parent=5 // pred_check_branch
      %151 = sbr.rel (%p149) target = $region16
    $region15: #{clip_forward.28} parent=5 // pred_region
      // Predicated region
      $region17: #{clip_forward.28} parent=15 // pred_check
        %p152 = pneg %p43
      $region18: #{clip_forward.28} parent=15 // pred_check_branch
        %154 = sbr.rel (%p152) target = $region20
      $region19: #{clip_forward.28} parent=15 // pred_region
        %p155 = scmp.lt.s32.totalorder %s16, 1
        %s156 = scalar_select %p155, %s16, 1
        %p157 = scmp.lt.s32.totalorder %s17, 0
        %s158 = scalar_select %p157, %s17, 0
        %s159 = sadd.s32 %s158, %s156
        %s160 = smul.addr %s159, 4
        %s161 = scalar_lea.vmem %s0, %s160
      $region20: #{clip_forward.28} parent=15 // pred_fallthru
        _
      // Predicated region
      $region21: #{clip_forward.28} parent=15 // pred_check
        %p162 = pneg %p71
      $region22: #{clip_forward.28} parent=15 // pred_check_branch
        %164 = sbr.rel (%p162) target = $region24
      $region23: #{clip_forward.28} parent=15 // pred_region
        %p165 = scmp.lt.s32.totalorder %s16, 1
        %s166 = scalar_select %p165, %s16, 1
        %p167 = scmp.lt.s32.totalorder %s17, 0
        %s168 = scalar_select %p167, %s17, 0
        %s169 = sadd.s32 %s168, %s166
        %s170 = smul.addr %s169, 4
        %s171 = scalar_lea.vmem %s1, %s170
      $region24: #{clip_forward.28} parent=15 // pred_fallthru
        _
      // Predicated region
      $region25: #{clip_forward.28} parent=15 // pred_check
        %p172 = pneg %p99
      $region26: #{clip_forward.28} parent=15 // pred_check_branch
        %174 = sbr.rel (%p172) target = $region28
      $region27: #{clip_forward.28} parent=15 // pred_region
        %p175 = scmp.lt.s32.totalorder %s16, 1
        %s176 = scalar_select %p175, %s16, 1
        %p177 = scmp.lt.s32.totalorder %s17, 0
        %s178 = scalar_select %p177, %s17, 0
        %s179 = sadd.s32 %s178, %s176
        %s180 = smul.addr %s179, 4
        %s181 = scalar_lea.vmem %s2, %s180
      $region28: #{clip_forward.28} parent=15 // pred_fallthru
        _
    $region16: #{clip_forward.28} parent=5 // pred_fallthru
      _
    %p182 = scmp.le.s32.totalorder 1, %s9
    %p183 = scmp.lt.s32.totalorder %s9, 3
    %p184 = pnand %p182, %p183
    %p185 = pneg %p184
    // Predicated region
    $region29: #{clip_forward.28} parent=5 // pred_check
      _
    $region30: #{clip_forward.28} parent=5 // pred_check_branch
      %187 = sbr.rel (%p184) target = $region32
    $region31: #{clip_forward.28} parent=5 // pred_region
      %s188 = ssub.s32 %s9, 1
      %p189 = scmp.lt.s32.totalorder %s18, 1
      %s190 = scalar_select %p189, %s18, 1
      %p191 = scmp.lt.s32.totalorder %s19, 0
      %s192 = scalar_select %p191, %s19, 0
      %s193 = sadd.s32 %s192, %s190
      %s194 = smul.addr %s193, 4
      %s195 = scalar_lea.vmem %s0, %s194
      %p196 = pneg %p49
      %p197 = pneg %p46
      %p198 = scmp.lt.s32.totalorder %s18, 1
      %s199 = scalar_select %p198, %s18, 1
      %p200 = scmp.lt.s32.totalorder %s19, 0
      %s201 = scalar_select %p200, %s19, 0
      %s202 = sadd.s32 %s201, %s199
      %s203 = smul.addr %s202, 4
      %s204 = scalar_lea.vmem %s1, %s203
      %p205 = pneg %p77
      %p206 = pneg %p74
      %p207 = scmp.lt.s32.totalorder %s18, 1
      %s208 = scalar_select %p207, %s18, 1
      %p209 = scmp.lt.s32.totalorder %s19, 0
      %s210 = scalar_select %p209, %s19, 0
      %s211 = sadd.s32 %s210, %s208
      %s212 = smul.addr %s211, 4
      %s213 = scalar_lea.vmem %s2, %s212
      %p214 = pneg %p105
      %p215 = pneg %p102
      %p216 = pneg %p133
      %p217 = pneg %p130
      %p218 = scmp.lt.s32.totalorder %s18, 1
      %s219 = scalar_select %p218, %s18, 1
      %p220 = scmp.lt.s32.totalorder %s19, 0
      %s221 = scalar_select %p220, %s19, 0
      %s222 = sadd.s32 %s221, %s219
      %s223 = smul.addr %s222, 4
      %s224 = scalar_lea.vmem %s3, %s223
      %p225 = scmp.lt.s32.totalorder %s18, 1
      %s226 = scalar_select %p225, %s18, 1
      %p227 = scmp.lt.s32.totalorder %s19, 0
      %s228 = scalar_select %p227, %s19, 0
      %s229 = sadd.s32 %s228, %s226
      %s230 = smul.addr %s229, 4
      %s231 = scalar_lea.vmem %s0, %s230
      %p232 = scmp.lt.s32.totalorder %s18, 1
      %s233 = scalar_select %p232, %s18, 1
      %p234 = scmp.lt.s32.totalorder %s19, 0
      %s235 = scalar_select %p234, %s19, 0
      %s236 = sadd.s32 %s235, %s233
      %s237 = smul.addr %s236, 4
      %s238 = scalar_lea.vmem %s1, %s237
      %p239 = scmp.lt.s32.totalorder %s18, 1
      %s240 = scalar_select %p239, %s18, 1
      %p241 = scmp.lt.s32.totalorder %s19, 0
      %s242 = scalar_select %p241, %s19, 0
      %s243 = sadd.s32 %s242, %s240
      %s244 = smul.addr %s243, 4
      %s245 = scalar_lea.vmem %s2, %s244
      %p246 = scmp.lt.s32.totalorder %s18, 1
      %s247 = scalar_select %p246, %s18, 1
      %p248 = scmp.lt.s32.totalorder %s19, 0
      %s249 = scalar_select %p248, %s19, 0
      %s250 = sadd.s32 %s249, %s247
      %s251 = smul.addr %s250, 4
      %s252 = scalar_lea.vmem %s3, %s251
      %v254 = vld [vmem:[%s231] sm:$0x7]
      %v255 = vunpack.c.l.bf16 %v254
      %v256 = vmul.f32 %v255, 0.125
      %v257 = vpack.c.bf16 %v256, %v256
      %v258 = vld [vmem:[%s238] sm:$0x7]
      %v259 = vld [vmem:[%s245] sm:$0x7]
      %vm260 = vcmask 523264
      %v262 = vsel %vm260, %v257, 0
      %v265 = vsel %vm260, %v258, 0
      %267 = vmatprep.subr.bf16.mxu0 0
      %268 = vmatpush1.bf16.xpose.msra.mxu0 %v265
      %269 = vmatprep.subr.bf16.mxu0 0
      %270 = vmatpush1.bf16.xpose.msra.mxu0 0
      %271 = vmatprep.subr.bf16.mxu0 0
      %272 = vmatpush1.bf16.xpose.msra.mxu0 0
      %273 = vmatprep.subr.bf16.mxu0 0
      %274 = vmatpush1.bf16.xpose.msra.mxu0 0
      %275 = vmatprep.subr.bf16.mxu0 0
      %276 = vmatpush1.bf16.xpose.msra.mxu0 0
      %277 = vmatprep.subr.bf16.mxu0 0
      %278 = vmatpush1.bf16.xpose.msra.mxu0 0
      %279 = vmatprep.subr.bf16.mxu0 0
      %280 = vmatpush1.bf16.xpose.msra.mxu0 0
      %281 = vmatprep.subr.bf16.mxu0 0
      %282 = vmatpush1.bf16.xpose.msra.mxu0 0
      %283 = vmatprep.subr.bf16.mxu0 0
      %284 = vmatpush1.bf16.xpose.msra.mxu0 0
      %285 = vmatprep.subr.bf16.mxu0 0
      %286 = vmatpush1.bf16.xpose.msra.mxu0 0
      %287 = vmatprep.subr.bf16.mxu0 0
      %288 = vmatpush1.bf16.xpose.msra.mxu0 0
      %289 = vmatprep.subr.bf16.mxu0 0
      %290 = vmatpush1.bf16.xpose.msra.mxu0 0
      %291 = vmatprep.subr.bf16.mxu0 0
      %292 = vmatpush1.bf16.xpose.msra.mxu0 0
      %293 = vmatprep.subr.bf16.mxu0 0
      %294 = vmatpush1.bf16.xpose.msra.mxu0 0
      %295 = vmatprep.subr.bf16.mxu0 0
      %296 = vmatpush1.bf16.xpose.msra.mxu0 0
      %297 = vmatprep.subr.bf16.mxu0 0
      %298 = vmatpush1.bf16.xpose.msra.mxu0 0
      %299 = vmatprep.mubr.bf16.mxu0 0
      %300 = vmatmul.mubr.bf16.gmra.mrb[0].mxu0 %v262
      %v301 = vpop.f32.mrb[0].mxu0
      %v302 = vadd.f32 0.0, %v301
      %v303 = vpop.f32.mrb[0].mxu0
      %v304 = vpop.f32.mrb[0].mxu0
      %v305 = vpop.f32.mrb[0].mxu0
      %306 = vdwg.mxu0
      %vm307 = vcmask 36864
      %v308 = vsel %vm307, %v302, -inf
      %309 = vmax.xlane.f32.xlu0 %v308
      %v310 = vpop.xlane.xlu0 %309
      %v311 = vsub.f32 %v302, %v310
      %v312 = vmul.f32 %v311, 1.442695
      %v313 = vpow.pop %v312
      %v314 = vsel %vm307, %v313, 0.0
      %315 = vadd.xlane.f32.xlu0 %v314
      %v316 = vpop.xlane.xlu0 %315
      %v317 = vpack.c.bf16 %v313, %v313
      %vm318 = vcmask 39936
      %v320 = vsel %vm318, %v317, 0
      %vm322 = vcmask 1041408
      %vm323 = vcmask 1042432
      %v324 = vsel %vm322, 4294967295, 65535
      %v325 = vsel %vm323, %v324, 0
      %v327 = vand.u32 %v259, %v325
      %329 = vmatprep.subr.bf16.mxu0 0
      %330 = vmatpush1.bf16.msra.mxu0 %v327
      %331 = vmatprep.subr.bf16.mxu0 0
      %332 = vmatpush1.bf16.msra.mxu0 0
      %333 = vmatprep.subr.bf16.mxu0 0
      %334 = vmatpush1.bf16.msra.mxu0 0
      %335 = vmatprep.subr.bf16.mxu0 0
      %336 = vmatpush1.bf16.msra.mxu0 0
      %337 = vmatprep.subr.bf16.mxu0 0
      %338 = vmatpush1.bf16.msra.mxu0 0
      %339 = vmatprep.subr.bf16.mxu0 0
      %340 = vmatpush1.bf16.msra.mxu0 0
      %341 = vmatprep.subr.bf16.mxu0 0
      %342 = vmatpush1.bf16.msra.mxu0 0
      %343 = vmatprep.subr.bf16.mxu0 0
      %344 = vmatpush1.bf16.msra.mxu0 0
      %345 = vmatprep.subr.bf16.mxu0 0
      %346 = vmatpush1.bf16.msra.mxu0 0
      %347 = vmatprep.subr.bf16.mxu0 0
      %348 = vmatpush1.bf16.msra.mxu0 0
      %349 = vmatprep.subr.bf16.mxu0 0
      %350 = vmatpush1.bf16.msra.mxu0 0
      %351 = vmatprep.subr.bf16.mxu0 0
      %352 = vmatpush1.bf16.msra.mxu0 0
      %353 = vmatprep.subr.bf16.mxu0 0
      %354 = vmatpush1.bf16.msra.mxu0 0
      %355 = vmatprep.subr.bf16.mxu0 0
      %356 = vmatpush1.bf16.msra.mxu0 0
      %357 = vmatprep.subr.bf16.mxu0 0
      %358 = vmatpush1.bf16.msra.mxu0 0
      %359 = vmatprep.subr.bf16.mxu0 0
      %360 = vmatpush1.bf16.msra.mxu0 0
      %361 = vmatprep.mubr.bf16.mxu0 0
      %362 = vmatmul.mubr.bf16.gmra.mrb[0].mxu0 %v320
      %v363 = vpop.f32.mrb[0].mxu0
      %v364 = vadd.f32 0.0, %v363
      %v365 = vpop.f32.mrb[0].mxu0
      %v366 = vpop.f32.mrb[0].mxu0
      %v367 = vpop.f32.mrb[0].mxu0
      %368 = vdwg.mxu0
      %v369 = vrcp.pop %v316
      %v370 = vmul.f32 %v364, %v369
      %v371 = vpack.c.bf16 %v370, %v370
      %vm372 = vcmask 518144
      %vm373 = vsmask.f32 2304
      %vm374 = vmand %vm372, %vm373
      %v375 = vld [vmem:[%s252] sm:$0x7]
      %v376 = vsel %vm374, %v371, %v375
      %377 = vst [vmem:[%s252] sm:$0x7] %v376
      %p378 = scmp.lt.s32.totalorder %s18, 1
      %s379 = scalar_select %p378, %s18, 1
      %p380 = scmp.lt.s32.totalorder %s19, 0
      %s381 = scalar_select %p380, %s19, 0
      %s382 = sadd.s32 %s381, %s379
      %s383 = smul.addr %s382, 4
      %s384 = scalar_lea.vmem %s3, %s383
      // Predicated region
      $region33: #{clip_forward.28} parent=31 // pred_check
        %p385 = pneg %p130
      $region34: #{clip_forward.28} parent=31 // pred_check_branch
        %387 = sbr.rel (%p385) target = $region36
      $region35: #{clip_forward.28} parent=31 // pred_region
        _
      $region36: #{clip_forward.28} parent=31 // pred_fallthru
        _
    $region32: #{clip_forward.28} parent=5 // pred_fallthru
      _
    %p388 = scmp.le.s32.totalorder 2, %s9
    // Predicated region
    $region37: #{clip_forward.28} parent=5 // pred_check
      %p389 = pneg %p388
    $region38: #{clip_forward.28} parent=5 // pred_check_branch
      %391 = sbr.rel (%p389) target = $region40
    $region39: #{clip_forward.28} parent=5 // pred_region
      %s392 = ssub.s32 %s9, 2
      // Predicated region
      $region41: #{clip_forward.28} parent=39 // pred_check
        %p393 = pneg %p136
      $region42: #{clip_forward.28} parent=39 // pred_check_branch
        %395 = sbr.rel (%p393) target = $region44
      $region43: #{clip_forward.28} parent=39 // pred_region
        %p396 = scmp.lt.s32.totalorder %s20, 1
        %s397 = scalar_select %p396, %s20, 1
        %p398 = scmp.lt.s32.totalorder %s21, 0
        %s399 = scalar_select %p398, %s21, 0
        %s400 = sadd.s32 %s399, %s397
        %s401 = smul.addr %s400, 4
        %s402 = scalar_lea.vmem %s3, %s401
      $region44: #{clip_forward.28} parent=39 // pred_fallthru
        _
    $region40: #{clip_forward.28} parent=5 // pred_fallthru
      _
  $region6: #{clip_forward.28} parent=0 // loop_footer
    %s13 = sadd.s32 1, %s9
  $region7: #{clip_forward.28} parent=0 // loop_footer_branch
    %8 = sbr.rel target = $region3
  $region8: #{clip_forward.28} parent=0 // loop_exit
    _

// kernel: clip_forward.26
$region0: #{clip_forward.26}
  #allocation0 [shape = 'u32[]', space=smem, size = 0x4, offset = 0x4, fixed_abs, tag = 'smem constant byte address 0x4 - core index']
  #allocation1 [shape = 'u32[144,128]{1,0:T(1,128)}', space=vmem, size = 0x12000, scoped, tag = 'internal scratch']
  %s0 = inlined_call_operand.vmem [shape: bf16[16,64], index: 0, kind: input, shape index: {}]
  %s1 = inlined_call_operand.vmem [shape: f32[1,64], index: 1, kind: input, shape index: {}]
  %s2 = inlined_call_operand.vmem [shape: f32[1,64], index: 2, kind: input, shape index: {}]
  %s3 = inlined_call_operand.vmem [shape: bf16[16,64], index: 3, kind: output, shape index: {}]
  %s4 = sld [smem:[#allocation0]]
  $region22: #{clip_forward.26} parent=0
    _
  %s6 = ssub.s32 1, %s4
  %s7 = scalar_select 0, %s6, %s4
  // Predicated region
  $region2: #{clip_forward.26} parent=0 // pred_check
    _
  $region3: #{clip_forward.26} parent=0 // pred_check_branch
    %9 = sbr.rel (0) target = $region5
  $region4: #{clip_forward.26} parent=0 // pred_region
    _
  $region5: #{clip_forward.26} parent=0 // pred_fallthru
    _
  // Predicated region
  $region6: #{clip_forward.26} parent=0 // pred_check
    _
  $region7: #{clip_forward.26} parent=0 // pred_check_branch
    %11 = sbr.rel (0) target = $region9
  $region8: #{clip_forward.26} parent=0 // pred_region
    _
  $region9: #{clip_forward.26} parent=0 // pred_fallthru
    _
  // Predicated region
  $region10: #{clip_forward.26} parent=0 // pred_check
    _
  $region11: #{clip_forward.26} parent=0 // pred_check_branch
    %13 = sbr.rel (0) target = $region13
  $region12: #{clip_forward.26} parent=0 // pred_region
    _
  $region13: #{clip_forward.26} parent=0 // pred_fallthru
    _
  %v14 = vld [vmem:[%s0] sm:$0xf]
  %v15 = vld [vmem:[%s0 + $0x4] sm:$0xf]
  %v16 = vunpack.c.l.bf16 %v14
  %v17 = vunpack.c.l.bf16 %v15
  %vm18 = vcmask 523264
  %v19 = vsel %vm18, %v16, 0.0
  %20 = vadd.xlane.f32.xlu0 %v19
  %v21 = vpop.xlane.xlu0 %20
  %v22 = vsel %vm18, %v17, 0.0
  %23 = vadd.xlane.f32.xlu0 %v22
  %v24 = vpop.xlane.xlu0 %23
  %v25 = vrcp.pop 64.0
  %v26 = vmul.f32 %v21, %v25
  %v27 = vmul.f32 %v24, %v25
  %v28 = vsub.f32 %v16, %v26
  %v29 = vsub.f32 %v17, %v27
  %v30 = vmul.f32 %v28, %v28
  %v31 = vmul.f32 %v29, %v29
  %v32 = vsel %vm18, %v30, 0.0
  %33 = vadd.xlane.f32.xlu0 %v32
  %v34 = vpop.xlane.xlu0 %33
  %v35 = vsel %vm18, %v31, 0.0
  %36 = vadd.xlane.f32.xlu0 %v35
  %v37 = vpop.xlane.xlu0 %36
  %v38 = vmul.f32 %v34, %v25
  %v39 = vmul.f32 %v37, %v25
  %v40 = vadd.f32 %v38, 1e-05
  %v41 = vadd.f32 %v39, 1e-05
  %v42 = vrsqrt.pop %v40
  %v43 = vrsqrt.pop %v41
  %v44 = vmul.f32 %v28, %v42
  %v45 = vmul.f32 %v29, %v43
  %v46 = vld [vmem:[%s1] sm:$0x1]
  %v48 = vlaneseq
  %v49 = vshrl.u32 %v48, 7
  %v50 = vsub.s32 0, %v49
  %v51 = vrot.slane %v46, %v50
  %v53 = vmul.f32 %v44, %v51
  %v54 = vmul.f32 %v45, %v51
  %v55 = vld [vmem:[%s2] sm:$0x1]
  %v57 = vlaneseq
  %v58 = vshrl.u32 %v57, 7
  %v59 = vsub.s32 0, %v58
  %v60 = vrot.slane %v55, %v59
  %v62 = vadd.f32 %v53, %v60
  %v63 = vadd.f32 %v54, %v60
  %v64 = vpack.c.bf16 %v63, %v62
  %v66 = vunpack.c.l.b16 %v64
  %v67 = vunpack.c.h.b16 %v64
  %v68 = vpack.c.b16 %v66, %v66
  %v69 = vpack.c.b16 %v67, %v67
  %vm72 = vcmask 519168
  %73 = vst.msk [vmem:[%s3] sm:$0xf] %vm72, %v68
  %74 = vst.msk [vmem:[%s3 + $0x4] sm:$0xf] %vm72, %v69
  // Predicated region
  $region14: #{clip_forward.26} parent=0 // pred_check
    _
  $region15: #{clip_forward.26} parent=0 // pred_check_branch
    %76 = sbr.rel (0) target = $region17
  $region16: #{clip_forward.26} parent=0 // pred_region
    _
  $region17: #{clip_forward.26} parent=0 // pred_fallthru
    _
  // Predicated region
  $region18: #{clip_forward.26} parent=0 // pred_check
    _
  $region19: #{clip_forward.26} parent=0 // pred_check_branch
    %78 = sbr.rel (0) target = $region21
  $region20: #{clip_forward.26} parent=0 // pred_region
    _
  $region21: #{clip_forward.26} parent=0 // pred_fallthru
    _

// kernel: clip_forward.29
$region0: #{clip_forward.29}
  #allocation0 [shape = 'u32[]', space=smem, size = 0x4, offset = 0x4, fixed_abs, tag = 'smem constant byte address 0x4 - core index']
  #allocation1 [shape = 'u32[144,128]{1,0:T(1,128)}', space=vmem, size = 0x12000, scoped, tag = 'internal scratch']
  #allocation2 [shape = 'f32[16,128]{1,0:T(8,128)}', space=vmem, size = 0x2000, scoped, tag = 'scratch operand']
  %s0 = inlined_call_operand.vmem [shape: bf16[16,128], index: 0, kind: input, shape index: {}]
  %s1 = inlined_call_operand.vmem [shape: bf16[128,128], index: 1, kind: input, shape index: {}]
  %s2 = inlined_call_operand.vmem [shape: f32[1,128], index: 2, kind: input, shape index: {}]
  %s3 = inlined_call_operand.vmem [shape: bf16[16,128], index: 3, kind: output, shape index: {}]
  %s4 = sld [smem:[#allocation0]]
  $region30: #{clip_forward.29} parent=0
    _
  %s6 = ssub.s32 1, %s4
  %s7 = scalar_select 0, %s6, %s4
  // Predicated region
  $region2: #{clip_forward.29} parent=0 // pred_check
    _
  $region3: #{clip_forward.29} parent=0 // pred_check_branch
    %9 = sbr.rel (0) target = $region5
  $region4: #{clip_forward.29} parent=0 // pred_region
    _
  $region5: #{clip_forward.29} parent=0 // pred_fallthru
    _
  // Predicated region
  $region6: #{clip_forward.29} parent=0 // pred_check
    _
  $region7: #{clip_forward.29} parent=0 // pred_check_branch
    %11 = sbr.rel (0) target = $region9
  $region8: #{clip_forward.29} parent=0 // pred_region
    _
  $region9: #{clip_forward.29} parent=0 // pred_fallthru
    _
  // Predicated region
  $region10: #{clip_forward.29} parent=0 // pred_check
    _
  $region11: #{clip_forward.29} parent=0 // pred_check_branch
    %13 = sbr.rel (0) target = $region13
  $region12: #{clip_forward.29} parent=0 // pred_region
    _
  $region13: #{clip_forward.29} parent=0 // pred_fallthru
    _
  %p15 = scmp.eq.s32.totalorder 0, 0
  // Predicated region
  $region14: #{clip_forward.29} parent=0 // pred_check
    %p16 = pneg %p15
  $region15: #{clip_forward.29} parent=0 // pred_check_branch
    %18 = sbr.rel (%p16) target = $region17
  $region16: #{clip_forward.29} parent=0 // pred_region
    %19 = vst [vmem:[#allocation2] sm:$0xff] 0.0
    %20 = vst [vmem:[#allocation2 + $0x8] sm:$0xff] 0.0
  $region17: #{clip_forward.29} parent=0 // pred_fallthru
    _
  %v21 = vld [vmem:[#allocation2] sm:$0xff]
  %v22 = vld [vmem:[#allocation2 + $0x8] sm:$0xff]
  %v23 = vld [vmem:[%s0] sm:$0xf]
  %v24 = vld [vmem:[%s0 + $0x4] sm:$0xf]
  %v25 = vld [vmem:[%s1] sm:$0xf]
  %v26 = vld [vmem:[%s1 + $0x4] sm:$0xf]
  %v27 = vld [vmem:[%s1 + $0x8] sm:$0xf]
  %v28 = vld [vmem:[%s1 + $0xc] sm:$0xf]
  %v29 = vld [vmem:[%s1 + $0x10] sm:$0xf]
  %v30 = vld [vmem:[%s1 + $0x14] sm:$0xf]
  %v31 = vld [vmem:[%s1 + $0x18] sm:$0xf]
  %v32 = vld [vmem:[%s1 + $0x1c] sm:$0xf]
  %v33 = vld [vmem:[%s1 + $0x20] sm:$0xf]
  %v34 = vld [vmem:[%s1 + $0x24] sm:$0xf]
  %v35 = vld [vmem:[%s1 + $0x28] sm:$0xf]
  %v36 = vld [vmem:[%s1 + $0x2c] sm:$0xf]
  %v37 = vld [vmem:[%s1 + $0x30] sm:$0xf]
  %v38 = vld [vmem:[%s1 + $0x34] sm:$0xf]
  %v39 = vld [vmem:[%s1 + $0x38] sm:$0xf]
  %v40 = vld [vmem:[%s1 + $0x3c] sm:$0xf]
  %v43 = vunpack.c.l.b16 %v23
  %v44 = vunpack.c.l.b16 %v24
  %v45 = vpack.c.b16 %v44, %v43
  %v63 = vunpack.c.l.b16 %v25
  %v64 = vunpack.c.l.b16 %v26
  %v65 = vunpack.c.l.b16 %v27
  %v66 = vunpack.c.l.b16 %v28
  %v67 = vunpack.c.l.b16 %v29
  %v68 = vunpack.c.l.b16 %v30
  %v69 = vunpack.c.l.b16 %v31
  %v70 = vunpack.c.l.b16 %v32
  %v71 = vunpack.c.l.b16 %v33
  %v72 = vunpack.c.l.b16 %v34
  %v73 = vunpack.c.l.b16 %v35
  %v74 = vunpack.c.l.b16 %v36
  %v75 = vunpack.c.l.b16 %v37
  %v76 = vunpack.c.l.b16 %v38
  %v77 = vunpack.c.l.b16 %v39
  %v78 = vunpack.c.l.b16 %v40
  %v79 = vpack.c.b16 %v64, %v63
  %v80 = vpack.c.b16 %v66, %v65
  %v81 = vpack.c.b16 %v68, %v67
  %v82 = vpack.c.b16 %v70, %v69
  %v83 = vpack.c.b16 %v72, %v71
  %v84 = vpack.c.b16 %v74, %v73
  %v85 = vpack.c.b16 %v76, %v75
  %v86 = vpack.c.b16 %v78, %v77
  %95 = vmatprep.subr.bf16.mxu0 0
  %96 = vmatpush1.bf16.msra.mxu0 %v79
  %97 = vmatprep.subr.bf16.mxu0 0
  %98 = vmatpush1.bf16.msra.mxu0 %v80
  %99 = vmatprep.subr.bf16.mxu0 0
  %100 = vmatpush1.bf16.msra.mxu0 %v81
  %101 = vmatprep.subr.bf16.mxu0 0
  %102 = vmatpush1.bf16.msra.mxu0 %v82
  %103 = vmatprep.subr.bf16.mxu0 0
  %104 = vmatpush1.bf16.msra.mxu0 %v83
  %105 = vmatprep.subr.bf16.mxu0 0
  %106 = vmatpush1.bf16.msra.mxu0 %v84
  %107 = vmatprep.subr.bf16.mxu0 0
  %108 = vmatpush1.bf16.msra.mxu0 %v85
  %109 = vmatprep.subr.bf16.mxu0 0
  %110 = vmatpush1.bf16.msra.mxu0 %v86
  %111 = vmatprep.subr.bf16.mxu0 0
  %112 = vmatpush1.bf16.msra.mxu0 0
  %113 = vmatprep.subr.bf16.mxu0 0
  %114 = vmatpush1.bf16.msra.mxu0 0
  %115 = vmatprep.subr.bf16.mxu0 0
  %116 = vmatpush1.bf16.msra.mxu0 0
  %117 = vmatprep.subr.bf16.mxu0 0
  %118 = vmatpush1.bf16.msra.mxu0 0
  %119 = vmatprep.subr.bf16.mxu0 0
  %120 = vmatpush1.bf16.msra.mxu0 0
  %121 = vmatprep.subr.bf16.mxu0 0
  %122 = vmatpush1.bf16.msra.mxu0 0
  %123 = vmatprep.subr.bf16.mxu0 0
  %124 = vmatpush1.bf16.msra.mxu0 0
  %125 = vmatprep.subr.bf16.mxu0 0
  %126 = vmatpush1.bf16.msra.mxu0 0
  %127 = vmatprep.mubr.bf16.mxu0 0
  %128 = vmatmul.mubr.bf16.gmra.mrb[0].mxu0 %v45
  %v129 = vpop.f32.mrb[0].mxu0
  %v130 = vadd.f32 0.0, %v129
  %v131 = vpop.f32.mrb[0].mxu0
  %v132 = vpop.f32.mrb[0].mxu0
  %v133 = vadd.f32 0.0, %v132
  %v134 = vpop.f32.mrb[0].mxu0
  %135 = vdwg.mxu0
  %v136 = vadd.f32 %v21, %v130
  %v137 = vadd.f32 %v22, %v133
  %138 = vst [vmem:[#allocation2] sm:$0xff] %v136
  %139 = vst [vmem:[#allocation2 + $0x8] sm:$0xff] %v137
  // Predicated region
  $region18: #{clip_forward.29} parent=0 // pred_check
    %p140 = pneg %p15
  $region19: #{clip_forward.29} parent=0 // pred_check_branch
    %142 = sbr.rel (%p140) target = $region21
  $region20: #{clip_forward.29} parent=0 // pred_region
    %v143 = vld [vmem:[#allocation2] sm:$0xff]
    %v144 = vld [vmem:[#allocation2 + $0x8] sm:$0xff]
    %v145 = vld [vmem:[%s2] sm:$0x1]
    %v147 = vlaneseq
    %v148 = vshrl.u32 %v147, 7
    %v149 = vsub.s32 0, %v148
    %v150 = vrot.slane %v145, %v149
    %v152 = vadd.f32 %v143, %v150
    %v153 = vadd.f32 %v144, %v150
    %v154 = vpack.c.bf16 %v153, %v152
    %v156 = vunpack.c.l.b16 %v154
    %v157 = vunpack.c.h.b16 %v154
    %v158 = vpack.c.b16 %v156, %v156
    %v159 = vpack.c.b16 %v157, %v157
    %162 = vst [vmem:[%s3] sm:$0xf] %v158
    %163 = vst [vmem:[%s3 + $0x4] sm:$0xf] %v159
  $region21: #{clip_forward.29} parent=0 // pred_fallthru
    _
  // Predicated region
  $region22: #{clip_forward.29} parent=0 // pred_check
    _
  $region23: #{clip_forward.29} parent=0 // pred_check_branch
    %165 = sbr.rel (0) target = $region25
  $region24: #{clip_forward.29} parent=0 // pred_region
    _
  $region25: #{clip_forward.29} parent=0 // pred_fallthru
    _
  // Predicated region
  $region26: #{clip_forward.29} parent=0 // pred_check
    _
  $region27: #{clip_forward.29} parent=0 // pred_check_branch
    %167 = sbr.rel (0) target = $region29
  $region28: #{clip_forward.29} parent=0 // pred_region
    _
  $region29: #{clip_forward.29} parent=0 // pred_fallthru
    _

// kernel: clip_forward.30
$region0: #{clip_forward.30}
  #allocation0 [shape = 'u32[]', space=smem, size = 0x4, offset = 0x4, fixed_abs, tag = 'smem constant byte address 0x4 - core index']
  #allocation1 [shape = 'u32[144,128]{1,0:T(1,128)}', space=vmem, size = 0x12000, scoped, tag = 'internal scratch']
  #allocation2 [shape = 'bf16[16,64]{1,0:T(16,128)(2,1)}', space=vmem, size = 0x1000, scoped, tag = 'scratch operand']
  %s0 = inlined_call_operand.vmem [shape: bf16[16,64], index: 0, kind: input, shape index: {}]
  %s1 = inlined_call_operand.vmem [shape: f32[1,64], index: 1, kind: input, shape index: {}]
  %s2 = inlined_call_operand.vmem [shape: f32[1,64], index: 2, kind: input, shape index: {}]
  %s3 = inlined_call_operand.vmem [shape: bf16[64,256], index: 3, kind: input, shape index: {}]
  %s4 = inlined_call_operand.vmem [shape: f32[1,256], index: 4, kind: input, shape index: {}]
  %s5 = inlined_call_operand.vmem [shape: bf16[16,256], index: 5, kind: output, shape index: {}]
  %s6 = sld [smem:[#allocation0]]
  $region34: #{clip_forward.30} parent=0
    _
  %s8 = ssub.s32 1, %s6
  %s9 = scalar_select 0, %s8, %s6
  // Predicated region
  $region2: #{clip_forward.30} parent=0 // pred_check
    _
  $region3: #{clip_forward.30} parent=0 // pred_check_branch
    %11 = sbr.rel (0) target = $region5
  $region4: #{clip_forward.30} parent=0 // pred_region
    _
  $region5: #{clip_forward.30} parent=0 // pred_fallthru
    _
  // Predicated region
  $region6: #{clip_forward.30} parent=0 // pred_check
    _
  $region7: #{clip_forward.30} parent=0 // pred_check_branch
    %13 = sbr.rel (0) target = $region9
  $region8: #{clip_forward.30} parent=0 // pred_region
    _
  $region9: #{clip_forward.30} parent=0 // pred_fallthru
    _
  // Predicated region
  $region10: #{clip_forward.30} parent=0 // pred_check
    _
  $region11: #{clip_forward.30} parent=0 // pred_check_branch
    %15 = sbr.rel (0) target = $region13
  $region12: #{clip_forward.30} parent=0 // pred_region
    _
  $region13: #{clip_forward.30} parent=0 // pred_fallthru
    _
  // Predicated region
  $region14: #{clip_forward.30} parent=0 // pred_check
    _
  $region15: #{clip_forward.30} parent=0 // pred_check_branch
    %17 = sbr.rel (0) target = $region17
  $region16: #{clip_forward.30} parent=0 // pred_region
    _
  $region17: #{clip_forward.30} parent=0 // pred_fallthru
    _
  // Predicated region
  $region18: #{clip_forward.30} parent=0 // pred_check
    _
  $region19: #{clip_forward.30} parent=0 // pred_check_branch
    %19 = sbr.rel (0) target = $region21
  $region20: #{clip_forward.30} parent=0 // pred_region
    _
  $region21: #{clip_forward.30} parent=0 // pred_fallthru
    _
  %p21 = scmp.eq.s32.totalorder 0, 0
  // Predicated region
  $region22: #{clip_forward.30} parent=0 // pred_check
    %p22 = pneg %p21
  $region23: #{clip_forward.30} parent=0 // pred_check_branch
    %24 = sbr.rel (%p22) target = $region25
  $region24: #{clip_forward.30} parent=0 // pred_region
    %v25 = vld [vmem:[%s0] sm:$0xf]
    %v26 = vld [vmem:[%s0 + $0x4] sm:$0xf]
    %v27 = vunpack.c.l.bf16 %v25
    %v28 = vunpack.c.l.bf16 %v26
    %vm29 = vcmask 523264
    %v30 = vsel %vm29, %v27, 0.0
    %31 = vadd.xlane.f32.xlu0 %v30
    %v32 = vpop.xlane.xlu0 %31
    %v33 = vsel %vm29, %v28, 0.0
    %34 = vadd.xlane.f32.xlu0 %v33
    %v35 = vpop.xlane.xlu0 %34
    %v36 = vrcp.pop 64.0
    %v37 = vmul.f32 %v32, %v36
    %v38 = vmul.f32 %v35, %v36
    %v39 = vsub.f32 %v27, %v37
    %v40 = vsub.f32 %v28, %v38
    %v41 = vmul.f32 %v39, %v39
    %v42 = vmul.f32 %v40, %v40
    %v43 = vsel %vm29, %v41, 0.0
    %44 = vadd.xlane.f32.xlu0 %v43
    %v45 = vpop.xlane.xlu0 %44
    %v46 = vsel %vm29, %v42, 0.0
    %47 = vadd.xlane.f32.xlu0 %v46
    %v48 = vpop.xlane.xlu0 %47
    %v49 = vmul.f32 %v45, %v36
    %v50 = vmul.f32 %v48, %v36
    %v51 = vadd.f32 %v49, 1e-05
    %v52 = vadd.f32 %v50, 1e-05
    %v53 = vrsqrt.pop %v51
    %v54 = vrsqrt.pop %v52
    %v55 = vmul.f32 %v39, %v53
    %v56 = vmul.f32 %v40, %v54
    %v57 = vld [vmem:[%s1] sm:$0x1]
    %v59 = vlaneseq
    %v60 = vshrl.u32 %v59, 7
    %v61 = vsub.s32 0, %v60
    %v62 = vrot.slane %v57, %v61
    %v64 = vmul.f32 %v55, %v62
    %v65 = vmul.f32 %v56, %v62
    %v66 = vld [vmem:[%s2] sm:$0x1]
    %v68 = vlaneseq
    %v69 = vshrl.u32 %v68, 7
    %v70 = vsub.s32 0, %v69
    %v71 = vrot.slane %v66, %v70
    %v73 = vadd.f32 %v64, %v71
    %v74 = vadd.f32 %v65, %v71
    %v75 = vpack.c.bf16 %v74, %v73
    %76 = vst.msk [vmem:[#allocation2] sm:$0xff] %vm29, %v75
  $region25: #{clip_forward.30} parent=0 // pred_fallthru
    _
  %v77 = vld [vmem:[#allocation2] sm:$0xff]
  %v78 = vld [vmem:[%s3] sm:$0xff]
  %v79 = vld [vmem:[%s3 + $0x8] sm:$0xff]
  %v80 = vld [vmem:[%s3 + $0x10] sm:$0xff]
  %v81 = vld [vmem:[%s3 + $0x18] sm:$0xff]
  %v82 = vld [vmem:[%s3 + $0x20] sm:$0xff]
  %v83 = vld [vmem:[%s3 + $0x28] sm:$0xff]
  %v84 = vld [vmem:[%s3 + $0x30] sm:$0xff]
  %v85 = vld [vmem:[%s3 + $0x38] sm:$0xff]
  %v86 = vld [vmem:[%s4] sm:$0x3]
  %v88 = vlaneseq
  %v89 = vshrl.u32 %v88, 7
  %v90 = vsub.s32 0, %v89
  %v91 = vrot.slane %v86, %v90
  %v92 = vlaneseq
  %v93 = vshrl.u32 %v92, 7
  %v94 = vsub.s32 1, %v93
  %v95 = vrot.slane %v86, %v94
  %v106 = vunpack.c.l.b16 %v78
  %v107 = vunpack.c.h.b16 %v78
  %v108 = vunpack.c.l.b16 %v79
  %v109 = vunpack.c.h.b16 %v79
  %v110 = vunpack.c.l.b16 %v80
  %v111 = vunpack.c.h.b16 %v80
  %v112 = vunpack.c.l.b16 %v81
  %v113 = vunpack.c.h.b16 %v81
  %v114 = vunpack.c.l.b16 %v82
  %v115 = vunpack.c.h.b16 %v82
  %v116 = vunpack.c.l.b16 %v83
  %v117 = vunpack.c.h.b16 %v83
  %v118 = vunpack.c.l.b16 %v84
  %v119 = vunpack.c.h.b16 %v84
  %v120 = vunpack.c.l.b16 %v85
  %v121 = vunpack.c.h.b16 %v85
  %v122 = vpack.c.b16 %v108, %v106
  %v123 = vpack.c.b16 %v109, %v107
  %v124 = vpack.c.b16 %v112, %v110
  %v125 = vpack.c.b16 %v113, %v111
  %v126 = vpack.c.b16 %v116, %v114
  %v127 = vpack.c.b16 %v117, %v115
  %v128 = vpack.c.b16 %v120, %v118
  %v129 = vpack.c.b16 %v121, %v119
  %vm138 = vcmask 523264
  %v140 = vsel %vm138, %v77, 0
  %142 = vmatprep.subr.bf16.mxu0 %v123
  %143 = vmatpush1.bf16.msra.mxu0 %v122
  %144 = vmatprep.subr.bf16.mxu0 %v125
  %145 = vmatpush1.bf16.msra.mxu0 %v124
  %146 = vmatprep.subr.bf16.mxu0 %v127
  %147 = vmatpush1.bf16.msra.mxu0 %v126
  %148 = vmatprep.subr.bf16.mxu0 %v129
  %149 = vmatpush1.bf16.msra.mxu0 %v128
  %150 = vmatprep.subr.bf16.mxu0 0
  %151 = vmatpush1.bf16.msra.mxu0 0
  %152 = vmatprep.subr.bf16.mxu0 0
  %153 = vmatpush1.bf16.msra.mxu0 0
  %154 = vmatprep.subr.bf16.mxu0 0
  %155 = vmatpush1.bf16.msra.mxu0 0
  %156 = vmatprep.subr.bf16.mxu0 0
  %157 = vmatpush1.bf16.msra.mxu0 0
  %158 = vmatprep.subr.bf16.mxu0 0
  %159 = vmatpush1.bf16.msra.mxu0 0
  %160 = vmatprep.subr.bf16.mxu0 0
  %161 = vmatpush1.bf16.msra.mxu0 0
  %162 = vmatprep.subr.bf16.mxu0 0
  %163 = vmatpush1.bf16.msra.mxu0 0
  %164 = vmatprep.subr.bf16.mxu0 0
  %165 = vmatpush1.bf16.msra.mxu0 0
  %166 = vmatprep.subr.bf16.mxu0 0
  %167 = vmatpush1.bf16.msra.mxu0 0
  %168 = vmatprep.subr.bf16.mxu0 0
  %169 = vmatpush1.bf16.msra.mxu0 0
  %170 = vmatprep.subr.bf16.mxu0 0
  %171 = vmatpush1.bf16.msra.mxu0 0
  %172 = vmatprep.subr.bf16.mxu0 0
  %173 = vmatpush1.bf16.msra.mxu0 0
  %174 = vmatprep.mubr.bf16.mxu0 0
  %175 = vmatmul.mubr.bf16.gmra.mrb[0].mxu0 %v140
  %v176 = vpop.f32.mrb[0].mxu0
  %v177 = vadd.f32 %v91, %v176
  %v178 = vpop.f32.mrb[0].mxu0
  %v179 = vadd.f32 %v95, %v178
  %v180 = vpop.f32.mrb[0].mxu0
  %v181 = vadd.f32 %v91, %v180
  %v182 = vpop.f32.mrb[0].mxu0
  %v183 = vadd.f32 %v95, %v182
  %184 = vdwg.mxu0
  %v185 = vmul.f32 %v177, 0.851
  %v186 = vmul.f32 %v179, 0.851
  %v187 = vmul.f32 %v181, 0.851
  %v188 = vmul.f32 %v183, 0.851
  %v189 = vtanh.pop %v185
  %v190 = vtanh.pop %v186
  %v191 = vtanh.pop %v187
  %v192 = vtanh.pop %v188
  %v193 = vadd.f32 %v189, 1.0
  %v194 = vadd.f32 %v190, 1.0
  %v195 = vadd.f32 %v191, 1.0
  %v196 = vadd.f32 %v192, 1.0
  %v197 = vmul.f32 %v193, 0.5
  %v198 = vmul.f32 %v194, 0.5
  %v199 = vmul.f32 %v195, 0.5
  %v200 = vmul.f32 %v196, 0.5
  %v201 = vmul.f32 %v177, %v197
  %v202 = vmul.f32 %v179, %v198
  %v203 = vmul.f32 %v181, %v199
  %v204 = vmul.f32 %v183, %v200
  %v205 = vpack.c.bf16 %v203, %v201
  %v206 = vpack.c.bf16 %v204, %v202
  %v209 = vunpack.c.l.b16 %v205
  %v210 = vunpack.c.l.b16 %v206
  %v211 = vunpack.c.h.b16 %v205
  %v212 = vunpack.c.h.b16 %v206
  %v213 = vpack.c.b16 %v210, %v209
  %v214 = vpack.c.b16 %v212, %v211
  %217 = vst [vmem:[%s5] sm:$0xff] %v213
  %218 = vst [vmem:[%s5 + $0x8] sm:$0xff] %v214
  // Predicated region
  $region26: #{clip_forward.30} parent=0 // pred_check
    _
  $region27: #{clip_forward.30} parent=0 // pred_check_branch
    %220 = sbr.rel (0) target = $region29
  $region28: #{clip_forward.30} parent=0 // pred_region
    _
  $region29: #{clip_forward.30} parent=0 // pred_fallthru
    _
  // Predicated region
  $region30: #{clip_forward.30} parent=0 // pred_check
    _
  $region31: #{clip_forward.30} parent=0 // pred_check_branch
    %222 = sbr.rel (0) target = $region33
  $region32: #{clip_forward.30} parent=0 // pred_region
    _
  $region33: #{clip_forward.30} parent=0 // pred_fallthru
    _

// kernel: clip_forward.31
$region0: #{clip_forward.31}
  #allocation0 [shape = 'u32[]', space=smem, size = 0x4, offset = 0x4, fixed_abs, tag = 'smem constant byte address 0x4 - core index']
  #allocation1 [shape = 'u32[144,128]{1,0:T(1,128)}', space=vmem, size = 0x12000, scoped, tag = 'internal scratch']
  #allocation2 [shape = 'f32[16,128]{1,0:T(8,128)}', space=vmem, size = 0x2000, scoped, tag = 'scratch operand']
  %s0 = inlined_call_operand.vmem [shape: bf16[16,256], index: 0, kind: input, shape index: {}]
  %s1 = inlined_call_operand.vmem [shape: bf16[256,128], index: 1, kind: input, shape index: {}]
  %s2 = inlined_call_operand.vmem [shape: f32[1,128], index: 2, kind: input, shape index: {}]
  %s3 = inlined_call_operand.vmem [shape: bf16[16,128], index: 3, kind: output, shape index: {}]
  %s4 = sld [smem:[#allocation0]]
  $region30: #{clip_forward.31} parent=0
    _
  %s6 = ssub.s32 1, %s4
  %s7 = scalar_select 0, %s6, %s4
  // Predicated region
  $region2: #{clip_forward.31} parent=0 // pred_check
    _
  $region3: #{clip_forward.31} parent=0 // pred_check_branch
    %9 = sbr.rel (0) target = $region5
  $region4: #{clip_forward.31} parent=0 // pred_region
    _
  $region5: #{clip_forward.31} parent=0 // pred_fallthru
    _
  // Predicated region
  $region6: #{clip_forward.31} parent=0 // pred_check
    _
  $region7: #{clip_forward.31} parent=0 // pred_check_branch
    %11 = sbr.rel (0) target = $region9
  $region8: #{clip_forward.31} parent=0 // pred_region
    _
  $region9: #{clip_forward.31} parent=0 // pred_fallthru
    _
  // Predicated region
  $region10: #{clip_forward.31} parent=0 // pred_check
    _
  $region11: #{clip_forward.31} parent=0 // pred_check_branch
    %13 = sbr.rel (0) target = $region13
  $region12: #{clip_forward.31} parent=0 // pred_region
    _
  $region13: #{clip_forward.31} parent=0 // pred_fallthru
    _
  %p15 = scmp.eq.s32.totalorder 0, 0
  // Predicated region
  $region14: #{clip_forward.31} parent=0 // pred_check
    %p16 = pneg %p15
  $region15: #{clip_forward.31} parent=0 // pred_check_branch
    %18 = sbr.rel (%p16) target = $region17
  $region16: #{clip_forward.31} parent=0 // pred_region
    %19 = vst [vmem:[#allocation2] sm:$0xff] 0.0
    %20 = vst [vmem:[#allocation2 + $0x8] sm:$0xff] 0.0
  $region17: #{clip_forward.31} parent=0 // pred_fallthru
    _
  %v21 = vld [vmem:[#allocation2] sm:$0xff]
  %v22 = vld [vmem:[#allocation2 + $0x8] sm:$0xff]
  %v23 = vld [vmem:[%s0] sm:$0xff]
  %v24 = vld [vmem:[%s0 + $0x8] sm:$0xff]
  %v25 = vld [vmem:[%s1] sm:$0xf]
  %v26 = vld [vmem:[%s1 + $0x4] sm:$0xf]
  %v27 = vld [vmem:[%s1 + $0x8] sm:$0xf]
  %v28 = vld [vmem:[%s1 + $0xc] sm:$0xf]
  %v29 = vld [vmem:[%s1 + $0x10] sm:$0xf]
  %v30 = vld [vmem:[%s1 + $0x14] sm:$0xf]
  %v31 = vld [vmem:[%s1 + $0x18] sm:$0xf]
  %v32 = vld [vmem:[%s1 + $0x1c] sm:$0xf]
  %v33 = vld [vmem:[%s1 + $0x20] sm:$0xf]
  %v34 = vld [vmem:[%s1 + $0x24] sm:$0xf]
  %v35 = vld [vmem:[%s1 + $0x28] sm:$0xf]
  %v36 = vld [vmem:[%s1 + $0x2c] sm:$0xf]
  %v37 = vld [vmem:[%s1 + $0x30] sm:$0xf]
  %v38 = vld [vmem:[%s1 + $0x34] sm:$0xf]
  %v39 = vld [vmem:[%s1 + $0x38] sm:$0xf]
  %v40 = vld [vmem:[%s1 + $0x3c] sm:$0xf]
  %v41 = vld [vmem:[%s1 + $0x40] sm:$0xf]
  %v42 = vld [vmem:[%s1 + $0x44] sm:$0xf]
  %v43 = vld [vmem:[%s1 + $0x48] sm:$0xf]
  %v44 = vld [vmem:[%s1 + $0x4c] sm:$0xf]
  %v45 = vld [vmem:[%s1 + $0x50] sm:$0xf]
  %v46 = vld [vmem:[%s1 + $0x54] sm:$0xf]
  %v47 = vld [vmem:[%s1 + $0x58] sm:$0xf]
  %v48 = vld [vmem:[%s1 + $0x5c] sm:$0xf]
  %v49 = vld [vmem:[%s1 + $0x60] sm:$0xf]
  %v50 = vld [vmem:[%s1 + $0x64] sm:$0xf]
  %v51 = vld [vmem:[%s1 + $0x68] sm:$0xf]
  %v52 = vld [vmem:[%s1 + $0x6c] sm:$0xf]
  %v53 = vld [vmem:[%s1 + $0x70] sm:$0xf]
  %v54 = vld [vmem:[%s1 + $0x74] sm:$0xf]
  %v55 = vld [vmem:[%s1 + $0x78] sm:$0xf]
  %v56 = vld [vmem:[%s1 + $0x7c] sm:$0xf]
  %v59 = vunpack.c.l.b16 %v23
  %v60 = vunpack.c.h.b16 %v23
  %v61 = vunpack.c.l.b16 %v24
  %v62 = vunpack.c.h.b16 %v24
  %v63 = vpack.c.b16 %v61, %v59
  %v64 = vpack.c.b16 %v62, %v60
  %v99 = vunpack.c.l.b16 %v25
  %v100 = vunpack.c.l.b16 %v26
  %v101 = vunpack.c.l.b16 %v27
  %v102 = vunpack.c.l.b16 %v28
  %v103 = vunpack.c.l.b16 %v29
  %v104 = vunpack.c.l.b16 %v30
  %v105 = vunpack.c.l.b16 %v31
  %v106 = vunpack.c.l.b16 %v32
  %v107 = vunpack.c.l.b16 %v33
  %v108 = vunpack.c.l.b16 %v34
  %v109 = vunpack.c.l.b16 %v35
  %v110 = vunpack.c.l.b16 %v36
  %v111 = vunpack.c.l.b16 %v37
  %v112 = vunpack.c.l.b16 %v38
  %v113 = vunpack.c.l.b16 %v39
  %v114 = vunpack.c.l.b16 %v40
  %v115 = vunpack.c.l.b16 %v41
  %v116 = vunpack.c.l.b16 %v42
  %v117 = vunpack.c.l.b16 %v43
  %v118 = vunpack.c.l.b16 %v44
  %v119 = vunpack.c.l.b16 %v45
  %v120 = vunpack.c.l.b16 %v46
  %v121 = vunpack.c.l.b16 %v47
  %v122 = vunpack.c.l.b16 %v48
  %v123 = vunpack.c.l.b16 %v49
  %v124 = vunpack.c.l.b16 %v50
  %v125 = vunpack.c.l.b16 %v51
  %v126 = vunpack.c.l.b16 %v52
  %v127 = vunpack.c.l.b16 %v53
  %v128 = vunpack.c.l.b16 %v54
  %v129 = vunpack.c.l.b16 %v55
  %v130 = vunpack.c.l.b16 %v56
  %v131 = vpack.c.b16 %v100, %v99
  %v132 = vpack.c.b16 %v102, %v101
  %v133 = vpack.c.b16 %v104, %v103
  %v134 = vpack.c.b16 %v106, %v105
  %v135 = vpack.c.b16 %v108, %v107
  %v136 = vpack.c.b16 %v110, %v109
  %v137 = vpack.c.b16 %v112, %v111
  %v138 = vpack.c.b16 %v114, %v113
  %v139 = vpack.c.b16 %v116, %v115
  %v140 = vpack.c.b16 %v118, %v117
  %v141 = vpack.c.b16 %v120, %v119
  %v142 = vpack.c.b16 %v122, %v121
  %v143 = vpack.c.b16 %v124, %v123
  %v144 = vpack.c.b16 %v126, %v125
  %v145 = vpack.c.b16 %v128, %v127
  %v146 = vpack.c.b16 %v130, %v129
  %163 = vmatprep.subr.bf16.mxu0 0
  %164 = vmatpush1.bf16.msra.mxu0 %v131
  %165 = vmatprep.subr.bf16.mxu0 0
  %166 = vmatpush1.bf16.msra.mxu0 %v132
  %167 = vmatprep.subr.bf16.mxu0 0
  %168 = vmatpush1.bf16.msra.mxu0 %v133
  %169 = vmatprep.subr.bf16.mxu0 0
  %170 = vmatpush1.bf16.msra.mxu0 %v134
  %171 = vmatprep.subr.bf16.mxu0 0
  %172 = vmatpush1.bf16.msra.mxu0 %v135
  %173 = vmatprep.subr.bf16.mxu0 0
  %174 = vmatpush1.bf16.msra.mxu0 %v136
  %175 = vmatprep.subr.bf16.mxu0 0
  %176 = vmatpush1.bf16.msra.mxu0 %v137
  %177 = vmatprep.subr.bf16.mxu0 0
  %178 = vmatpush1.bf16.msra.mxu0 %v138
  %179 = vmatprep.subr.bf16.mxu0 0
  %180 = vmatpush1.bf16.msra.mxu0 %v139
  %181 = vmatprep.subr.bf16.mxu0 0
  %182 = vmatpush1.bf16.msra.mxu0 %v140
  %183 = vmatprep.subr.bf16.mxu0 0
  %184 = vmatpush1.bf16.msra.mxu0 %v141
  %185 = vmatprep.subr.bf16.mxu0 0
  %186 = vmatpush1.bf16.msra.mxu0 %v142
  %187 = vmatprep.subr.bf16.mxu0 0
  %188 = vmatpush1.bf16.msra.mxu0 %v143
  %189 = vmatprep.subr.bf16.mxu0 0
  %190 = vmatpush1.bf16.msra.mxu0 %v144
  %191 = vmatprep.subr.bf16.mxu0 0
  %192 = vmatpush1.bf16.msra.mxu0 %v145
  %193 = vmatprep.subr.bf16.mxu0 0
  %194 = vmatpush1.bf16.msra.mxu0 %v146
  %195 = vmatprep.mubr.bf16.mxu0 %v64
  %196 = vmatmul.mubr.bf16.gmra.mrb[0].mxu0 %v63
  %v197 = vpop.f32.mrb[0].mxu0
  %v198 = vadd.f32 0.0, %v197
  %v199 = vpop.f32.mrb[0].mxu0
  %v200 = vpop.f32.mrb[0].mxu0
  %v201 = vadd.f32 0.0, %v200
  %v202 = vpop.f32.mrb[0].mxu0
  %203 = vdwg.mxu0
  %v204 = vadd.f32 %v21, %v198
  %v205 = vadd.f32 %v22, %v201
  %206 = vst [vmem:[#allocation2] sm:$0xff] %v204
  %207 = vst [vmem:[#allocation2 + $0x8] sm:$0xff] %v205
  // Predicated region
  $region18: #{clip_forward.31} parent=0 // pred_check
    %p208 = pneg %p15
  $region19: #{clip_forward.31} parent=0 // pred_check_branch
    %210 = sbr.rel (%p208) target = $region21
  $region20: #{clip_forward.31} parent=0 // pred_region
    %v211 = vld [vmem:[#allocation2] sm:$0xff]
    %v212 = vld [vmem:[#allocation2 + $0x8] sm:$0xff]
    %v213 = vld [vmem:[%s2] sm:$0x1]
    %v215 = vlaneseq
    %v216 = vshrl.u32 %v215, 7
    %v217 = vsub.s32 0, %v216
    %v218 = vrot.slane %v213, %v217
    %v220 = vadd.f32 %v211, %v218
    %v221 = vadd.f32 %v212, %v218
    %v222 = vpack.c.bf16 %v221, %v220
    %v224 = vunpack.c.l.b16 %v222
    %v225 = vunpack.c.h.b16 %v222
    %v226 = vpack.c.b16 %v224, %v224
    %v227 = vpack.c.b16 %v225, %v225
    %230 = vst [vmem:[%s3] sm:$0xf] %v226
    %231 = vst [vmem:[%s3 + $0x4] sm:$0xf] %v227
  $region21: #{clip_forward.31} parent=0 // pred_fallthru
    _
  // Predicated region
  $region22: #{clip_forward.31} parent=0 // pred_check
    _
  $region23: #{clip_forward.31} parent=0 // pred_check_branch
    %233 = sbr.rel (0) target = $region25
  $region24: #{clip_forward.31} parent=0 // pred_region
    _
  $region25: #{clip_forward.31} parent=0 // pred_fallthru
    _
  // Predicated region
  $region26: #{clip_forward.31} parent=0 // pred_check
    _
  $region27: #{clip_forward.31} parent=0 // pred_check_branch
    %235 = sbr.rel (0) target = $region29
  $region28: #{clip_forward.31} parent=0 // pred_region
    _
  $region29: #{clip_forward.31} parent=0 // pred_fallthru
    _

// kernel: clip_forward.37
$region0: #{clip_forward.37}
  #allocation0 [shape = 'u32[]', space=smem, size = 0x4, offset = 0x4, fixed_abs, tag = 'smem constant byte address 0x4 - core index']
  #allocation1 [shape = 'u32[144,128]{1,0:T(1,128)}', space=vmem, size = 0x12000, scoped, tag = 'internal scratch']
  #allocation2 [shape = 'bf16[8,64]{1,0:T(8,128)(2,1)}', space=vmem, size = 0x800, scoped, tag = 'scratch operand']
  %s0 = inlined_call_operand.vmem [shape: bf16[8,64], index: 0, kind: input, shape index: {}]
  %s1 = inlined_call_operand.vmem [shape: f32[1,64], index: 1, kind: input, shape index: {}]
  %s2 = inlined_call_operand.vmem [shape: f32[1,64], index: 2, kind: input, shape index: {}]
  %s3 = inlined_call_operand.vmem [shape: bf16[64,128], index: 3, kind: input, shape index: {}]
  %s4 = inlined_call_operand.vmem [shape: f32[1,128], index: 4, kind: input, shape index: {}]
  %s5 = inlined_call_operand.vmem [shape: f32[8,128], index: 5, kind: output, shape index: {}]
  %s6 = sld [smem:[#allocation0]]
  $region34: #{clip_forward.37} parent=0
    _
  %s8 = ssub.s32 1, %s6
  %s9 = scalar_select 0, %s8, %s6
  // Predicated region
  $region2: #{clip_forward.37} parent=0 // pred_check
    _
  $region3: #{clip_forward.37} parent=0 // pred_check_branch
    %11 = sbr.rel (0) target = $region5
  $region4: #{clip_forward.37} parent=0 // pred_region
    _
  $region5: #{clip_forward.37} parent=0 // pred_fallthru
    _
  // Predicated region
  $region6: #{clip_forward.37} parent=0 // pred_check
    _
  $region7: #{clip_forward.37} parent=0 // pred_check_branch
    %13 = sbr.rel (0) target = $region9
  $region8: #{clip_forward.37} parent=0 // pred_region
    _
  $region9: #{clip_forward.37} parent=0 // pred_fallthru
    _
  // Predicated region
  $region10: #{clip_forward.37} parent=0 // pred_check
    _
  $region11: #{clip_forward.37} parent=0 // pred_check_branch
    %15 = sbr.rel (0) target = $region13
  $region12: #{clip_forward.37} parent=0 // pred_region
    _
  $region13: #{clip_forward.37} parent=0 // pred_fallthru
    _
  // Predicated region
  $region14: #{clip_forward.37} parent=0 // pred_check
    _
  $region15: #{clip_forward.37} parent=0 // pred_check_branch
    %17 = sbr.rel (0) target = $region17
  $region16: #{clip_forward.37} parent=0 // pred_region
    _
  $region17: #{clip_forward.37} parent=0 // pred_fallthru
    _
  // Predicated region
  $region18: #{clip_forward.37} parent=0 // pred_check
    _
  $region19: #{clip_forward.37} parent=0 // pred_check_branch
    %19 = sbr.rel (0) target = $region21
  $region20: #{clip_forward.37} parent=0 // pred_region
    _
  $region21: #{clip_forward.37} parent=0 // pred_fallthru
    _
  %p21 = scmp.eq.s32.totalorder 0, 0
  // Predicated region
  $region22: #{clip_forward.37} parent=0 // pred_check
    %p22 = pneg %p21
  $region23: #{clip_forward.37} parent=0 // pred_check_branch
    %24 = sbr.rel (%p22) target = $region25
  $region24: #{clip_forward.37} parent=0 // pred_region
    %v25 = vld [vmem:[%s0] sm:$0xf]
    %v26 = vunpack.c.l.bf16 %v25
    %vm27 = vcmask 523264
    %v28 = vsel %vm27, %v26, 0.0
    %29 = vadd.xlane.f32.xlu0 %v28
    %v30 = vpop.xlane.xlu0 %29
    %v31 = vrcp.pop 64.0
    %v32 = vmul.f32 %v30, %v31
    %v33 = vsub.f32 %v26, %v32
    %v34 = vmul.f32 %v33, %v33
    %v35 = vsel %vm27, %v34, 0.0
    %36 = vadd.xlane.f32.xlu0 %v35
    %v37 = vpop.xlane.xlu0 %36
    %v38 = vmul.f32 %v37, %v31
    %v39 = vadd.f32 %v38, 1e-05
    %v40 = vrsqrt.pop %v39
    %v41 = vmul.f32 %v33, %v40
    %v42 = vld [vmem:[%s1] sm:$0x1]
    %v44 = vlaneseq
    %v45 = vshrl.u32 %v44, 7
    %v46 = vsub.s32 0, %v45
    %v47 = vrot.slane %v42, %v46
    %v49 = vmul.f32 %v41, %v47
    %v50 = vld [vmem:[%s2] sm:$0x1]
    %v52 = vlaneseq
    %v53 = vshrl.u32 %v52, 7
    %v54 = vsub.s32 0, %v53
    %v55 = vrot.slane %v50, %v54
    %v57 = vadd.f32 %v49, %v55
    %v58 = vpack.c.bf16 %v57, %v57
    %vm59 = vcmask 519168
    %60 = vst.msk [vmem:[#allocation2] sm:$0xf] %vm59, %v58
  $region25: #{clip_forward.37} parent=0 // pred_fallthru
    _
  %v61 = vld [vmem:[#allocation2] sm:$0xf]
  %v62 = vld [vmem:[%s3] sm:$0xf]
  %v63 = vld [vmem:[%s3 + $0x4] sm:$0xf]
  %v64 = vld [vmem:[%s3 + $0x8] sm:$0xf]
  %v65 = vld [vmem:[%s3 + $0xc] sm:$0xf]
  %v66 = vld [vmem:[%s3 + $0x10] sm:$0xf]
  %v67 = vld [vmem:[%s3 + $0x14] sm:$0xf]
  %v68 = vld [vmem:[%s3 + $0x18] sm:$0xf]
  %v69 = vld [vmem:[%s3 + $0x1c] sm:$0xf]
  %v70 = vld [vmem:[%s4] sm:$0x1]
  %v72 = vlaneseq
  %v73 = vshrl.u32 %v72, 7
  %v74 = vsub.s32 0, %v73
  %v75 = vrot.slane %v70, %v74
  %v85 = vunpack.c.l.b16 %v62
  %v86 = vunpack.c.l.b16 %v63
  %v87 = vunpack.c.l.b16 %v64
  %v88 = vunpack.c.l.b16 %v65
  %v89 = vunpack.c.l.b16 %v66
  %v90 = vunpack.c.l.b16 %v67
  %v91 = vunpack.c.l.b16 %v68
  %v92 = vunpack.c.l.b16 %v69
  %v93 = vpack.c.b16 %v86, %v85
  %v94 = vpack.c.b16 %v88, %v87
  %v95 = vpack.c.b16 %v90, %v89
  %v96 = vpack.c.b16 %v92, %v91
  %vm101 = vcmask 523264
  %v103 = vsel %vm101, %v61, 0
  %105 = vmatprep.subr.bf16.mxu0 0
  %106 = vmatpush1.bf16.msra.mxu0 %v93
  %107 = vmatprep.subr.bf16.mxu0 0
  %108 = vmatpush1.bf16.msra.mxu0 %v94
  %109 = vmatprep.subr.bf16.mxu0 0
  %110 = vmatpush1.bf16.msra.mxu0 %v95
  %111 = vmatprep.subr.bf16.mxu0 0
  %112 = vmatpush1.bf16.msra.mxu0 %v96
  %113 = vmatprep.subr.bf16.mxu0 0
  %114 = vmatpush1.bf16.msra.mxu0 0
  %115 = vmatprep.subr.bf16.mxu0 0
  %116 = vmatpush1.bf16.msra.mxu0 0
  %117 = vmatprep.subr.bf16.mxu0 0
  %118 = vmatpush1.bf16.msra.mxu0 0
  %119 = vmatprep.subr.bf16.mxu0 0
  %120 = vmatpush1.bf16.msra.mxu0 0
  %121 = vmatprep.subr.bf16.mxu0 0
  %122 = vmatpush1.bf16.msra.mxu0 0
  %123 = vmatprep.subr.bf16.mxu0 0
  %124 = vmatpush1.bf16.msra.mxu0 0
  %125 = vmatprep.subr.bf16.mxu0 0
  %126 = vmatpush1.bf16.msra.mxu0 0
  %127 = vmatprep.subr.bf16.mxu0 0
  %128 = vmatpush1.bf16.msra.mxu0 0
  %129 = vmatprep.subr.bf16.mxu0 0
  %130 = vmatpush1.bf16.msra.mxu0 0
  %131 = vmatprep.subr.bf16.mxu0 0
  %132 = vmatpush1.bf16.msra.mxu0 0
  %133 = vmatprep.subr.bf16.mxu0 0
  %134 = vmatpush1.bf16.msra.mxu0 0
  %135 = vmatprep.subr.bf16.mxu0 0
  %136 = vmatpush1.bf16.msra.mxu0 0
  %137 = vmatprep.mubr.bf16.mxu0 0
  %138 = vmatmul.mubr.bf16.gmra.mrb[0].mxu0 %v103
  %v139 = vpop.f32.mrb[0].mxu0
  %v140 = vadd.f32 %v75, %v139
  %v141 = vpop.f32.mrb[0].mxu0
  %v142 = vpop.f32.mrb[0].mxu0
  %v143 = vpop.f32.mrb[0].mxu0
  %144 = vdwg.mxu0
  %145 = vst [vmem:[%s5] sm:$0xff] %v140
  // Predicated region
  $region26: #{clip_forward.37} parent=0 // pred_check
    _
  $region27: #{clip_forward.37} parent=0 // pred_check_branch
    %147 = sbr.rel (0) target = $region29
  $region28: #{clip_forward.37} parent=0 // pred_region
    _
  $region29: #{clip_forward.37} parent=0 // pred_fallthru
    _
  // Predicated region
  $region30: #{clip_forward.37} parent=0 // pred_check
    _
  $region31: #{clip_forward.37} parent=0 // pred_check_branch
    %149 = sbr.rel (0) target = $region33
  $region32: #{clip_forward.37} parent=0 // pred_region
    _
  $region33: #{clip_forward.37} parent=0 // pred_fallthru
    _

// kernel: clip_forward.38
$region0: #{clip_forward.38}
  #allocation0 [shape = 'u32[]', space=smem, size = 0x4, offset = 0x4, fixed_abs, tag = 'smem constant byte address 0x4 - core index']
  #allocation1 [shape = 'u32[144,128]{1,0:T(1,128)}', space=vmem, size = 0x12000, scoped, tag = 'internal scratch']
  #allocation2 [shape = 'bf16[16,32]{1,0:T(16,128)(2,1)}', space=vmem, size = 0x1000, scoped, tag = 'scratch operand']
  %s0 = inlined_call_operand.vmem [shape: bf16[16,32], index: 0, kind: input, shape index: {}]
  %s1 = inlined_call_operand.vmem [shape: f32[1,32], index: 1, kind: input, shape index: {}]
  %s2 = inlined_call_operand.vmem [shape: f32[1,32], index: 2, kind: input, shape index: {}]
  %s3 = inlined_call_operand.vmem [shape: bf16[32,128], index: 3, kind: input, shape index: {}]
  %s4 = inlined_call_operand.vmem [shape: f32[1,128], index: 4, kind: input, shape index: {}]
  %s5 = inlined_call_operand.vmem [shape: bf16[16,128], index: 5, kind: output, shape index: {}]
  %s6 = sld [smem:[#allocation0]]
  $region34: #{clip_forward.38} parent=0
    _
  %s8 = ssub.s32 1, %s6
  %s9 = scalar_select 0, %s8, %s6
  // Predicated region
  $region2: #{clip_forward.38} parent=0 // pred_check
    _
  $region3: #{clip_forward.38} parent=0 // pred_check_branch
    %11 = sbr.rel (0) target = $region5
  $region4: #{clip_forward.38} parent=0 // pred_region
    _
  $region5: #{clip_forward.38} parent=0 // pred_fallthru
    _
  // Predicated region
  $region6: #{clip_forward.38} parent=0 // pred_check
    _
  $region7: #{clip_forward.38} parent=0 // pred_check_branch
    %13 = sbr.rel (0) target = $region9
  $region8: #{clip_forward.38} parent=0 // pred_region
    _
  $region9: #{clip_forward.38} parent=0 // pred_fallthru
    _
  // Predicated region
  $region10: #{clip_forward.38} parent=0 // pred_check
    _
  $region11: #{clip_forward.38} parent=0 // pred_check_branch
    %15 = sbr.rel (0) target = $region13
  $region12: #{clip_forward.38} parent=0 // pred_region
    _
  $region13: #{clip_forward.38} parent=0 // pred_fallthru
    _
  // Predicated region
  $region14: #{clip_forward.38} parent=0 // pred_check
    _
  $region15: #{clip_forward.38} parent=0 // pred_check_branch
    %17 = sbr.rel (0) target = $region17
  $region16: #{clip_forward.38} parent=0 // pred_region
    _
  $region17: #{clip_forward.38} parent=0 // pred_fallthru
    _
  // Predicated region
  $region18: #{clip_forward.38} parent=0 // pred_check
    _
  $region19: #{clip_forward.38} parent=0 // pred_check_branch
    %19 = sbr.rel (0) target = $region21
  $region20: #{clip_forward.38} parent=0 // pred_region
    _
  $region21: #{clip_forward.38} parent=0 // pred_fallthru
    _
  %p21 = scmp.eq.s32.totalorder 0, 0
  // Predicated region
  $region22: #{clip_forward.38} parent=0 // pred_check
    %p22 = pneg %p21
  $region23: #{clip_forward.38} parent=0 // pred_check_branch
    %24 = sbr.rel (%p22) target = $region25
  $region24: #{clip_forward.38} parent=0 // pred_region
    %v25 = vld [vmem:[%s0] sm:$0xf]
    %v26 = vld [vmem:[%s0 + $0x4] sm:$0xf]
    %v27 = vunpack.c.l.bf16 %v25
    %v28 = vunpack.c.l.bf16 %v26
    %vm29 = vcmask 261120
    %v30 = vsel %vm29, %v27, 0.0
    %31 = vadd.xlane.f32.xlu0 %v30
    %v32 = vpop.xlane.xlu0 %31
    %v33 = vsel %vm29, %v28, 0.0
    %34 = vadd.xlane.f32.xlu0 %v33
    %v35 = vpop.xlane.xlu0 %34
    %v36 = vrcp.pop 32.0
    %v37 = vmul.f32 %v32, %v36
    %v38 = vmul.f32 %v35, %v36
    %v39 = vsub.f32 %v27, %v37
    %v40 = vsub.f32 %v28, %v38
    %v41 = vmul.f32 %v39, %v39
    %v42 = vmul.f32 %v40, %v40
    %v43 = vsel %vm29, %v41, 0.0
    %44 = vadd.xlane.f32.xlu0 %v43
    %v45 = vpop.xlane.xlu0 %44
    %v46 = vsel %vm29, %v42, 0.0
    %47 = vadd.xlane.f32.xlu0 %v46
    %v48 = vpop.xlane.xlu0 %47
    %v49 = vmul.f32 %v45, %v36
    %v50 = vmul.f32 %v48, %v36
    %v51 = vadd.f32 %v49, 1e-05
    %v52 = vadd.f32 %v50, 1e-05
    %v53 = vrsqrt.pop %v51
    %v54 = vrsqrt.pop %v52
    %v55 = vmul.f32 %v39, %v53
    %v56 = vmul.f32 %v40, %v54
    %v57 = vld [vmem:[%s1] sm:$0x1]
    %v59 = vlaneseq
    %v60 = vshrl.u32 %v59, 7
    %v61 = vsub.s32 0, %v60
    %v62 = vrot.slane %v57, %v61
    %v64 = vmul.f32 %v55, %v62
    %v65 = vmul.f32 %v56, %v62
    %v66 = vld [vmem:[%s2] sm:$0x1]
    %v68 = vlaneseq
    %v69 = vshrl.u32 %v68, 7
    %v70 = vsub.s32 0, %v69
    %v71 = vrot.slane %v66, %v70
    %v73 = vadd.f32 %v64, %v71
    %v74 = vadd.f32 %v65, %v71
    %v75 = vpack.c.bf16 %v74, %v73
    %76 = vst.msk [vmem:[#allocation2] sm:$0xff] %vm29, %v75
  $region25: #{clip_forward.38} parent=0 // pred_fallthru
    _
  %v77 = vld [vmem:[#allocation2] sm:$0xff]
  %v78 = vld [vmem:[%s3] sm:$0xf]
  %v79 = vld [vmem:[%s3 + $0x4] sm:$0xf]
  %v80 = vld [vmem:[%s3 + $0x8] sm:$0xf]
  %v81 = vld [vmem:[%s3 + $0xc] sm:$0xf]
  %v82 = vld [vmem:[%s4] sm:$0x1]
  %v84 = vlaneseq
  %v85 = vshrl.u32 %v84, 7
  %v86 = vsub.s32 0, %v85
  %v87 = vrot.slane %v82, %v86
  %v93 = vunpack.c.l.b16 %v78
  %v94 = vunpack.c.l.b16 %v79
  %v95 = vunpack.c.l.b16 %v80
  %v96 = vunpack.c.l.b16 %v81
  %v97 = vpack.c.b16 %v94, %v93
  %v98 = vpack.c.b16 %v96, %v95
  %vm101 = vcmask 261120
  %v103 = vsel %vm101, %v77, 0
  %105 = vmatprep.subr.bf16.mxu0 0
  %106 = vmatpush1.bf16.msra.mxu0 %v97
  %107 = vmatprep.subr.bf16.mxu0 0
  %108 = vmatpush1.bf16.msra.mxu0 %v98
  %109 = vmatprep.subr.bf16.mxu0 0
  %110 = vmatpush1.bf16.msra.mxu0 0
  %111 = vmatprep.subr.bf16.mxu0 0
  %112 = vmatpush1.bf16.msra.mxu0 0
  %113 = vmatprep.subr.bf16.mxu0 0
  %114 = vmatpush1.bf16.msra.mxu0 0
  %115 = vmatprep.subr.bf16.mxu0 0
  %116 = vmatpush1.bf16.msra.mxu0 0
  %117 = vmatprep.subr.bf16.mxu0 0
  %118 = vmatpush1.bf16.msra.mxu0 0
  %119 = vmatprep.subr.bf16.mxu0 0
  %120 = vmatpush1.bf16.msra.mxu0 0
  %121 = vmatprep.subr.bf16.mxu0 0
  %122 = vmatpush1.bf16.msra.mxu0 0
  %123 = vmatprep.subr.bf16.mxu0 0
  %124 = vmatpush1.bf16.msra.mxu0 0
  %125 = vmatprep.subr.bf16.mxu0 0
  %126 = vmatpush1.bf16.msra.mxu0 0
  %127 = vmatprep.subr.bf16.mxu0 0
  %128 = vmatpush1.bf16.msra.mxu0 0
  %129 = vmatprep.subr.bf16.mxu0 0
  %130 = vmatpush1.bf16.msra.mxu0 0
  %131 = vmatprep.subr.bf16.mxu0 0
  %132 = vmatpush1.bf16.msra.mxu0 0
  %133 = vmatprep.subr.bf16.mxu0 0
  %134 = vmatpush1.bf16.msra.mxu0 0
  %135 = vmatprep.subr.bf16.mxu0 0
  %136 = vmatpush1.bf16.msra.mxu0 0
  %137 = vmatprep.mubr.bf16.mxu0 0
  %138 = vmatmul.mubr.bf16.gmra.mrb[0].mxu0 %v103
  %v139 = vpop.f32.mrb[0].mxu0
  %v140 = vadd.f32 %v87, %v139
  %v141 = vpop.f32.mrb[0].mxu0
  %v142 = vpop.f32.mrb[0].mxu0
  %v143 = vadd.f32 %v87, %v142
  %v144 = vpop.f32.mrb[0].mxu0
  %145 = vdwg.mxu0
  %v146 = vpack.c.bf16 %v143, %v140
  %v148 = vunpack.c.l.b16 %v146
  %v149 = vunpack.c.h.b16 %v146
  %v150 = vpack.c.b16 %v148, %v148
  %v151 = vpack.c.b16 %v149, %v149
  %154 = vst [vmem:[%s5] sm:$0xf] %v150
  %155 = vst [vmem:[%s5 + $0x4] sm:$0xf] %v151
  // Predicated region
  $region26: #{clip_forward.38} parent=0 // pred_check
    _
  $region27: #{clip_forward.38} parent=0 // pred_check_branch
    %157 = sbr.rel (0) target = $region29
  $region28: #{clip_forward.38} parent=0 // pred_region
    _
  $region29: #{clip_forward.38} parent=0 // pred_fallthru
    _
  // Predicated region
  $region30: #{clip_forward.38} parent=0 // pred_check
    _
  $region31: #{clip_forward.38} parent=0 // pred_check_branch
    %159 = sbr.rel (0) target = $region33
  $region32: #{clip_forward.38} parent=0 // pred_region
    _
  $region33: #{clip_forward.38} parent=0 // pred_fallthru
    _

// kernel: clip_forward.41
$region0: #{clip_forward.41}
  #allocation0 [shape = 'u32[]', space=smem, size = 0x4, offset = 0x4, fixed_abs, tag = 'smem constant byte address 0x4 - core index']
  #allocation1 [shape = 'u32[144,128]{1,0:T(1,128)}', space=vmem, size = 0x12000, scoped, tag = 'internal scratch']
  #allocation2 [shape = 'bf16[16,32]{1,0:T(16,128)(2,1)}', space=vmem, size = 0x1000, scoped, tag = 'scratch operand']
  %s0 = inlined_call_operand.vmem [shape: bf16[16,32], index: 0, kind: input, shape index: {}]
  %s1 = inlined_call_operand.vmem [shape: f32[1,32], index: 1, kind: input, shape index: {}]
  %s2 = inlined_call_operand.vmem [shape: f32[1,32], index: 2, kind: input, shape index: {}]
  %s3 = inlined_call_operand.vmem [shape: bf16[32,128], index: 3, kind: input, shape index: {}]
  %s4 = inlined_call_operand.vmem [shape: f32[1,128], index: 4, kind: input, shape index: {}]
  %s5 = inlined_call_operand.vmem [shape: bf16[16,128], index: 5, kind: output, shape index: {}]
  %s6 = sld [smem:[#allocation0]]
  $region34: #{clip_forward.41} parent=0
    _
  %s8 = ssub.s32 1, %s6
  %s9 = scalar_select 0, %s8, %s6
  // Predicated region
  $region2: #{clip_forward.41} parent=0 // pred_check
    _
  $region3: #{clip_forward.41} parent=0 // pred_check_branch
    %11 = sbr.rel (0) target = $region5
  $region4: #{clip_forward.41} parent=0 // pred_region
    _
  $region5: #{clip_forward.41} parent=0 // pred_fallthru
    _
  // Predicated region
  $region6: #{clip_forward.41} parent=0 // pred_check
    _
  $region7: #{clip_forward.41} parent=0 // pred_check_branch
    %13 = sbr.rel (0) target = $region9
  $region8: #{clip_forward.41} parent=0 // pred_region
    _
  $region9: #{clip_forward.41} parent=0 // pred_fallthru
    _
  // Predicated region
  $region10: #{clip_forward.41} parent=0 // pred_check
    _
  $region11: #{clip_forward.41} parent=0 // pred_check_branch
    %15 = sbr.rel (0) target = $region13
  $region12: #{clip_forward.41} parent=0 // pred_region
    _
  $region13: #{clip_forward.41} parent=0 // pred_fallthru
    _
  // Predicated region
  $region14: #{clip_forward.41} parent=0 // pred_check
    _
  $region15: #{clip_forward.41} parent=0 // pred_check_branch
    %17 = sbr.rel (0) target = $region17
  $region16: #{clip_forward.41} parent=0 // pred_region
    _
  $region17: #{clip_forward.41} parent=0 // pred_fallthru
    _
  // Predicated region
  $region18: #{clip_forward.41} parent=0 // pred_check
    _
  $region19: #{clip_forward.41} parent=0 // pred_check_branch
    %19 = sbr.rel (0) target = $region21
  $region20: #{clip_forward.41} parent=0 // pred_region
    _
  $region21: #{clip_forward.41} parent=0 // pred_fallthru
    _
  %p21 = scmp.eq.s32.totalorder 0, 0
  // Predicated region
  $region22: #{clip_forward.41} parent=0 // pred_check
    %p22 = pneg %p21
  $region23: #{clip_forward.41} parent=0 // pred_check_branch
    %24 = sbr.rel (%p22) target = $region25
  $region24: #{clip_forward.41} parent=0 // pred_region
    %v25 = vld [vmem:[%s0] sm:$0xf]
    %v26 = vld [vmem:[%s0 + $0x4] sm:$0xf]
    %v27 = vunpack.c.l.bf16 %v25
    %v28 = vunpack.c.l.bf16 %v26
    %vm29 = vcmask 261120
    %v30 = vsel %vm29, %v27, 0.0
    %31 = vadd.xlane.f32.xlu0 %v30
    %v32 = vpop.xlane.xlu0 %31
    %v33 = vsel %vm29, %v28, 0.0
    %34 = vadd.xlane.f32.xlu0 %v33
    %v35 = vpop.xlane.xlu0 %34
    %v36 = vrcp.pop 32.0
    %v37 = vmul.f32 %v32, %v36
    %v38 = vmul.f32 %v35, %v36
    %v39 = vsub.f32 %v27, %v37
    %v40 = vsub.f32 %v28, %v38
    %v41 = vmul.f32 %v39, %v39
    %v42 = vmul.f32 %v40, %v40
    %v43 = vsel %vm29, %v41, 0.0
    %44 = vadd.xlane.f32.xlu0 %v43
    %v45 = vpop.xlane.xlu0 %44
    %v46 = vsel %vm29, %v42, 0.0
    %47 = vadd.xlane.f32.xlu0 %v46
    %v48 = vpop.xlane.xlu0 %47
    %v49 = vmul.f32 %v45, %v36
    %v50 = vmul.f32 %v48, %v36
    %v51 = vadd.f32 %v49, 1e-05
    %v52 = vadd.f32 %v50, 1e-05
    %v53 = vrsqrt.pop %v51
    %v54 = vrsqrt.pop %v52
    %v55 = vmul.f32 %v39, %v53
    %v56 = vmul.f32 %v40, %v54
    %v57 = vld [vmem:[%s1] sm:$0x1]
    %v59 = vlaneseq
    %v60 = vshrl.u32 %v59, 7
    %v61 = vsub.s32 0, %v60
    %v62 = vrot.slane %v57, %v61
    %v64 = vmul.f32 %v55, %v62
    %v65 = vmul.f32 %v56, %v62
    %v66 = vld [vmem:[%s2] sm:$0x1]
    %v68 = vlaneseq
    %v69 = vshrl.u32 %v68, 7
    %v70 = vsub.s32 0, %v69
    %v71 = vrot.slane %v66, %v70
    %v73 = vadd.f32 %v64, %v71
    %v74 = vadd.f32 %v65, %v71
    %v75 = vpack.c.bf16 %v74, %v73
    %76 = vst.msk [vmem:[#allocation2] sm:$0xff] %vm29, %v75
  $region25: #{clip_forward.41} parent=0 // pred_fallthru
    _
  %v77 = vld [vmem:[#allocation2] sm:$0xff]
  %v78 = vld [vmem:[%s3] sm:$0xf]
  %v79 = vld [vmem:[%s3 + $0x4] sm:$0xf]
  %v80 = vld [vmem:[%s3 + $0x8] sm:$0xf]
  %v81 = vld [vmem:[%s3 + $0xc] sm:$0xf]
  %v82 = vld [vmem:[%s4] sm:$0x1]
  %v84 = vlaneseq
  %v85 = vshrl.u32 %v84, 7
  %v86 = vsub.s32 0, %v85
  %v87 = vrot.slane %v82, %v86
  %v93 = vunpack.c.l.b16 %v78
  %v94 = vunpack.c.l.b16 %v79
  %v95 = vunpack.c.l.b16 %v80
  %v96 = vunpack.c.l.b16 %v81
  %v97 = vpack.c.b16 %v94, %v93
  %v98 = vpack.c.b16 %v96, %v95
  %vm101 = vcmask 261120
  %v103 = vsel %vm101, %v77, 0
  %105 = vmatprep.subr.bf16.mxu0 0
  %106 = vmatpush1.bf16.msra.mxu0 %v97
  %107 = vmatprep.subr.bf16.mxu0 0
  %108 = vmatpush1.bf16.msra.mxu0 %v98
  %109 = vmatprep.subr.bf16.mxu0 0
  %110 = vmatpush1.bf16.msra.mxu0 0
  %111 = vmatprep.subr.bf16.mxu0 0
  %112 = vmatpush1.bf16.msra.mxu0 0
  %113 = vmatprep.subr.bf16.mxu0 0
  %114 = vmatpush1.bf16.msra.mxu0 0
  %115 = vmatprep.subr.bf16.mxu0 0
  %116 = vmatpush1.bf16.msra.mxu0 0
  %117 = vmatprep.subr.bf16.mxu0 0
  %118 = vmatpush1.bf16.msra.mxu0 0
  %119 = vmatprep.subr.bf16.mxu0 0
  %120 = vmatpush1.bf16.msra.mxu0 0
  %121 = vmatprep.subr.bf16.mxu0 0
  %122 = vmatpush1.bf16.msra.mxu0 0
  %123 = vmatprep.subr.bf16.mxu0 0
  %124 = vmatpush1.bf16.msra.mxu0 0
  %125 = vmatprep.subr.bf16.mxu0 0
  %126 = vmatpush1.bf16.msra.mxu0 0
  %127 = vmatprep.subr.bf16.mxu0 0
  %128 = vmatpush1.bf16.msra.mxu0 0
  %129 = vmatprep.subr.bf16.mxu0 0
  %130 = vmatpush1.bf16.msra.mxu0 0
  %131 = vmatprep.subr.bf16.mxu0 0
  %132 = vmatpush1.bf16.msra.mxu0 0
  %133 = vmatprep.subr.bf16.mxu0 0
  %134 = vmatpush1.bf16.msra.mxu0 0
  %135 = vmatprep.subr.bf16.mxu0 0
  %136 = vmatpush1.bf16.msra.mxu0 0
  %137 = vmatprep.mubr.bf16.mxu0 0
  %138 = vmatmul.mubr.bf16.gmra.mrb[0].mxu0 %v103
  %v139 = vpop.f32.mrb[0].mxu0
  %v140 = vadd.f32 %v87, %v139
  %v141 = vpop.f32.mrb[0].mxu0
  %v142 = vpop.f32.mrb[0].mxu0
  %v143 = vadd.f32 %v87, %v142
  %v144 = vpop.f32.mrb[0].mxu0
  %145 = vdwg.mxu0
  %v146 = vmul.f32 %v140, 0.851
  %v147 = vmul.f32 %v143, 0.851
  %v148 = vtanh.pop %v146
  %v149 = vtanh.pop %v147
  %v150 = vadd.f32 %v148, 1.0
  %v151 = vadd.f32 %v149, 1.0
  %v152 = vmul.f32 %v150, 0.5
  %v153 = vmul.f32 %v151, 0.5
  %v154 = vmul.f32 %v140, %v152
  %v155 = vmul.f32 %v143, %v153
  %v156 = vpack.c.bf16 %v155, %v154
  %v158 = vunpack.c.l.b16 %v156
  %v159 = vunpack.c.h.b16 %v156
  %v160 = vpack.c.b16 %v158, %v158
  %v161 = vpack.c.b16 %v159, %v159
  %164 = vst [vmem:[%s5] sm:$0xf] %v160
  %165 = vst [vmem:[%s5 + $0x4] sm:$0xf] %v161
  // Predicated region
  $region26: #{clip_forward.41} parent=0 // pred_check
    _
  $region27: #{clip_forward.41} parent=0 // pred_check_branch
    %167 = sbr.rel (0) target = $region29
  $region28: #{clip_forward.41} parent=0 // pred_region
    _
  $region29: #{clip_forward.41} parent=0 // pred_fallthru
    _
  // Predicated region
  $region30: #{clip_forward.41} parent=0 // pred_check
    _
  $region31: #{clip_forward.41} parent=0 // pred_check_branch
    %169 = sbr.rel (0) target = $region33
  $region32: #{clip_forward.41} parent=0 // pred_region
    _
  $region33: #{clip_forward.41} parent=0 // pred_fallthru
    _

// kernel: clip_forward.39
$region0: #{clip_forward.39}
  #allocation0 [shape = 'u32[]', space=smem, size = 0x4, offset = 0x4, fixed_abs, tag = 'smem constant byte address 0x4 - core index']
  #allocation1 [shape = 'u32[144,128]{1,0:T(1,128)}', space=vmem, size = 0x12000, scoped, tag = 'internal scratch']
  %s0 = inlined_call_operand.vmem [shape: bf16[2,8,32], index: 0, kind: input, shape index: {}]
  %s1 = inlined_call_operand.vmem [shape: bf16[2,8,32], index: 1, kind: input, shape index: {}]
  %s2 = inlined_call_operand.vmem [shape: bf16[2,8,32], index: 2, kind: input, shape index: {}]
  %s3 = inlined_call_operand.vmem [shape: f32[8,8], index: 3, kind: input, shape index: {}]
  %s4 = inlined_call_operand.vmem [shape: bf16[2,8,32], index: 4, kind: output, shape index: {}]
  %s5 = sld [smem:[#allocation0]]
  $region49: #{clip_forward.39} parent=0
    _
  %s7 = ssub.s32 1, %s5
  %s8 = scalar_select 0, %s7, %s5
  loop: start=0, step=1, limit=4
  $region2: #{clip_forward.39} parent=0 // loop_pre_header
    _
  $region3: #{clip_forward.39} parent=0 // loop_header
    %s10 = sphi 0, %s14
    %p11 = scmp.ge.s32.totalorder %s10, 4
    %s17 = sphi 0, %s29
    %s18 = sphi 0, %s25
    %s19 = sphi 0, %s17
    %s20 = sphi 0, %s18
    %s21 = sphi 0, %s19
    %s22 = sphi 0, %s20
    %s34 = sphi 0, %s36
    %s37 = sphi 0, %s34
    %s38 = sphi 0, %s37
    %s54 = sphi 0, %s38
    %s62 = sphi 0, %s64
    %s65 = sphi 0, %s62
    %s66 = sphi 0, %s65
    %s82 = sphi 0, %s66
    %s90 = sphi 0, %s92
    %s93 = sphi 0, %s90
    %s94 = sphi 0, %s93
    %s110 = sphi 0, %s94
    %s114 = sphi 0, %s114
    %s116 = sphi 0, %s114
    %s117 = sphi 0, %s116
    %s131 = sphi 0, %s117
    %s139 = sphi 0, %s141
    %s142 = sphi 0, %s139
    %s143 = sphi 0, %s142
    %s159 = sphi 0, %s143
  $region4: #{clip_forward.39} parent=0 // loop_header_branch
    %13 = sbr.rel (%p11) target = $region8
  $region5: #{clip_forward.39} parent=0 // loop_body
    %s15 = ssub.s32 %s10, 1
    %s16 = ssub.s32 %s10, 2
    %s23 = sadd.s32 1, %s18
    %p24 = scmp.ge.s32.totalorder %s23, 1
    %s25 = scalar_select %p24, 0, %s23
    %s26 = sadd.s32 1, %s17
    %s27 = scalar_select %p24, %s26, %s17
    %p28 = scmp.ge.s32.totalorder %s27, 2
    %s29 = scalar_select %p28, 0, %s27
    %s30 = ssub.s32 %s17, %s29
    %s31 = ssub.s32 %s18, %s25
    %s32 = sor.u32 %s30, %s31
    %p33 = scmp.eq.s32.totalorder %s32, 0
    %s35 = sadd.s32 %s34, 1
    %s36 = scalar_select %p33, %s34, %s35
    %p39 = pneg %p33
    %p40 = scmp.eq.s32.totalorder %s10, 1
    %p41 = por %p39, %p40
    %p42 = scmp.ne.s32.totalorder %s34, %s37
    %p43 = scmp.eq.s32.totalorder %s10, 0
    %p44 = por %p42, %p43
    %p45 = scmp.ne.s32.totalorder %s34, %s37
    %p46 = scmp.eq.s32.totalorder %s15, 1
    %p47 = por %p45, %p46
    %p48 = scmp.ne.s32.totalorder %s37, %s38
    %p49 = scmp.eq.s32.totalorder %s15, 0
    %p50 = por %p48, %p49
    %p51 = scmp.ne.s32.totalorder %s37, %s38
    %p52 = scmp.eq.s32.totalorder %s16, 1
    %p53 = por %p51, %p52
    %p55 = scmp.ne.s32.totalorder %s38, %s54
    %p56 = scmp.eq.s32.totalorder %s16, 0
    %p57 = por %p55, %p56
    %s58 = ssub.s32 %s17, %s29
    %s59 = ssub.s32 %s18, %s25
    %s60 = sor.u32 %s58, %s59
    %p61 = scmp.eq.s32.totalorder %s60, 0
    %s63 = sadd.s32 %s62, 1
    %s64 = scalar_select %p61, %s62, %s63
    %p67 = pneg %p61
    %p68 = scmp.eq.s32.totalorder %s10, 1
    %p69 = por %p67, %p68
    %p70 = scmp.ne.s32.totalorder %s62, %s65
    %p71 = scmp.eq.s32.totalorder %s10, 0
    %p72 = por %p70, %p71
    %p73 = scmp.ne.s32.totalorder %s62, %s65
    %p74 = scmp.eq.s32.totalorder %s15, 1
    %p75 = por %p73, %p74
    %p76 = scmp.ne.s32.totalorder %s65, %s66
    %p77 = scmp.eq.s32.totalorder %s15, 0
    %p78 = por %p76, %p77
    %p79 = scmp.ne.s32.totalorder %s65, %s66
    %p80 = scmp.eq.s32.totalorder %s16, 1
    %p81 = por %p79, %p80
    %p83 = scmp.ne.s32.totalorder %s66, %s82
    %p84 = scmp.eq.s32.totalorder %s16, 0
    %p85 = por %p83, %p84
    %s86 = ssub.s32 %s17, %s29
    %s87 = ssub.s32 %s18, %s25
    %s88 = sor.u32 %s86, %s87
    %p89 = scmp.eq.s32.totalorder %s88, 0
    %s91 = sadd.s32 %s90, 1
    %s92 = scalar_select %p89, %s90, %s91
    %p95 = pneg %p89
    %p96 = scmp.eq.s32.totalorder %s10, 1
    %p97 = por %p95, %p96
    %p98 = scmp.ne.s32.totalorder %s90, %s93
    %p99 = scmp.eq.s32.totalorder %s10, 0
    %p100 = por %p98, %p99
    %p101 = scmp.ne.s32.totalorder %s90, %s93
    %p102 = scmp.eq.s32.totalorder %s15, 1
    %p103 = por %p101, %p102
    %p104 = scmp.ne.s32.totalorder %s93, %s94
    %p105 = scmp.eq.s32.totalorder %s15, 0
    %p106 = por %p104, %p105
    %p107 = scmp.ne.s32.totalorder %s93, %s94
    %p108 = scmp.eq.s32.totalorder %s16, 1
    %p109 = por %p107, %p108
    %p111 = scmp.ne.s32.totalorder %s94, %s110
    %p112 = scmp.eq.s32.totalorder %s16, 0
    %p113 = por %p111, %p112
    %s115 = sadd.s32 %s114, 1
    %p118 = scmp.eq.s32.totalorder %s10, 1
    %p119 = scmp.ne.s32.totalorder %s114, %s116
    %p120 = scmp.eq.s32.totalorder %s10, 0
    %p121 = por %p119, %p120
    %p122 = scmp.ne.s32.totalorder %s114, %s116
    %p123 = scmp.eq.s32.totalorder %s15, 1
    %p124 = por %p122, %p123
    %p125 = scmp.ne.s32.totalorder %s116, %s117
    %p126 = scmp.eq.s32.totalorder %s15, 0
    %p127 = por %p125, %p126
    %p128 = scmp.ne.s32.totalorder %s116, %s117
    %p129 = scmp.eq.s32.totalorder %s16, 1
    %p130 = por %p128, %p129
    %p132 = scmp.ne.s32.totalorder %s117, %s131
    %p133 = scmp.eq.s32.totalorder %s16, 0
    %p134 = por %p132, %p133
    %s135 = ssub.s32 %s17, %s29
    %s136 = ssub.s32 %s18, %s25
    %s137 = sor.u32 %s135, %s136
    %p138 = scmp.eq.s32.totalorder %s137, 0
    %s140 = sadd.s32 %s139, 1
    %s141 = scalar_select %p138, %s139, %s140
    %p144 = pneg %p138
    %p145 = scmp.eq.s32.totalorder %s10, 1
    %p146 = por %p144, %p145
    %p147 = scmp.ne.s32.totalorder %s139, %s142
    %p148 = scmp.eq.s32.totalorder %s10, 0
    %p149 = por %p147, %p148
    %p150 = scmp.ne.s32.totalorder %s139, %s142
    %p151 = scmp.eq.s32.totalorder %s15, 1
    %p152 = por %p150, %p151
    %p153 = scmp.ne.s32.totalorder %s142, %s143
    %p154 = scmp.eq.s32.totalorder %s15, 0
    %p155 = por %p153, %p154
    %p156 = scmp.ne.s32.totalorder %s142, %s143
    %p157 = scmp.eq.s32.totalorder %s16, 1
    %p158 = por %p156, %p157
    %p160 = scmp.ne.s32.totalorder %s143, %s159
    %p161 = scmp.eq.s32.totalorder %s16, 0
    %p162 = por %p160, %p161
    %p163 = scmp.le.s32.totalorder 1, %s10
    %p164 = scmp.lt.s32.totalorder %s10, 3
    %p165 = pnand %p163, %p164
    %p166 = pneg %p165
    // Predicated region
    $region9: #{clip_forward.39} parent=5 // pred_check
      _
    $region10: #{clip_forward.39} parent=5 // pred_check_branch
      %168 = sbr.rel (%p165) target = $region12
    $region11: #{clip_forward.39} parent=5 // pred_region
      %s169 = ssub.s32 %s10, 1
      // Predicated region
      $region13: #{clip_forward.39} parent=11 // pred_check
        %p170 = pneg %p127
      $region14: #{clip_forward.39} parent=11 // pred_check_branch
        %172 = sbr.rel (%p170) target = $region16
      $region15: #{clip_forward.39} parent=11 // pred_region
        _
      $region16: #{clip_forward.39} parent=11 // pred_fallthru
        _
    $region12: #{clip_forward.39} parent=5 // pred_fallthru
      _
    %p173 = scmp.lt.s32.totalorder %s10, 2
    // Predicated region
    $region17: #{clip_forward.39} parent=5 // pred_check
      %p174 = pneg %p173
    $region18: #{clip_forward.39} parent=5 // pred_check_branch
      %176 = sbr.rel (%p174) target = $region20
    $region19: #{clip_forward.39} parent=5 // pred_region
      // Predicated region
      $region21: #{clip_forward.39} parent=19 // pred_check
        %p177 = pneg %p44
      $region22: #{clip_forward.39} parent=19 // pred_check_branch
        %179 = sbr.rel (%p177) target = $region24
      $region23: #{clip_forward.39} parent=19 // pred_region
        %p180 = scmp.lt.s32.totalorder %s17, 1
        %s181 = scalar_select %p180, %s17, 1
        %p182 = scmp.lt.s32.totalorder %s18, 0
        %s183 = scalar_select %p182, %s18, 0
        %s184 = sadd.s32 %s183, %s181
        %s185 = smul.addr %s184, 4
        %s186 = scalar_lea.vmem %s0, %s185
      $region24: #{clip_forward.39} parent=19 // pred_fallthru
        _
      // Predicated region
      $region25: #{clip_forward.39} parent=19 // pred_check
        %p187 = pneg %p72
      $region26: #{clip_forward.39} parent=19 // pred_check_branch
        %189 = sbr.rel (%p187) target = $region28
      $region27: #{clip_forward.39} parent=19 // pred_region
        %p190 = scmp.lt.s32.totalorder %s17, 1
        %s191 = scalar_select %p190, %s17, 1
        %p192 = scmp.lt.s32.totalorder %s18, 0
        %s193 = scalar_select %p192, %s18, 0
        %s194 = sadd.s32 %s193, %s191
        %s195 = smul.addr %s194, 4
        %s196 = scalar_lea.vmem %s1, %s195
      $region28: #{clip_forward.39} parent=19 // pred_fallthru
        _
      // Predicated region
      $region29: #{clip_forward.39} parent=19 // pred_check
        %p197 = pneg %p100
      $region30: #{clip_forward.39} parent=19 // pred_check_branch
        %199 = sbr.rel (%p197) target = $region32
      $region31: #{clip_forward.39} parent=19 // pred_region
        %p200 = scmp.lt.s32.totalorder %s17, 1
        %s201 = scalar_select %p200, %s17, 1
        %p202 = scmp.lt.s32.totalorder %s18, 0
        %s203 = scalar_select %p202, %s18, 0
        %s204 = sadd.s32 %s203, %s201
        %s205 = smul.addr %s204, 4
        %s206 = scalar_lea.vmem %s2, %s205
      $region32: #{clip_forward.39} parent=19 // pred_fallthru
        _
    $region20: #{clip_forward.39} parent=5 // pred_fallthru
      _
    %p207 = scmp.le.s32.totalorder 1, %s10
    %p208 = scmp.lt.s32.totalorder %s10, 3
    %p209 = pnand %p207, %p208
    %p210 = pneg %p209
    // Predicated region
    $region33: #{clip_forward.39} parent=5 // pred_check
      _
    $region34: #{clip_forward.39} parent=5 // pred_check_branch
      %212 = sbr.rel (%p209) target = $region36
    $region35: #{clip_forward.39} parent=5 // pred_region
      %s213 = ssub.s32 %s10, 1
      %p214 = scmp.lt.s32.totalorder %s19, 1
      %s215 = scalar_select %p214, %s19, 1
      %p216 = scmp.lt.s32.totalorder %s20, 0
      %s217 = scalar_select %p216, %s20, 0
      %s218 = sadd.s32 %s217, %s215
      %s219 = smul.addr %s218, 4
      %s220 = scalar_lea.vmem %s0, %s219
      %p221 = pneg %p50
      %p222 = pneg %p47
      %p223 = scmp.lt.s32.totalorder %s19, 1
      %s224 = scalar_select %p223, %s19, 1
      %p225 = scmp.lt.s32.totalorder %s20, 0
      %s226 = scalar_select %p225, %s20, 0
      %s227 = sadd.s32 %s226, %s224
      %s228 = smul.addr %s227, 4
      %s229 = scalar_lea.vmem %s1, %s228
      %p230 = pneg %p78
      %p231 = pneg %p75
      %p232 = scmp.lt.s32.totalorder %s19, 1
      %s233 = scalar_select %p232, %s19, 1
      %p234 = scmp.lt.s32.totalorder %s20, 0
      %s235 = scalar_select %p234, %s20, 0
      %s236 = sadd.s32 %s235, %s233
      %s237 = smul.addr %s236, 4
      %s238 = scalar_lea.vmem %s2, %s237
      %p239 = pneg %p106
      %p240 = pneg %p103
      %p241 = pneg %p127
      %p242 = pneg %p124
      %p243 = pneg %p155
      %p244 = pneg %p152
      %p245 = scmp.lt.s32.totalorder %s19, 1
      %s246 = scalar_select %p245, %s19, 1
      %p247 = scmp.lt.s32.totalorder %s20, 0
      %s248 = scalar_select %p247, %s20, 0
      %s249 = sadd.s32 %s248, %s246
      %s250 = smul.addr %s249, 4
      %s251 = scalar_lea.vmem %s4, %s250
      %p252 = scmp.lt.s32.totalorder %s19, 1
      %s253 = scalar_select %p252, %s19, 1
      %p254 = scmp.lt.s32.totalorder %s20, 0
      %s255 = scalar_select %p254, %s20, 0
      %s256 = sadd.s32 %s255, %s253
      %s257 = smul.addr %s256, 4
      %s258 = scalar_lea.vmem %s0, %s257
      %p259 = scmp.lt.s32.totalorder %s19, 1
      %s260 = scalar_select %p259, %s19, 1
      %p261 = scmp.lt.s32.totalorder %s20, 0
      %s262 = scalar_select %p261, %s20, 0
      %s263 = sadd.s32 %s262, %s260
      %s264 = smul.addr %s263, 4
      %s265 = scalar_lea.vmem %s1, %s264
      %p266 = scmp.lt.s32.totalorder %s19, 1
      %s267 = scalar_select %p266, %s19, 1
      %p268 = scmp.lt.s32.totalorder %s20, 0
      %s269 = scalar_select %p268, %s20, 0
      %s270 = sadd.s32 %s269, %s267
      %s271 = smul.addr %s270, 4
      %s272 = scalar_lea.vmem %s2, %s271
      %p273 = scmp.lt.s32.totalorder %s19, 1
      %s274 = scalar_select %p273, %s19, 1
      %p275 = scmp.lt.s32.totalorder %s20, 0
      %s276 = scalar_select %p275, %s20, 0
      %s277 = sadd.s32 %s276, %s274
      %s278 = smul.addr %s277, 4
      %s279 = scalar_lea.vmem %s4, %s278
      %v281 = vld [vmem:[%s258] sm:$0xf]
      %v282 = vunpack.c.l.bf16 %v281
      %v283 = vmul.f32 %v282, 0.35355338
      %v284 = vpack.c.bf16 %v283, %v283
      %v285 = vld [vmem:[%s265] sm:$0xf]
      %v286 = vld [vmem:[%s272] sm:$0xf]
      %v287 = vld [vmem:[%s3] sm:$0xff]
      %vm288 = vcmask 64512
      %v290 = vsel %vm288, %v284, 0
      %v293 = vsel %vm288, %v285, 0
      %295 = vmatprep.subr.bf16.mxu0 0
      %296 = vmatpush1.bf16.xpose.msra.mxu0 %v293
      %297 = vmatprep.subr.bf16.mxu0 0
      %298 = vmatpush1.bf16.xpose.msra.mxu0 0
      %299 = vmatprep.subr.bf16.mxu0 0
      %300 = vmatpush1.bf16.xpose.msra.mxu0 0
      %301 = vmatprep.subr.bf16.mxu0 0
      %302 = vmatpush1.bf16.xpose.msra.mxu0 0
      %303 = vmatprep.subr.bf16.mxu0 0
      %304 = vmatpush1.bf16.xpose.msra.mxu0 0
      %305 = vmatprep.subr.bf16.mxu0 0
      %306 = vmatpush1.bf16.xpose.msra.mxu0 0
      %307 = vmatprep.subr.bf16.mxu0 0
      %308 = vmatpush1.bf16.xpose.msra.mxu0 0
      %309 = vmatprep.subr.bf16.mxu0 0
      %310 = vmatpush1.bf16.xpose.msra.mxu0 0
      %311 = vmatprep.subr.bf16.mxu0 0
      %312 = vmatpush1.bf16.xpose.msra.mxu0 0
      %313 = vmatprep.subr.bf16.mxu0 0
      %314 = vmatpush1.bf16.xpose.msra.mxu0 0
      %315 = vmatprep.subr.bf16.mxu0 0
      %316 = vmatpush1.bf16.xpose.msra.mxu0 0
      %317 = vmatprep.subr.bf16.mxu0 0
      %318 = vmatpush1.bf16.xpose.msra.mxu0 0
      %319 = vmatprep.subr.bf16.mxu0 0
      %320 = vmatpush1.bf16.xpose.msra.mxu0 0
      %321 = vmatprep.subr.bf16.mxu0 0
      %322 = vmatpush1.bf16.xpose.msra.mxu0 0
      %323 = vmatprep.subr.bf16.mxu0 0
      %324 = vmatpush1.bf16.xpose.msra.mxu0 0
      %325 = vmatprep.subr.bf16.mxu0 0
      %326 = vmatpush1.bf16.xpose.msra.mxu0 0
      %327 = vmatprep.mubr.bf16.mxu0 0
      %328 = vmatmul.mubr.bf16.gmra.mrb[0].mxu0 %v290
      %v329 = vpop.f32.mrb[0].mxu0
      %v330 = vadd.f32 %v287, %v329
      %v331 = vpop.f32.mrb[0].mxu0
      %v332 = vpop.f32.mrb[0].mxu0
      %v333 = vpop.f32.mrb[0].mxu0
      %334 = vdwg.mxu0
      %v335 = vsel %vm288, %v330, -inf
      %336 = vmax.xlane.f32.xlu0 %v335
      %v337 = vpop.xlane.xlu0 %336
      %v338 = vsub.f32 %v330, %v337
      %v339 = vmul.f32 %v338, 1.442695
      %v340 = vpow.pop %v339
      %v341 = vsel %vm288, %v340, 0.0
      %342 = vadd.xlane.f32.xlu0 %v341
      %v343 = vpop.xlane.xlu0 %342
      %v344 = vpack.c.bf16 %v340, %v340
      %v346 = vsel %vm288, %v344, 0
      %vm348 = vcmask 1043456
      %v350 = vsel %vm348, %v286, 0
      %352 = vmatprep.subr.bf16.mxu0 0
      %353 = vmatpush1.bf16.msra.mxu0 %v350
      %354 = vmatprep.subr.bf16.mxu0 0
      %355 = vmatpush1.bf16.msra.mxu0 0
      %356 = vmatprep.subr.bf16.mxu0 0
      %357 = vmatpush1.bf16.msra.mxu0 0
      %358 = vmatprep.subr.bf16.mxu0 0
      %359 = vmatpush1.bf16.msra.mxu0 0
      %360 = vmatprep.subr.bf16.mxu0 0
      %361 = vmatpush1.bf16.msra.mxu0 0
      %362 = vmatprep.subr.bf16.mxu0 0
      %363 = vmatpush1.bf16.msra.mxu0 0
      %364 = vmatprep.subr.bf16.mxu0 0
      %365 = vmatpush1.bf16.msra.mxu0 0
      %366 = vmatprep.subr.bf16.mxu0 0
      %367 = vmatpush1.bf16.msra.mxu0 0
      %368 = vmatprep.subr.bf16.mxu0 0
      %369 = vmatpush1.bf16.msra.mxu0 0
      %370 = vmatprep.subr.bf16.mxu0 0
      %371 = vmatpush1.bf16.msra.mxu0 0
      %372 = vmatprep.subr.bf16.mxu0 0
      %373 = vmatpush1.bf16.msra.mxu0 0
      %374 = vmatprep.subr.bf16.mxu0 0
      %375 = vmatpush1.bf16.msra.mxu0 0
      %376 = vmatprep.subr.bf16.mxu0 0
      %377 = vmatpush1.bf16.msra.mxu0 0
      %378 = vmatprep.subr.bf16.mxu0 0
      %379 = vmatpush1.bf16.msra.mxu0 0
      %380 = vmatprep.subr.bf16.mxu0 0
      %381 = vmatpush1.bf16.msra.mxu0 0
      %382 = vmatprep.subr.bf16.mxu0 0
      %383 = vmatpush1.bf16.msra.mxu0 0
      %384 = vmatprep.mubr.bf16.mxu0 0
      %385 = vmatmul.mubr.bf16.gmra.mrb[0].mxu0 %v346
      %v386 = vpop.f32.mrb[0].mxu0
      %v387 = vadd.f32 0.0, %v386
      %v388 = vpop.f32.mrb[0].mxu0
      %v389 = vpop.f32.mrb[0].mxu0
      %v390 = vpop.f32.mrb[0].mxu0
      %391 = vdwg.mxu0
      %v392 = vrcp.pop %v343
      %v393 = vmul.f32 %v387, %v392
      %v394 = vpack.c.bf16 %v393, %v393
      %vm395 = vcmask 60416
      %396 = vst.msk [vmem:[%s279] sm:$0xf] %vm395, %v394
      %v397 = vld [vmem:[%s3] sm:$0xff]
      %399 = vrot.lane.b32.xlu0 %v284, 120
      %v400 = vpop.permute.xlu0 %399
      %v402 = vunpack.c.l.b16 %v285
      %v403 = vpack.c.b16 %v402, %v402
      %404 = vrot.lane.b32.xlu0 %v403, 120
      %v405 = vpop.permute.xlu0 %404
      %v407 = vsel %vm288, %v400, 0
      %v410 = vsel %vm288, %v405, 0
      %412 = vmatprep.subr.bf16.mxu0 0
      %413 = vmatpush1.bf16.xpose.msra.mxu0 %v410
      %414 = vmatprep.subr.bf16.mxu0 0
      %415 = vmatpush1.bf16.xpose.msra.mxu0 0
      %416 = vmatprep.subr.bf16.mxu0 0
      %417 = vmatpush1.bf16.xpose.msra.mxu0 0
      %418 = vmatprep.subr.bf16.mxu0 0
      %419 = vmatpush1.bf16.xpose.msra.mxu0 0
      %420 = vmatprep.subr.bf16.mxu0 0
      %421 = vmatpush1.bf16.xpose.msra.mxu0 0
      %422 = vmatprep.subr.bf16.mxu0 0
      %423 = vmatpush1.bf16.xpose.msra.mxu0 0
      %424 = vmatprep.subr.bf16.mxu0 0
      %425 = vmatpush1.bf16.xpose.msra.mxu0 0
      %426 = vmatprep.subr.bf16.mxu0 0
      %427 = vmatpush1.bf16.xpose.msra.mxu0 0
      %428 = vmatprep.subr.bf16.mxu0 0
      %429 = vmatpush1.bf16.xpose.msra.mxu0 0
      %430 = vmatprep.subr.bf16.mxu0 0
      %431 = vmatpush1.bf16.xpose.msra.mxu0 0
      %432 = vmatprep.subr.bf16.mxu0 0
      %433 = vmatpush1.bf16.xpose.msra.mxu0 0
      %434 = vmatprep.subr.bf16.mxu0 0
      %435 = vmatpush1.bf16.xpose.msra.mxu0 0
      %436 = vmatprep.subr.bf16.mxu0 0
      %437 = vmatpush1.bf16.xpose.msra.mxu0 0
      %438 = vmatprep.subr.bf16.mxu0 0
      %439 = vmatpush1.bf16.xpose.msra.mxu0 0
      %440 = vmatprep.subr.bf16.mxu0 0
      %441 = vmatpush1.bf16.xpose.msra.mxu0 0
      %442 = vmatprep.subr.bf16.mxu0 0
      %443 = vmatpush1.bf16.xpose.msra.mxu0 0
      %444 = vmatprep.mubr.bf16.mxu0 0
      %445 = vmatmul.mubr.bf16.gmra.mrb[0].mxu0 %v407
      %v446 = vpop.f32.mrb[0].mxu0
      %v447 = vadd.f32 %v397, %v446
      %v448 = vpop.f32.mrb[0].mxu0
      %v449 = vpop.f32.mrb[0].mxu0
      %v450 = vpop.f32.mrb[0].mxu0
      %451 = vdwg.mxu0
      %v452 = vsel %vm288, %v447, -inf
      %453 = vmax.xlane.f32.xlu0 %v452
      %v454 = vpop.xlane.xlu0 %453
      %v455 = vsub.f32 %v447, %v454
      %v456 = vmul.f32 %v455, 1.442695
      %v457 = vpow.pop %v456
      %v458 = vsel %vm288, %v457, 0.0
      %459 = vadd.xlane.f32.xlu0 %v458
      %v460 = vpop.xlane.xlu0 %459
      %v461 = vpack.c.bf16 %v457, %v457
      %v463 = vunpack.c.l.b16 %v286
      %v464 = vpack.c.b16 %v463, %v463
      %465 = vrot.lane.b32.xlu0 %v464, 120
      %v466 = vpop.permute.xlu0 %465
      %v468 = vsel %vm288, %v461, 0
      %v471 = vsel %vm348, %v466, 0
      %473 = vmatprep.subr.bf16.mxu0 0
      %474 = vmatpush1.bf16.msra.mxu0 %v471
      %475 = vmatprep.subr.bf16.mxu0 0
      %476 = vmatpush1.bf16.msra.mxu0 0
      %477 = vmatprep.subr.bf16.mxu0 0
      %478 = vmatpush1.bf16.msra.mxu0 0
      %479 = vmatprep.subr.bf16.mxu0 0
      %480 = vmatpush1.bf16.msra.mxu0 0
      %481 = vmatprep.subr.bf16.mxu0 0
      %482 = vmatpush1.bf16.msra.mxu0 0
      %483 = vmatprep.subr.bf16.mxu0 0
      %484 = vmatpush1.bf16.msra.mxu0 0
      %485 = vmatprep.subr.bf16.mxu0 0
      %486 = vmatpush1.bf16.msra.mxu0 0
      %487 = vmatprep.subr.bf16.mxu0 0
      %488 = vmatpush1.bf16.msra.mxu0 0
      %489 = vmatprep.subr.bf16.mxu0 0
      %490 = vmatpush1.bf16.msra.mxu0 0
      %491 = vmatprep.subr.bf16.mxu0 0
      %492 = vmatpush1.bf16.msra.mxu0 0
      %493 = vmatprep.subr.bf16.mxu0 0
      %494 = vmatpush1.bf16.msra.mxu0 0
      %495 = vmatprep.subr.bf16.mxu0 0
      %496 = vmatpush1.bf16.msra.mxu0 0
      %497 = vmatprep.subr.bf16.mxu0 0
      %498 = vmatpush1.bf16.msra.mxu0 0
      %499 = vmatprep.subr.bf16.mxu0 0
      %500 = vmatpush1.bf16.msra.mxu0 0
      %501 = vmatprep.subr.bf16.mxu0 0
      %502 = vmatpush1.bf16.msra.mxu0 0
      %503 = vmatprep.subr.bf16.mxu0 0
      %504 = vmatpush1.bf16.msra.mxu0 0
      %505 = vmatprep.mubr.bf16.mxu0 0
      %506 = vmatmul.mubr.bf16.gmra.mrb[0].mxu0 %v468
      %v507 = vpop.f32.mrb[0].mxu0
      %v508 = vadd.f32 0.0, %v507
      %v509 = vpop.f32.mrb[0].mxu0
      %v510 = vpop.f32.mrb[0].mxu0
      %v511 = vpop.f32.mrb[0].mxu0
      %512 = vdwg.mxu0
      %v513 = vrcp.pop %v460
      %v514 = vmul.f32 %v508, %v513
      %v515 = vpack.c.bf16 %v514, %v514
      %v517 = vunpack.c.l.b16 %v515
      %v518 = vpack.c.b16 %v517, %v517
      %519 = vrot.lane.b32.xlu0 %v518, 8
      %v520 = vpop.permute.xlu0 %519
      %vm522 = vcmask 126016
      %523 = vst.msk [vmem:[%s279] sm:$0xf] %vm522, %v520
      %v524 = vld [vmem:[%s3] sm:$0xff]
      %525 = vrot.lane.b32.xlu0 %v284, 112
      %v526 = vpop.permute.xlu0 %525
      %527 = vrot.lane.b32.xlu0 %v403, 112
      %v528 = vpop.permute.xlu0 %527
      %v530 = vsel %vm288, %v526, 0
      %v533 = vsel %vm288, %v528, 0
      %535 = vmatprep.subr.bf16.mxu0 0
      %536 = vmatpush1.bf16.xpose.msra.mxu0 %v533
      %537 = vmatprep.subr.bf16.mxu0 0
      %538 = vmatpush1.bf16.xpose.msra.mxu0 0
      %539 = vmatprep.subr.bf16.mxu0 0
      %540 = vmatpush1.bf16.xpose.msra.mxu0 0
      %541 = vmatprep.subr.bf16.mxu0 0
      %542 = vmatpush1.bf16.xpose.msra.mxu0 0
      %543 = vmatprep.subr.bf16.mxu0 0
      %544 = vmatpush1.bf16.xpose.msra.mxu0 0
      %545 = vmatprep.subr.bf16.mxu0 0
      %546 = vmatpush1.bf16.xpose.msra.mxu0 0
      %547 = vmatprep.subr.bf16.mxu0 0
      %548 = vmatpush1.bf16.xpose.msra.mxu0 0
      %549 = vmatprep.subr.bf16.mxu0 0
      %550 = vmatpush1.bf16.xpose.msra.mxu0 0
      %551 = vmatprep.subr.bf16.mxu0 0
      %552 = vmatpush1.bf16.xpose.msra.mxu0 0
      %553 = vmatprep.subr.bf16.mxu0 0
      %554 = vmatpush1.bf16.xpose.msra.mxu0 0
      %555 = vmatprep.subr.bf16.mxu0 0
      %556 = vmatpush1.bf16.xpose.msra.mxu0 0
      %557 = vmatprep.subr.bf16.mxu0 0
      %558 = vmatpush1.bf16.xpose.msra.mxu0 0
      %559 = vmatprep.subr.bf16.mxu0 0
      %560 = vmatpush1.bf16.xpose.msra.mxu0 0
      %561 = vmatprep.subr.bf16.mxu0 0
      %562 = vmatpush1.bf16.xpose.msra.mxu0 0
      %563 = vmatprep.subr.bf16.mxu0 0
      %564 = vmatpush1.bf16.xpose.msra.mxu0 0
      %565 = vmatprep.subr.bf16.mxu0 0
      %566 = vmatpush1.bf16.xpose.msra.mxu0 0
      %567 = vmatprep.mubr.bf16.mxu0 0
      %568 = vmatmul.mubr.bf16.gmra.mrb[0].mxu0 %v530
      %v569 = vpop.f32.mrb[0].mxu0
      %v570 = vadd.f32 %v524, %v569
      %v571 = vpop.f32.mrb[0].mxu0
      %v572 = vpop.f32.mrb[0].mxu0
      %v573 = vpop.f32.mrb[0].mxu0
      %574 = vdwg.mxu0
      %v575 = vsel %vm288, %v570, -inf
      %576 = vmax.xlane.f32.xlu0 %v575
      %v577 = vpop.xlane.xlu0 %576
      %v578 = vsub.f32 %v570, %v577
      %v579 = vmul.f32 %v578, 1.442695
      %v580 = vpow.pop %v579
      %v581 = vsel %vm288, %v580, 0.0
      %582 = vadd.xlane.f32.xlu0 %v581
      %v583 = vpop.xlane.xlu0 %582
      %v584 = vpack.c.bf16 %v580, %v580
      %585 = vrot.lane.b32.xlu0 %v464, 112
      %v586 = vpop.permute.xlu0 %585
      %v588 = vsel %vm288, %v584, 0
      %v591 = vsel %vm348, %v586, 0
      %593 = vmatprep.subr.bf16.mxu0 0
      %594 = vmatpush1.bf16.msra.mxu0 %v591
      %595 = vmatprep.subr.bf16.mxu0 0
      %596 = vmatpush1.bf16.msra.mxu0 0
      %597 = vmatprep.subr.bf16.mxu0 0
      %598 = vmatpush1.bf16.msra.mxu0 0
      %599 = vmatprep.subr.bf16.mxu0 0
      %600 = vmatpush1.bf16.msra.mxu0 0
      %601 = vmatprep.subr.bf16.mxu0 0
      %602 = vmatpush1.bf16.msra.mxu0 0
      %603 = vmatprep.subr.bf16.mxu0 0
      %604 = vmatpush1.bf16.msra.mxu0 0
      %605 = vmatprep.subr.bf16.mxu0 0
      %606 = vmatpush1.bf16.msra.mxu0 0
      %607 = vmatprep.subr.bf16.mxu0 0
      %608 = vmatpush1.bf16.msra.mxu0 0
      %609 = vmatprep.subr.bf16.mxu0 0
      %610 = vmatpush1.bf16.msra.mxu0 0
      %611 = vmatprep.subr.bf16.mxu0 0
      %612 = vmatpush1.bf16.msra.mxu0 0
      %613 = vmatprep.subr.bf16.mxu0 0
      %614 = vmatpush1.bf16.msra.mxu0 0
      %615 = vmatprep.subr.bf16.mxu0 0
      %616 = vmatpush1.bf16.msra.mxu0 0
      %617 = vmatprep.subr.bf16.mxu0 0
      %618 = vmatpush1.bf16.msra.mxu0 0
      %619 = vmatprep.subr.bf16.mxu0 0
      %620 = vmatpush1.bf16.msra.mxu0 0
      %621 = vmatprep.subr.bf16.mxu0 0
      %622 = vmatpush1.bf16.msra.mxu0 0
      %623 = vmatprep.subr.bf16.mxu0 0
      %624 = vmatpush1.bf16.msra.mxu0 0
      %625 = vmatprep.mubr.bf16.mxu0 0
      %626 = vmatmul.mubr.bf16.gmra.mrb[0].mxu0 %v588
      %v627 = vpop.f32.mrb[0].mxu0
      %v628 = vadd.f32 0.0, %v627
      %v629 = vpop.f32.mrb[0].mxu0
      %v630 = vpop.f32.mrb[0].mxu0
      %v631 = vpop.f32.mrb[0].mxu0
      %632 = vdwg.mxu0
      %v633 = vrcp.pop %v583
      %v634 = vmul.f32 %v628, %v633
      %v635 = vpack.c.bf16 %v634, %v634
      %v637 = vunpack.c.l.b16 %v635
      %v638 = vpack.c.b16 %v637, %v637
      %639 = vrot.lane.b32.xlu0 %v638, 16
      %v640 = vpop.permute.xlu0 %639
      %vm642 = vcmask 191616
      %643 = vst.msk [vmem:[%s279] sm:$0xf] %vm642, %v640
      %v644 = vld [vmem:[%s3] sm:$0xff]
      %645 = vrot.lane.b32.xlu0 %v284, 104
      %v646 = vpop.permute.xlu0 %645
      %647 = vrot.lane.b32.xlu0 %v403, 104
      %v648 = vpop.permute.xlu0 %647
      %v650 = vsel %vm288, %v646, 0
      %v653 = vsel %vm288, %v648, 0
      %655 = vmatprep.subr.bf16.mxu0 0
      %656 = vmatpush1.bf16.xpose.msra.mxu0 %v653
      %657 = vmatprep.subr.bf16.mxu0 0
      %658 = vmatpush1.bf16.xpose.msra.mxu0 0
      %659 = vmatprep.subr.bf16.mxu0 0
      %660 = vmatpush1.bf16.xpose.msra.mxu0 0
      %661 = vmatprep.subr.bf16.mxu0 0
      %662 = vmatpush1.bf16.xpose.msra.mxu0 0
      %663 = vmatprep.subr.bf16.mxu0 0
      %664 = vmatpush1.bf16.xpose.msra.mxu0 0
      %665 = vmatprep.subr.bf16.mxu0 0
      %666 = vmatpush1.bf16.xpose.msra.mxu0 0
      %667 = vmatprep.subr.bf16.mxu0 0
      %668 = vmatpush1.bf16.xpose.msra.mxu0 0
      %669 = vmatprep.subr.bf16.mxu0 0
      %670 = vmatpush1.bf16.xpose.msra.mxu0 0
      %671 = vmatprep.subr.bf16.mxu0 0
      %672 = vmatpush1.bf16.xpose.msra.mxu0 0
      %673 = vmatprep.subr.bf16.mxu0 0
      %674 = vmatpush1.bf16.xpose.msra.mxu0 0
      %675 = vmatprep.subr.bf16.mxu0 0
      %676 = vmatpush1.bf16.xpose.msra.mxu0 0
      %677 = vmatprep.subr.bf16.mxu0 0
      %678 = vmatpush1.bf16.xpose.msra.mxu0 0
      %679 = vmatprep.subr.bf16.mxu0 0
      %680 = vmatpush1.bf16.xpose.msra.mxu0 0
      %681 = vmatprep.subr.bf16.mxu0 0
      %682 = vmatpush1.bf16.xpose.msra.mxu0 0
      %683 = vmatprep.subr.bf16.mxu0 0
      %684 = vmatpush1.bf16.xpose.msra.mxu0 0
      %685 = vmatprep.subr.bf16.mxu0 0
      %686 = vmatpush1.bf16.xpose.msra.mxu0 0
      %687 = vmatprep.mubr.bf16.mxu0 0
      %688 = vmatmul.mubr.bf16.gmra.mrb[0].mxu0 %v650
      %v689 = vpop.f32.mrb[0].mxu0
      %v690 = vadd.f32 %v644, %v689
      %v691 = vpop.f32.mrb[0].mxu0
      %v692 = vpop.f32.mrb[0].mxu0
      %v693 = vpop.f32.mrb[0].mxu0
      %694 = vdwg.mxu0
      %v695 = vsel %vm288, %v690, -inf
      %696 = vmax.xlane.f32.xlu0 %v695
      %v697 = vpop.xlane.xlu0 %696
      %v698 = vsub.f32 %v690, %v697
      %v699 = vmul.f32 %v698, 1.442695
      %v700 = vpow.pop %v699
      %v701 = vsel %vm288, %v700, 0.0
      %702 = vadd.xlane.f32.xlu0 %v701
      %v703 = vpop.xlane.xlu0 %702
      %v704 = vpack.c.bf16 %v700, %v700
      %705 = vrot.lane.b32.xlu0 %v464, 104
      %v706 = vpop.permute.xlu0 %705
      %v708 = vsel %vm288, %v704, 0
      %v711 = vsel %vm348, %v706, 0
      %713 = vmatprep.subr.bf16.mxu0 0
      %714 = vmatpush1.bf16.msra.mxu0 %v711
      %715 = vmatprep.subr.bf16.mxu0 0
      %716 = vmatpush1.bf16.msra.mxu0 0
      %717 = vmatprep.subr.bf16.mxu0 0
      %718 = vmatpush1.bf16.msra.mxu0 0
      %719 = vmatprep.subr.bf16.mxu0 0
      %720 = vmatpush1.bf16.msra.mxu0 0
      %721 = vmatprep.subr.bf16.mxu0 0
      %722 = vmatpush1.bf16.msra.mxu0 0
      %723 = vmatprep.subr.bf16.mxu0 0
      %724 = vmatpush1.bf16.msra.mxu0 0
      %725 = vmatprep.subr.bf16.mxu0 0
      %726 = vmatpush1.bf16.msra.mxu0 0
      %727 = vmatprep.subr.bf16.mxu0 0
      %728 = vmatpush1.bf16.msra.mxu0 0
      %729 = vmatprep.subr.bf16.mxu0 0
      %730 = vmatpush1.bf16.msra.mxu0 0
      %731 = vmatprep.subr.bf16.mxu0 0
      %732 = vmatpush1.bf16.msra.mxu0 0
      %733 = vmatprep.subr.bf16.mxu0 0
      %734 = vmatpush1.bf16.msra.mxu0 0
      %735 = vmatprep.subr.bf16.mxu0 0
      %736 = vmatpush1.bf16.msra.mxu0 0
      %737 = vmatprep.subr.bf16.mxu0 0
      %738 = vmatpush1.bf16.msra.mxu0 0
      %739 = vmatprep.subr.bf16.mxu0 0
      %740 = vmatpush1.bf16.msra.mxu0 0
      %741 = vmatprep.subr.bf16.mxu0 0
      %742 = vmatpush1.bf16.msra.mxu0 0
      %743 = vmatprep.subr.bf16.mxu0 0
      %744 = vmatpush1.bf16.msra.mxu0 0
      %745 = vmatprep.mubr.bf16.mxu0 0
      %746 = vmatmul.mubr.bf16.gmra.mrb[0].mxu0 %v708
      %v747 = vpop.f32.mrb[0].mxu0
      %v748 = vadd.f32 0.0, %v747
      %v749 = vpop.f32.mrb[0].mxu0
      %v750 = vpop.f32.mrb[0].mxu0
      %v751 = vpop.f32.mrb[0].mxu0
      %752 = vdwg.mxu0
      %v753 = vrcp.pop %v703
      %v754 = vmul.f32 %v748, %v753
      %v755 = vpack.c.bf16 %v754, %v754
      %v757 = vunpack.c.l.b16 %v755
      %v758 = vpack.c.b16 %v757, %v757
      %759 = vrot.lane.b32.xlu0 %v758, 24
      %v760 = vpop.permute.xlu0 %759
      %vm762 = vcmask 257216
      %763 = vst.msk [vmem:[%s279] sm:$0xf] %vm762, %v760
      %p764 = scmp.lt.s32.totalorder %s19, 1
      %s765 = scalar_select %p764, %s19, 1
      %p766 = scmp.lt.s32.totalorder %s20, 0
      %s767 = scalar_select %p766, %s20, 0
      %s768 = sadd.s32 %s767, %s765
      %s769 = smul.addr %s768, 4
      %s770 = scalar_lea.vmem %s4, %s769
      // Predicated region
      $region37: #{clip_forward.39} parent=35 // pred_check
        %p771 = pneg %p152
      $region38: #{clip_forward.39} parent=35 // pred_check_branch
        %773 = sbr.rel (%p771) target = $region40
      $region39: #{clip_forward.39} parent=35 // pred_region
        _
      $region40: #{clip_forward.39} parent=35 // pred_fallthru
        _
    $region36: #{clip_forward.39} parent=5 // pred_fallthru
      _
    %p774 = scmp.le.s32.totalorder 2, %s10
    // Predicated region
    $region41: #{clip_forward.39} parent=5 // pred_check
      %p775 = pneg %p774
    $region42: #{clip_forward.39} parent=5 // pred_check_branch
      %777 = sbr.rel (%p775) target = $region44
    $region43: #{clip_forward.39} parent=5 // pred_region
      %s778 = ssub.s32 %s10, 2
      // Predicated region
      $region45: #{clip_forward.39} parent=43 // pred_check
        %p779 = pneg %p158
      $region46: #{clip_forward.39} parent=43 // pred_check_branch
        %781 = sbr.rel (%p779) target = $region48
      $region47: #{clip_forward.39} parent=43 // pred_region
        %p782 = scmp.lt.s32.totalorder %s21, 1
        %s783 = scalar_select %p782, %s21, 1
        %p784 = scmp.lt.s32.totalorder %s22, 0
        %s785 = scalar_select %p784, %s22, 0
        %s786 = sadd.s32 %s785, %s783
        %s787 = smul.addr %s786, 4
        %s788 = scalar_lea.vmem %s4, %s787
      $region48: #{clip_forward.39} parent=43 // pred_fallthru
        _
    $region44: #{clip_forward.39} parent=5 // pred_fallthru
      _
  $region6: #{clip_forward.39} parent=0 // loop_footer
    %s14 = sadd.s32 1, %s10
  $region7: #{clip_forward.39} parent=0 // loop_footer_branch
    %9 = sbr.rel target = $region3
  $region8: #{clip_forward.39} parent=0 // loop_exit
    _

// kernel: clip_forward.48
$region0: #{clip_forward.48}
  #allocation0 [shape = 'u32[]', space=smem, size = 0x4, offset = 0x4, fixed_abs, tag = 'smem constant byte address 0x4 - core index']
  #allocation1 [shape = 'u32[144,128]{1,0:T(1,128)}', space=vmem, size = 0x12000, scoped, tag = 'internal scratch']
  %s0 = inlined_call_operand.vmem [shape: bf16[16,32], index: 0, kind: input, shape index: {}]
  %s1 = inlined_call_operand.vmem [shape: f32[1,32], index: 1, kind: input, shape index: {}]
  %s2 = inlined_call_operand.vmem [shape: f32[1,32], index: 2, kind: input, shape index: {}]
  %s3 = inlined_call_operand.vmem [shape: bf16[16,32], index: 3, kind: output, shape index: {}]
  %s4 = sld [smem:[#allocation0]]
  $region22: #{clip_forward.48} parent=0
    _
  %s6 = ssub.s32 1, %s4
  %s7 = scalar_select 0, %s6, %s4
  // Predicated region
  $region2: #{clip_forward.48} parent=0 // pred_check
    _
  $region3: #{clip_forward.48} parent=0 // pred_check_branch
    %9 = sbr.rel (0) target = $region5
  $region4: #{clip_forward.48} parent=0 // pred_region
    _
  $region5: #{clip_forward.48} parent=0 // pred_fallthru
    _
  // Predicated region
  $region6: #{clip_forward.48} parent=0 // pred_check
    _
  $region7: #{clip_forward.48} parent=0 // pred_check_branch
    %11 = sbr.rel (0) target = $region9
  $region8: #{clip_forward.48} parent=0 // pred_region
    _
  $region9: #{clip_forward.48} parent=0 // pred_fallthru
    _
  // Predicated region
  $region10: #{clip_forward.48} parent=0 // pred_check
    _
  $region11: #{clip_forward.48} parent=0 // pred_check_branch
    %13 = sbr.rel (0) target = $region13
  $region12: #{clip_forward.48} parent=0 // pred_region
    _
  $region13: #{clip_forward.48} parent=0 // pred_fallthru
    _
  %v14 = vld [vmem:[%s0] sm:$0xf]
  %v15 = vld [vmem:[%s0 + $0x4] sm:$0xf]
  %v16 = vunpack.c.l.bf16 %v14
  %v17 = vunpack.c.l.bf16 %v15
  %vm18 = vcmask 261120
  %v19 = vsel %vm18, %v16, 0.0
  %20 = vadd.xlane.f32.xlu0 %v19
  %v21 = vpop.xlane.xlu0 %20
  %v22 = vsel %vm18, %v17, 0.0
  %23 = vadd.xlane.f32.xlu0 %v22
  %v24 = vpop.xlane.xlu0 %23
  %v25 = vrcp.pop 32.0
  %v26 = vmul.f32 %v21, %v25
  %v27 = vmul.f32 %v24, %v25
  %v28 = vsub.f32 %v16, %v26
  %v29 = vsub.f32 %v17, %v27
  %v30 = vmul.f32 %v28, %v28
  %v31 = vmul.f32 %v29, %v29
  %v32 = vsel %vm18, %v30, 0.0
  %33 = vadd.xlane.f32.xlu0 %v32
  %v34 = vpop.xlane.xlu0 %33
  %v35 = vsel %vm18, %v31, 0.0
  %36 = vadd.xlane.f32.xlu0 %v35
  %v37 = vpop.xlane.xlu0 %36
  %v38 = vmul.f32 %v34, %v25
  %v39 = vmul.f32 %v37, %v25
  %v40 = vadd.f32 %v38, 1e-05
  %v41 = vadd.f32 %v39, 1e-05
  %v42 = vrsqrt.pop %v40
  %v43 = vrsqrt.pop %v41
  %v44 = vmul.f32 %v28, %v42
  %v45 = vmul.f32 %v29, %v43
  %v46 = vld [vmem:[%s1] sm:$0x1]
  %v48 = vlaneseq
  %v49 = vshrl.u32 %v48, 7
  %v50 = vsub.s32 0, %v49
  %v51 = vrot.slane %v46, %v50
  %v53 = vmul.f32 %v44, %v51
  %v54 = vmul.f32 %v45, %v51
  %v55 = vld [vmem:[%s2] sm:$0x1]
  %v57 = vlaneseq
  %v58 = vshrl.u32 %v57, 7
  %v59 = vsub.s32 0, %v58
  %v60 = vrot.slane %v55, %v59
  %v62 = vadd.f32 %v53, %v60
  %v63 = vadd.f32 %v54, %v60
  %v64 = vpack.c.bf16 %v63, %v62
  %v66 = vunpack.c.l.b16 %v64
  %v67 = vunpack.c.h.b16 %v64
  %v68 = vpack.c.b16 %v66, %v66
  %v69 = vpack.c.b16 %v67, %v67
  %vm72 = vcmask 257024
  %73 = vst.msk [vmem:[%s3] sm:$0xf] %vm72, %v68
  %74 = vst.msk [vmem:[%s3 + $0x4] sm:$0xf] %vm72, %v69
  // Predicated region
  $region14: #{clip_forward.48} parent=0 // pred_check
    _
  $region15: #{clip_forward.48} parent=0 // pred_check_branch
    %76 = sbr.rel (0) target = $region17
  $region16: #{clip_forward.48} parent=0 // pred_region
    _
  $region17: #{clip_forward.48} parent=0 // pred_fallthru
    _
  // Predicated region
  $region18: #{clip_forward.48} parent=0 // pred_check
    _
  $region19: #{clip_forward.48} parent=0 // pred_check_branch
    %78 = sbr.rel (0) target = $region21
  $region20: #{clip_forward.48} parent=0 // pred_region
    _
  $region21: #{clip_forward.48} parent=0 // pred_fallthru
    _

// kernel: clip_forward.49
$region0: #{clip_forward.49}
  #allocation0 [shape = 'u32[]', space=smem, size = 0x4, offset = 0x4, fixed_abs, tag = 'smem constant byte address 0x4 - core index']
  #allocation1 [shape = 'u32[144,128]{1,0:T(1,128)}', space=vmem, size = 0x12000, scoped, tag = 'internal scratch']
  #allocation2 [shape = 'f32[8,128]{1,0:T(8,128)}', space=vmem, size = 0x1000, scoped, tag = 'scratch operand']
  %s0 = inlined_call_operand.vmem [shape: bf16[8,128], index: 0, kind: input, shape index: {}]
  %s1 = inlined_call_operand.vmem [shape: bf16[128,128], index: 1, kind: input, shape index: {}]
  %s2 = inlined_call_operand.vmem [shape: f32[1,128], index: 2, kind: input, shape index: {}]
  %s3 = inlined_call_operand.vmem [shape: f32[8,128], index: 3, kind: output, shape index: {}]
  %s4 = sld [smem:[#allocation0]]
  $region30: #{clip_forward.49} parent=0
    _
  %s6 = ssub.s32 1, %s4
  %s7 = scalar_select 0, %s6, %s4
  // Predicated region
  $region2: #{clip_forward.49} parent=0 // pred_check
    _
  $region3: #{clip_forward.49} parent=0 // pred_check_branch
    %9 = sbr.rel (0) target = $region5
  $region4: #{clip_forward.49} parent=0 // pred_region
    _
  $region5: #{clip_forward.49} parent=0 // pred_fallthru
    _
  // Predicated region
  $region6: #{clip_forward.49} parent=0 // pred_check
    _
  $region7: #{clip_forward.49} parent=0 // pred_check_branch
    %11 = sbr.rel (0) target = $region9
  $region8: #{clip_forward.49} parent=0 // pred_region
    _
  $region9: #{clip_forward.49} parent=0 // pred_fallthru
    _
  // Predicated region
  $region10: #{clip_forward.49} parent=0 // pred_check
    _
  $region11: #{clip_forward.49} parent=0 // pred_check_branch
    %13 = sbr.rel (0) target = $region13
  $region12: #{clip_forward.49} parent=0 // pred_region
    _
  $region13: #{clip_forward.49} parent=0 // pred_fallthru
    _
  %p15 = scmp.eq.s32.totalorder 0, 0
  // Predicated region
  $region14: #{clip_forward.49} parent=0 // pred_check
    %p16 = pneg %p15
  $region15: #{clip_forward.49} parent=0 // pred_check_branch
    %18 = sbr.rel (%p16) target = $region17
  $region16: #{clip_forward.49} parent=0 // pred_region
    %19 = vst [vmem:[#allocation2] sm:$0xff] 0.0
  $region17: #{clip_forward.49} parent=0 // pred_fallthru
    _
  %v20 = vld [vmem:[#allocation2] sm:$0xff]
  %v21 = vld [vmem:[%s0] sm:$0xf]
  %v22 = vld [vmem:[%s1] sm:$0xf]
  %v23 = vld [vmem:[%s1 + $0x4] sm:$0xf]
  %v24 = vld [vmem:[%s1 + $0x8] sm:$0xf]
  %v25 = vld [vmem:[%s1 + $0xc] sm:$0xf]
  %v26 = vld [vmem:[%s1 + $0x10] sm:$0xf]
  %v27 = vld [vmem:[%s1 + $0x14] sm:$0xf]
  %v28 = vld [vmem:[%s1 + $0x18] sm:$0xf]
  %v29 = vld [vmem:[%s1 + $0x1c] sm:$0xf]
  %v30 = vld [vmem:[%s1 + $0x20] sm:$0xf]
  %v31 = vld [vmem:[%s1 + $0x24] sm:$0xf]
  %v32 = vld [vmem:[%s1 + $0x28] sm:$0xf]
  %v33 = vld [vmem:[%s1 + $0x2c] sm:$0xf]
  %v34 = vld [vmem:[%s1 + $0x30] sm:$0xf]
  %v35 = vld [vmem:[%s1 + $0x34] sm:$0xf]
  %v36 = vld [vmem:[%s1 + $0x38] sm:$0xf]
  %v37 = vld [vmem:[%s1 + $0x3c] sm:$0xf]
  %v54 = vunpack.c.l.b16 %v22
  %v55 = vunpack.c.l.b16 %v23
  %v56 = vunpack.c.l.b16 %v24
  %v57 = vunpack.c.l.b16 %v25
  %v58 = vunpack.c.l.b16 %v26
  %v59 = vunpack.c.l.b16 %v27
  %v60 = vunpack.c.l.b16 %v28
  %v61 = vunpack.c.l.b16 %v29
  %v62 = vunpack.c.l.b16 %v30
  %v63 = vunpack.c.l.b16 %v31
  %v64 = vunpack.c.l.b16 %v32
  %v65 = vunpack.c.l.b16 %v33
  %v66 = vunpack.c.l.b16 %v34
  %v67 = vunpack.c.l.b16 %v35
  %v68 = vunpack.c.l.b16 %v36
  %v69 = vunpack.c.l.b16 %v37
  %v70 = vpack.c.b16 %v55, %v54
  %v71 = vpack.c.b16 %v57, %v56
  %v72 = vpack.c.b16 %v59, %v58
  %v73 = vpack.c.b16 %v61, %v60
  %v74 = vpack.c.b16 %v63, %v62
  %v75 = vpack.c.b16 %v65, %v64
  %v76 = vpack.c.b16 %v67, %v66
  %v77 = vpack.c.b16 %v69, %v68
  %86 = vmatprep.subr.bf16.mxu0 0
  %87 = vmatpush1.bf16.msra.mxu0 %v70
  %88 = vmatprep.subr.bf16.mxu0 0
  %89 = vmatpush1.bf16.msra.mxu0 %v71
  %90 = vmatprep.subr.bf16.mxu0 0
  %91 = vmatpush1.bf16.msra.mxu0 %v72
  %92 = vmatprep.subr.bf16.mxu0 0
  %93 = vmatpush1.bf16.msra.mxu0 %v73
  %94 = vmatprep.subr.bf16.mxu0 0
  %95 = vmatpush1.bf16.msra.mxu0 %v74
  %96 = vmatprep.subr.bf16.mxu0 0
  %97 = vmatpush1.bf16.msra.mxu0 %v75
  %98 = vmatprep.subr.bf16.mxu0 0
  %99 = vmatpush1.bf16.msra.mxu0 %v76
  %100 = vmatprep.subr.bf16.mxu0 0
  %101 = vmatpush1.bf16.msra.mxu0 %v77
  %102 = vmatprep.subr.bf16.mxu0 0
  %103 = vmatpush1.bf16.msra.mxu0 0
  %104 = vmatprep.subr.bf16.mxu0 0
  %105 = vmatpush1.bf16.msra.mxu0 0
  %106 = vmatprep.subr.bf16.mxu0 0
  %107 = vmatpush1.bf16.msra.mxu0 0
  %108 = vmatprep.subr.bf16.mxu0 0
  %109 = vmatpush1.bf16.msra.mxu0 0
  %110 = vmatprep.subr.bf16.mxu0 0
  %111 = vmatpush1.bf16.msra.mxu0 0
  %112 = vmatprep.subr.bf16.mxu0 0
  %113 = vmatpush1.bf16.msra.mxu0 0
  %114 = vmatprep.subr.bf16.mxu0 0
  %115 = vmatpush1.bf16.msra.mxu0 0
  %116 = vmatprep.subr.bf16.mxu0 0
  %117 = vmatpush1.bf16.msra.mxu0 0
  %118 = vmatprep.mubr.bf16.mxu0 0
  %119 = vmatmul.mubr.bf16.gmra.mrb[0].mxu0 %v21
  %v120 = vpop.f32.mrb[0].mxu0
  %v121 = vadd.f32 0.0, %v120
  %v122 = vpop.f32.mrb[0].mxu0
  %v123 = vpop.f32.mrb[0].mxu0
  %v124 = vpop.f32.mrb[0].mxu0
  %125 = vdwg.mxu0
  %v126 = vadd.f32 %v20, %v121
  %127 = vst [vmem:[#allocation2] sm:$0xff] %v126
  // Predicated region
  $region18: #{clip_forward.49} parent=0 // pred_check
    %p128 = pneg %p15
  $region19: #{clip_forward.49} parent=0 // pred_check_branch
    %130 = sbr.rel (%p128) target = $region21
  $region20: #{clip_forward.49} parent=0 // pred_region
    %v131 = vld [vmem:[#allocation2] sm:$0xff]
    %v132 = vld [vmem:[%s2] sm:$0x1]
    %v134 = vlaneseq
    %v135 = vshrl.u32 %v134, 7
    %v136 = vsub.s32 0, %v135
    %v137 = vrot.slane %v132, %v136
    %v139 = vadd.f32 %v131, %v137
    %140 = vst [vmem:[%s3] sm:$0xff] %v139
  $region21: #{clip_forward.49} parent=0 // pred_fallthru
    _
  // Predicated region
  $region22: #{clip_forward.49} parent=0 // pred_check
    _
  $region23: #{clip_forward.49} parent=0 // pred_check_branch
    %142 = sbr.rel (0) target = $region25
  $region24: #{clip_forward.49} parent=0 // pred_region
    _
  $region25: #{clip_forward.49} parent=0 // pred_fallthru
    _
  // Predicated region
  $region26: #{clip_forward.49} parent=0 // pred_check
    _
  $region27: #{clip_forward.49} parent=0 // pred_check_branch
    %144 = sbr.rel (0) target = $region29
  $region28: #{clip_forward.49} parent=0 // pred_region
    _
  $region29: #{clip_forward.49} parent=0 // pred_fallthru
    _

</llo_original>
